<compile_context>
chip_gen: v7x
topology: tpu7x:2x2x1
jax: 0.10.0
libtpu: 0.0.40
codegen_flags: <defaults>
</compile_context>

<pallas_src>
import jax
import jax.numpy as jnp
from jax import lax
from jax.experimental import pallas as pl
from jax.experimental.pallas import tpu as pltpu

MASK_IDX = 0
N_HEADS = 2
_VMEM_LIMIT = 32 * 1024 * 1024

_VMEM = pl.BlockSpec(memory_space=pltpu.MemorySpace.VMEM)


# --------------------------------------------------------------------------
# Kernel 1: bidirectional encoder LSTM (input projections pre-computed)
# --------------------------------------------------------------------------
def _encoder_kernel(xpf_ref, xpb_ref, whf_ref, whb_ref, h_ref, c_ref):
    Lt, B, H4 = xpf_ref.shape
    H = H4 // 4
    whf = whf_ref[...]                      # bf16 [H, 4H]
    whb = whb_ref[...]

    def cell(gates_pre, h, c, w_hh):
        # gates_pre already holds x@W_ih + (b_ih + b_hh); only the recurrent matmul here.
        gates = gates_pre + jnp.dot(h.astype(w_hh.dtype), w_hh,
                                    preferred_element_type=jnp.float32)
        i_g = jax.nn.sigmoid(gates[:, 0 * H:1 * H])
        f_g = jax.nn.sigmoid(gates[:, 1 * H:2 * H])
        g_g = jnp.tanh(gates[:, 2 * H:3 * H])
        o_g = jax.nn.sigmoid(gates[:, 3 * H:4 * H])
        c_n = f_g * c + i_g * g_g
        h_n = o_g * jnp.tanh(c_n)
        return h_n, c_n

    zeros = jnp.zeros((B, H), jnp.float32)

    # TODO(synk): pack_padded_sequence semantics of topic_len not modelled; the full
    #             padded topic length is consumed in both directions.
    def body(t, carry):
        h_f, c_f, h_b, c_b = carry
        h_f, c_f = cell(xpf_ref[t], h_f, c_f, whf)
        h_b, c_b = cell(xpb_ref[t], h_b, c_b, whb)   # xpb is already time-reversed
        return (h_f, c_f, h_b, c_b)

    h_f, c_f, h_b, c_b = lax.fori_loop(0, Lt, body, (zeros, zeros, zeros, zeros),
                                       unroll=True)
    # Encoder_LSTM(is_bid=True, is_cat=False) -> directions summed
    h_ref[...] = h_f + h_b
    c_ref[...] = c_f + c_b


def encoder_forward(xpf, xpb_rev, whh_f, whh_b):
    _, B, H4 = xpf.shape
    H = H4 // 4
    # TODO(synk): on v7x the two directions could be split across the 2 TensorCores.
    return pl.pallas_call(
        _encoder_kernel,
        out_shape=(jax.ShapeDtypeStruct((B, H), jnp.float32),
                   jax.ShapeDtypeStruct((B, H), jnp.float32)),
        in_specs=[_VMEM] * 4,
        out_specs=(_VMEM, _VMEM),
        compiler_params=pltpu.CompilerParams(vmem_limit_bytes=_VMEM_LIMIT),
    )(xpf, xpb_rev, whh_f, whh_b)


# --------------------------------------------------------------------------
# Kernel 2: decoder recurrence (MHA over knowledge + LSTM cell), writes per-step
#           hidden / attention slabs; the vocab head is deferred to kernel 3.
# --------------------------------------------------------------------------
def _decoder_kernel(xpd_ref, k_ref, v_ref, maskb_ref, h0_ref, c0_ref,
                    wq_ref, bq_ref, wo_ref, bo_ref, wattn_ref, whh_ref,
                    h_slab_ref, attn_slab_ref, h_scr, c_scr):
    TLd, TB, H4 = xpd_ref.shape
    H = H4 // 4
    _, Lm, E = k_ref.shape
    nh = N_HEADS
    hd = E // nh
    inv_scale = 1.0 / (float(hd) ** 0.5)

    # Loop-invariant loads hoisted out of the time loop.
    k = k_ref[...]                          # [TB, Lm, E] f32
    v = v_ref[...]                          # [TB, Lm, E] f32
    maskb = maskb_ref[...]                  # [TB, Lm, 1] additive mask bias
    wq = wq_ref[...]                        # bf16 [H, E]
    bq = bq_ref[...]                        # f32  [1, E]
    wo = wo_ref[...]                        # bf16 [E, E]
    bo = bo_ref[...]
    wattn = wattn_ref[...]                  # bf16 [E, 4H]
    whh = whh_ref[...]                      # bf16 [H, 4H]

    @pl.when(pl.program_id(1) == 0)         # first time-chunk of this batch tile
    def _():
        h_scr[...] = h0_ref[...]
        c_scr[...] = c0_ref[...]

    @pl.loop(0, TLd)
    def _(t):
        h_prev = h_scr[...]                 # [TB, H] f32
        c_prev = c_scr[...]

        # ---- MultiHeadAttentionLayer over the knowledge memory (query = h_prev) --
        q = jnp.dot(h_prev.astype(wq.dtype), wq,
                    preferred_element_type=jnp.float32) + bq            # [TB, E]
        prod = q[:, None, :] * k                                        # [TB, Lm, E]
        # per-head energies / contexts via static head slices (nh = 2, head-major)
        energies = [prod[:, :, hi * hd:(hi + 1) * hd].sum(axis=-1, keepdims=True)
                    for hi in range(nh)]
        energy = jnp.concatenate(energies, axis=-1) * inv_scale + maskb  # [TB, Lm, nh]
        attn = jax.nn.softmax(energy, axis=1)   # softmax over memory positions
        # TODO(synk): attention dropout (p=0.5) omitted -- eval-mode identity.
        ctxs = [jnp.sum(attn[:, :, hi:hi + 1] * v[:, :, hi * hd:(hi + 1) * hd], axis=1)
                for hi in range(nh)]
        ctx = jnp.concatenate(ctxs, axis=-1)                             # [TB, E]
        attn_mem = jnp.dot(ctx.astype(wo.dtype), wo,
                           preferred_element_type=jnp.float32) + bo      # [TB, E]

        # ---- decoder LSTM cell (x@W_x + bias precomputed in xpd) ----
        gates = (xpd_ref[t]
                 + jnp.dot(attn_mem.astype(wattn.dtype), wattn,
                           preferred_element_type=jnp.float32)
                 + jnp.dot(h_prev.astype(whh.dtype), whh,
                           preferred_element_type=jnp.float32))          # [TB, 4H]
        i_g = jax.nn.sigmoid(gates[:, 0 * H:1 * H])
        f_g = jax.nn.sigmoid(gates[:, 1 * H:2 * H])
        g_g = jnp.tanh(gates[:, 2 * H:3 * H])
        o_g = jax.nn.sigmoid(gates[:, 3 * H:4 * H])
        c_new = f_g * c_prev + i_g * g_g
        h_new = o_g * jnp.tanh(c_new)

        h_scr[...] = h_new
        c_scr[...] = c_new
        h_slab_ref[t] = h_new
        attn_slab_ref[t] = attn_mem


def decoder_recurrent_forward(params, xpd, k_mem, v_mem, mask_bias, h0, c0):
    Le, B, H4 = xpd.shape
    H = H4 // 4
    _, Lm, E = k_mem.shape

    # Time chunk: biggest divisor of Le up to 64 (collapses to Le at toy sizes).
    TLd = max(d for d in range(1, min(Le, 64) + 1) if Le % d == 0)
    # Batch tile: split in two for v7x megacore only when the halves stay 8-aligned.
    TB = B // 2 if (B % 2 == 0 and (B // 2) % 8 == 0) else B
    nB, nT = B // TB, Le // TLd

    ap, dec = params['attn'], params['dec']

    def const_spec(a):
        nd = a.ndim
        return pl.BlockSpec(a.shape, lambda b, i, _nd=nd: (0,) * _nd)

    consts = (ap['wq'], ap['bq'], ap['wo'], ap['bo'], dec['w_attn'], dec['w_hh'])

    in_specs = [
        pl.BlockSpec((TLd, TB, 4 * H), lambda b, i: (i, b, 0)),   # precomputed x-proj
        pl.BlockSpec((TB, Lm, E), lambda b, i: (b, 0, 0)),        # K (pre-projected)
        pl.BlockSpec((TB, Lm, E), lambda b, i: (b, 0, 0)),        # V (pre-projected)
        pl.BlockSpec((TB, Lm, 1), lambda b, i: (b, 0, 0)),        # additive mask bias
        pl.BlockSpec((TB, H), lambda b, i: (b, 0)),               # h0
        pl.BlockSpec((TB, H), lambda b, i: (b, 0)),               # c0
    ] + [const_spec(a) for a in consts]

    out_specs = (pl.BlockSpec((TLd, TB, H), lambda b, i: (i, b, 0)),
                 pl.BlockSpec((TLd, TB, E), lambda b, i: (i, b, 0)))

    return pl.pallas_call(
        _decoder_kernel,
        out_shape=(jax.ShapeDtypeStruct((Le, B, H), jnp.float32),
                   jax.ShapeDtypeStruct((Le, B, E), jnp.float32)),
        grid=(nB, nT),
        in_specs=in_specs,
        out_specs=out_specs,
        scratch_shapes=[pltpu.VMEM((TB, H), jnp.float32),   # h carry
                        pltpu.VMEM((TB, H), jnp.float32)],  # c carry
        compiler_params=pltpu.CompilerParams(
            dimension_semantics=("parallel", "arbitrary"),
            vmem_limit_bytes=_VMEM_LIMIT),
    )(xpd, k_mem, v_mem, mask_bias, h0, c0, *consts)


# --------------------------------------------------------------------------
# Kernel 3: deferred, batched gated logits head.  Parallel grid over
#           (batch, vocab tiles); writes [B, Le, V] directly.
# --------------------------------------------------------------------------
def _head_kernel(h_ref, a_ref, whid_ref, bhid_ref, wch_ref, wce_ref, bcat_ref,
                 wgh_ref, wge_ref, bg_ref, out_ref):
    h2 = h_ref[...].astype(jnp.bfloat16)            # [Le, H]
    a2 = a_ref[...].astype(jnp.bfloat16)            # [Le, E]
    # nn.Dropout(0.5) -> identity in eval mode.
    logits_hidden = (jnp.dot(h2, whid_ref[...], preferred_element_type=jnp.float32)
                     + bhid_ref[...])
    logits_cat = (jnp.dot(h2, wch_ref[...], preferred_element_type=jnp.float32)
                  + jnp.dot(a2, wce_ref[...], preferred_element_type=jnp.float32)
                  + bcat_ref[...])
    gate = jax.nn.sigmoid(
        jnp.dot(h2, wgh_ref[...], preferred_element_type=jnp.float32)
        + jnp.dot(a2, wge_ref[...], preferred_element_type=jnp.float32)
        + bg_ref[...])
    # gate * logits_cat + (1 - gate) * logits_hidden
    out_ref[...] = logits_hidden + gate * (logits_cat - logits_hidden)


def head_forward(params, h_bm, a_bm):
    B, Le, H = h_bm.shape
    E = a_bm.shape[-1]
    V = params['fc_hidden']['b'].shape[-1]
    if V % 512 == 0:
        TV = 512
    elif V % 256 == 0:
        TV = 256
    elif V % 128 == 0:
        TV = 128
    else:
        TV = V
    nv = V // TV

    def w_spec(rows):
        return pl.BlockSpec((rows, TV), lambda b, j: (0, j))

    return pl.pallas_call(
        _head_kernel,
        out_shape=jax.ShapeDtypeStruct((B, Le, V), jnp.float32),
        grid=(B, nv),
        in_specs=[
            pl.BlockSpec((None, Le, H), lambda b, j: (b, 0, 0)),
            pl.BlockSpec((None, Le, E), lambda b, j: (b, 0, 0)),
            w_spec(H), w_spec(1),                    # fc_hidden
            w_spec(H), w_spec(E), w_spec(1),         # fc_cat (split over [h, attn])
            w_spec(H), w_spec(E), w_spec(1),         # gate   (split over [h, attn])
        ],
        out_specs=pl.BlockSpec((None, Le, TV), lambda b, j: (b, 0, j)),
        compiler_params=pltpu.CompilerParams(
            dimension_semantics=("parallel", "parallel"),
            vmem_limit_bytes=_VMEM_LIMIT),
    )(h_bm, a_bm,
      params['fc_hidden']['w'], params['fc_hidden']['b'],
      params['fc_cat']['w_h'], params['fc_cat']['w_e'], params['fc_cat']['b'],
      params['gate']['w_h'], params['gate']['w_e'], params['gate']['b'])


# --------------------------------------------------------------------------
# Parameter initialization (deterministic, PyTorch-style uniform bounds).
# Matmul weights stored bf16; biases / embedding / carries stay f32.
# --------------------------------------------------------------------------
def _uniform(key, shape, bound):
    return jax.random.uniform(key, shape, jnp.float32, -bound, bound)


def _linear(key, fan_in, fan_out):
    k1, k2 = jax.random.split(key)
    bound = 1.0 / (float(fan_in) ** 0.5)
    return _uniform(k1, (fan_in, fan_out), bound), _uniform(k2, (1, fan_out), bound)


def init_params(key, vocab_size, embed_size, hidden_size):
    E, H, V = embed_size, hidden_size, vocab_size
    keys = jax.random.split(key, 11)
    bf = lambda x: x.astype(jnp.bfloat16)

    def lstm(k, in_dim):
        k1, k2, k3, k4 = jax.random.split(k, 4)
        bd = 1.0 / (float(H) ** 0.5)
        w_ih = _uniform(k1, (in_dim, 4 * H), bd)
        w_hh = _uniform(k2, (H, 4 * H), bd)
        # NOTE: PyTorch LSTM has b_ih + b_hh; stored as their sum (load real ckpts as sum).
        b = _uniform(k3, (1, 4 * H), bd) + _uniform(k4, (1, 4 * H), bd)
        return w_ih, w_hh, b

    p = {}
    p['embedding'] = jax.random.normal(keys[0], (V, E), jnp.float32) * 0.1

    w_ih, w_hh, b = lstm(keys[1], E)
    p['enc_fwd'] = dict(w_ih=bf(w_ih), w_hh=bf(w_hh), b=b)
    w_ih, w_hh, b = lstm(keys[2], E)
    p['enc_bwd'] = dict(w_ih=bf(w_ih), w_hh=bf(w_hh), b=b)

    # decoder LSTM input = [embedding, attn_mem]  ->  split W_ih into x / attn halves
    w_ih, w_hh, b = lstm(keys[3], 2 * E)
    p['dec'] = dict(w_x=bf(w_ih[:E]), w_attn=bf(w_ih[E:]), w_hh=bf(w_hh), b=b)

    # MultiHeadAttentionLayer(dec_hid_size, embed_size, 2, 0.5)
    wq, bq = _linear(keys[4], H, E)
    wk, bk = _linear(keys[5], E, E)
    wv, bv = _linear(keys[6], E, E)
    wo, bo = _linear(keys[7], E, E)
    p['attn'] = dict(wq=bf(wq), bq=bq, wk=bf(wk), bk=bk, wv=bf(wv), bv=bv,
                     wo=bf(wo), bo=bo)

    # output heads; the cat-weights are pre-split so no in-kernel concat is needed
    w_hid, b_hid = _linear(keys[8], H, V)
    w_cat, b_cat = _linear(keys[9], H + E, V)
    w_g, b_g = _linear(keys[10], H + E, V)
    p['fc_hidden'] = dict(w=bf(w_hid), b=b_hid)
    p['fc_cat'] = dict(w_h=bf(w_cat[:H]), w_e=bf(w_cat[H:]), b=b_cat)
    p['gate'] = dict(w_h=bf(w_g[:H]), w_e=bf(w_g[H:]), b=b_g)
    return p


# --------------------------------------------------------------------------
# Full forward pass (teacher_force=True, eval mode)
# --------------------------------------------------------------------------
def knowledge_seq2seq_forward(params, topic, topic_len, essay_input, essay_len,
                              mems):
    # TODO(synk): topic_len / essay_len (pack_padded_sequence, padded-step masking)
    #             and the teacher_force=False argmax-feedback branch are not modelled.
    del topic_len, essay_len
    B, Lt = topic.shape
    _, Le = essay_input.shape
    _, Lm = mems.shape
    emb = params['embedding']
    E = emb.shape[1]
    H = params['enc_fwd']['w_hh'].shape[0]
    bf16 = jnp.bfloat16

    topic_emb = emb[topic]                         # [B, Lt, E]
    essay_emb = emb[essay_input]                   # [B, Le, E]
    mem_emb = emb[mems]                            # [B, Lm, E]

    def proj(x2d, w, b):                           # batched bf16 matmul, f32 accumulate
        return jnp.dot(x2d.astype(bf16), w, preferred_element_type=jnp.float32) + b

    # ---- hoisted encoder input projections (both directions), biases folded in ----
    t2 = topic_emb.reshape(B * Lt, E)
    xpf = proj(t2, params['enc_fwd']['w_ih'], params['enc_fwd']['b']) \
        .reshape(B, Lt, 4 * H).transpose(1, 0, 2)                      # [Lt, B, 4H]
    xpb = proj(t2, params['enc_bwd']['w_ih'], params['enc_bwd']['b']) \
        .reshape(B, Lt, 4 * H).transpose(1, 0, 2)[::-1]                # reversed time

    h0, c0 = encoder_forward(xpf, xpb, params['enc_fwd']['w_hh'],
                             params['enc_bwd']['w_hh'])

    # ---- hoisted decoder input projection (all Le steps at once) ----
    e2 = essay_emb.reshape(B * Le, E)
    xpd = proj(e2, params['dec']['w_x'], params['dec']['b']) \
        .reshape(B, Le, 4 * H).transpose(1, 0, 2)                      # [Le, B, 4H]

    # ---- hoisted, loop-invariant K/V projections of the knowledge memory ----
    ap = params['attn']
    m2 = mem_emb.reshape(B * Lm, E)
    k_mem = proj(m2, ap['wk'], ap['bk']).reshape(B, Lm, E)
    v_mem = proj(m2, ap['wv'], ap['bv']).reshape(B, Lm, E)
    mask_bias = jnp.where(mems == MASK_IDX, -1e10, 0.0).astype(jnp.float32)[:, :, None]

    # ---- sequential recurrence kernel (no vocab-wide weights inside the loop) ----
    h_slab, attn_slab = decoder_recurrent_forward(params, xpd, k_mem, v_mem,
                                                  mask_bias, h0, c0)   # [Le,B,H]/[Le,B,E]

    # ---- deferred, batched gated logits head; writes [B, Le, V] directly ----
    h_bm = jnp.transpose(h_slab, (1, 0, 2))        # small [Le,B,H] -> [B,Le,H] slabs
    a_bm = jnp.transpose(attn_slab, (1, 0, 2))
    return head_forward(params, h_bm, a_bm)        # [B, Le, V]


if __name__ == "__main__":
    key = jax.random.PRNGKey(0)
    VOCAB, EMBED, HIDDEN = 32, 16, 32
    B, Lt, Lm, Le = 2, 5, 6, 8

    pkey, dkey = jax.random.split(key)
    params = init_params(pkey, VOCAB, EMBED, HIDDEN)

    k1, k2, k3 = jax.random.split(dkey, 3)
    topic = jax.random.randint(k1, (B, Lt), 1, VOCAB)
    essay_input = jax.random.randint(k2, (B, Le), 1, VOCAB)
    mems = jax.random.randint(k3, (B, Lm), 1, VOCAB)
    mems = mems.at[0, -1].set(MASK_IDX)            # exercise the memory mask
    topic_len = jnp.full((B,), Lt, jnp.int32)
    essay_len = jnp.full((B,), Le, jnp.int32)

    fwd = jax.jit(knowledge_seq2seq_forward)
    out = fwd(params, topic, topic_len, essay_input, essay_len, mems)
    out = jax.block_until_ready(out)

    assert out.shape == (B, Le, VOCAB), out.shape
    assert bool(jnp.all(jnp.isfinite(out)))
    print("KERNEL_OK")
</pallas_src>

<mosaic_0001>
module attributes {stable_mosaic.version = 11 : i64} {
  func.func @_encoder_kernel(%arg0: memref<5x2x128xf32, #tpu.memory_space<vmem>>, %arg1: memref<5x2x128xf32, #tpu.memory_space<vmem>>, %arg2: memref<32x128xbf16, #tpu.memory_space<vmem>>, %arg3: memref<32x128xbf16, #tpu.memory_space<vmem>>, %arg4: memref<2x32xf32, #tpu.memory_space<vmem>>, %arg5: memref<2x32xf32, #tpu.memory_space<vmem>>) attributes {dimension_semantics = [], scalar_prefetch = 0 : i64, scratch_operands = 0 : i64, tpu.core_type = #tpu.core_type<tc>} {
    %c0 = arith.constant 0 : index
    %c0_0 = arith.constant 0 : index
    %0 = vector.load %arg2[%c0, %c0_0] : memref<32x128xbf16, #tpu.memory_space<vmem>>, vector<32x128xbf16>
    %c0_1 = arith.constant 0 : index
    %c0_2 = arith.constant 0 : index
    %1 = vector.load %arg3[%c0_1, %c0_2] : memref<32x128xbf16, #tpu.memory_space<vmem>>, vector<32x128xbf16>
    %cst = arith.constant 0.000000e+00 : f32
    %2 = vector.broadcast %cst : f32 to vector<2x32xf32>
    %c0_i32 = arith.constant 0 : i32
    %3 = arith.index_cast %c0_i32 : i32 to index
    %c0_3 = arith.constant 0 : index
    %c0_4 = arith.constant 0 : index
    %4 = vector.load %arg0[%3, %c0_3, %c0_4] : memref<5x2x128xf32, #tpu.memory_space<vmem>>, vector<1x2x128xf32>
    %5 = vector.shape_cast %4 : vector<1x2x128xf32> to vector<2x128xf32>
    %6 = arith.truncf %2 : vector<2x32xf32> to vector<2x32xbf16>
    %cst_5 = arith.constant dense<0.000000e+00> : vector<2x128xf32>
    %7 = tpu.matmul %6, %0, %cst_5 {dimension_numbers = #tpu.dot_dimension_numbers<[1], [0], [0], [1], [0, 0, 1, 1], [], []>} : vector<2x32xbf16>, vector<32x128xbf16>, vector<2x128xf32> -> vector<2x128xf32>
    %8 = arith.addf %5, %7 : vector<2x128xf32>
    %9 = vector.extract_strided_slice %8 {offsets = [0, 0], sizes = [2, 32], strides = [1, 1]} : vector<2x128xf32> to vector<2x32xf32>
    %10 = arith.negf %9 : vector<2x32xf32>
    %11 = math.exp %10 : vector<2x32xf32>
    %cst_6 = arith.constant 1.000000e+00 : f32
    %12 = vector.broadcast %cst_6 : f32 to vector<2x32xf32>
    %13 = arith.addf %12, %11 : vector<2x32xf32>
    %14 = arith.divf %12, %13 : vector<2x32xf32>
    %15 = vector.extract_strided_slice %8 {offsets = [0, 32], sizes = [2, 32], strides = [1, 1]} : vector<2x128xf32> to vector<2x32xf32>
    %16 = arith.negf %15 : vector<2x32xf32>
    %17 = math.exp %16 : vector<2x32xf32>
    %cst_7 = arith.constant 1.000000e+00 : f32
    %18 = vector.broadcast %cst_7 : f32 to vector<2x32xf32>
    %19 = arith.addf %18, %17 : vector<2x32xf32>
    %20 = arith.divf %18, %19 : vector<2x32xf32>
    %21 = vector.extract_strided_slice %8 {offsets = [0, 64], sizes = [2, 32], strides = [1, 1]} : vector<2x128xf32> to vector<2x32xf32>
    %22 = math.tanh %21 : vector<2x32xf32>
    %23 = vector.extract_strided_slice %8 {offsets = [0, 96], sizes = [2, 32], strides = [1, 1]} : vector<2x128xf32> to vector<2x32xf32>
    %24 = arith.negf %23 : vector<2x32xf32>
    %25 = math.exp %24 : vector<2x32xf32>
    %cst_8 = arith.constant 1.000000e+00 : f32
    %26 = vector.broadcast %cst_8 : f32 to vector<2x32xf32>
    %27 = arith.addf %26, %25 : vector<2x32xf32>
    %28 = arith.divf %26, %27 : vector<2x32xf32>
    %29 = arith.mulf %20, %2 : vector<2x32xf32>
    %30 = arith.mulf %14, %22 : vector<2x32xf32>
    %31 = arith.addf %29, %30 : vector<2x32xf32>
    %32 = math.tanh %31 : vector<2x32xf32>
    %33 = arith.mulf %28, %32 : vector<2x32xf32>
    %34 = arith.index_cast %c0_i32 : i32 to index
    %c0_9 = arith.constant 0 : index
    %c0_10 = arith.constant 0 : index
    %35 = vector.load %arg1[%34, %c0_9, %c0_10] : memref<5x2x128xf32, #tpu.memory_space<vmem>>, vector<1x2x128xf32>
    %36 = vector.shape_cast %35 : vector<1x2x128xf32> to vector<2x128xf32>
    %37 = arith.truncf %2 : vector<2x32xf32> to vector<2x32xbf16>
    %cst_11 = arith.constant dense<0.000000e+00> : vector<2x128xf32>
    %38 = tpu.matmul %37, %1, %cst_11 {dimension_numbers = #tpu.dot_dimension_numbers<[1], [0], [0], [1], [0, 0, 1, 1], [], []>} : vector<2x32xbf16>, vector<32x128xbf16>, vector<2x128xf32> -> vector<2x128xf32>
    %39 = arith.addf %36, %38 : vector<2x128xf32>
    %40 = vector.extract_strided_slice %39 {offsets = [0, 0], sizes = [2, 32], strides = [1, 1]} : vector<2x128xf32> to vector<2x32xf32>
    %41 = arith.negf %40 : vector<2x32xf32>
    %42 = math.exp %41 : vector<2x32xf32>
    %cst_12 = arith.constant 1.000000e+00 : f32
    %43 = vector.broadcast %cst_12 : f32 to vector<2x32xf32>
    %44 = arith.addf %43, %42 : vector<2x32xf32>
    %45 = arith.divf %43, %44 : vector<2x32xf32>
    %46 = vector.extract_strided_slice %39 {offsets = [0, 32], sizes = [2, 32], strides = [1, 1]} : vector<2x128xf32> to vector<2x32xf32>
    %47 = arith.negf %46 : vector<2x32xf32>
    %48 = math.exp %47 : vector<2x32xf32>
    %cst_13 = arith.constant 1.000000e+00 : f32
    %49 = vector.broadcast %cst_13 : f32 to vector<2x32xf32>
    %50 = arith.addf %49, %48 : vector<2x32xf32>
    %51 = arith.divf %49, %50 : vector<2x32xf32>
    %52 = vector.extract_strided_slice %39 {offsets = [0, 64], sizes = [2, 32], strides = [1, 1]} : vector<2x128xf32> to vector<2x32xf32>
    %53 = math.tanh %52 : vector<2x32xf32>
    %54 = vector.extract_strided_slice %39 {offsets = [0, 96], sizes = [2, 32], strides = [1, 1]} : vector<2x128xf32> to vector<2x32xf32>
    %55 = arith.negf %54 : vector<2x32xf32>
    %56 = math.exp %55 : vector<2x32xf32>
    %cst_14 = arith.constant 1.000000e+00 : f32
    %57 = vector.broadcast %cst_14 : f32 to vector<2x32xf32>
    %58 = arith.addf %57, %56 : vector<2x32xf32>
    %59 = arith.divf %57, %58 : vector<2x32xf32>
    %60 = arith.mulf %51, %2 : vector<2x32xf32>
    %61 = arith.mulf %45, %53 : vector<2x32xf32>
    %62 = arith.addf %60, %61 : vector<2x32xf32>
    %63 = math.tanh %62 : vector<2x32xf32>
    %64 = arith.mulf %59, %63 : vector<2x32xf32>
    %c1_i32 = arith.constant 1 : i32
    %65 = arith.index_cast %c1_i32 : i32 to index
    %c0_15 = arith.constant 0 : index
    %c0_16 = arith.constant 0 : index
    %66 = vector.load %arg0[%65, %c0_15, %c0_16] : memref<5x2x128xf32, #tpu.memory_space<vmem>>, vector<1x2x128xf32>
    %67 = vector.shape_cast %66 : vector<1x2x128xf32> to vector<2x128xf32>
    %68 = arith.truncf %33 : vector<2x32xf32> to vector<2x32xbf16>
    %cst_17 = arith.constant dense<0.000000e+00> : vector<2x128xf32>
    %69 = tpu.matmul %68, %0, %cst_17 {dimension_numbers = #tpu.dot_dimension_numbers<[1], [0], [0], [1], [0, 0, 1, 1], [], []>} : vector<2x32xbf16>, vector<32x128xbf16>, vector<2x128xf32> -> vector<2x128xf32>
    %70 = arith.addf %67, %69 : vector<2x128xf32>
    %71 = vector.extract_strided_slice %70 {offsets = [0, 0], sizes = [2, 32], strides = [1, 1]} : vector<2x128xf32> to vector<2x32xf32>
    %72 = arith.negf %71 : vector<2x32xf32>
    %73 = math.exp %72 : vector<2x32xf32>
    %cst_18 = arith.constant 1.000000e+00 : f32
    %74 = vector.broadcast %cst_18 : f32 to vector<2x32xf32>
    %75 = arith.addf %74, %73 : vector<2x32xf32>
    %76 = arith.divf %74, %75 : vector<2x32xf32>
    %77 = vector.extract_strided_slice %70 {offsets = [0, 32], sizes = [2, 32], strides = [1, 1]} : vector<2x128xf32> to vector<2x32xf32>
    %78 = arith.negf %77 : vector<2x32xf32>
    %79 = math.exp %78 : vector<2x32xf32>
    %cst_19 = arith.constant 1.000000e+00 : f32
    %80 = vector.broadcast %cst_19 : f32 to vector<2x32xf32>
    %81 = arith.addf %80, %79 : vector<2x32xf32>
    %82 = arith.divf %80, %81 : vector<2x32xf32>
    %83 = vector.extract_strided_slice %70 {offsets = [0, 64], sizes = [2, 32], strides = [1, 1]} : vector<2x128xf32> to vector<2x32xf32>
    %84 = math.tanh %83 : vector<2x32xf32>
    %85 = vector.extract_strided_slice %70 {offsets = [0, 96], sizes = [2, 32], strides = [1, 1]} : vector<2x128xf32> to vector<2x32xf32>
    %86 = arith.negf %85 : vector<2x32xf32>
    %87 = math.exp %86 : vector<2x32xf32>
    %cst_20 = arith.constant 1.000000e+00 : f32
    %88 = vector.broadcast %cst_20 : f32 to vector<2x32xf32>
    %89 = arith.addf %88, %87 : vector<2x32xf32>
    %90 = arith.divf %88, %89 : vector<2x32xf32>
    %91 = arith.mulf %82, %31 : vector<2x32xf32>
    %92 = arith.mulf %76, %84 : vector<2x32xf32>
    %93 = arith.addf %91, %92 : vector<2x32xf32>
    %94 = math.tanh %93 : vector<2x32xf32>
    %95 = arith.mulf %90, %94 : vector<2x32xf32>
    %96 = arith.index_cast %c1_i32 : i32 to index
    %c0_21 = arith.constant 0 : index
    %c0_22 = arith.constant 0 : index
    %97 = vector.load %arg1[%96, %c0_21, %c0_22] : memref<5x2x128xf32, #tpu.memory_space<vmem>>, vector<1x2x128xf32>
    %98 = vector.shape_cast %97 : vector<1x2x128xf32> to vector<2x128xf32>
    %99 = arith.truncf %64 : vector<2x32xf32> to vector<2x32xbf16>
    %cst_23 = arith.constant dense<0.000000e+00> : vector<2x128xf32>
    %100 = tpu.matmul %99, %1, %cst_23 {dimension_numbers = #tpu.dot_dimension_numbers<[1], [0], [0], [1], [0, 0, 1, 1], [], []>} : vector<2x32xbf16>, vector<32x128xbf16>, vector<2x128xf32> -> vector<2x128xf32>
    %101 = arith.addf %98, %100 : vector<2x128xf32>
    %102 = vector.extract_strided_slice %101 {offsets = [0, 0], sizes = [2, 32], strides = [1, 1]} : vector<2x128xf32> to vector<2x32xf32>
    %103 = arith.negf %102 : vector<2x32xf32>
    %104 = math.exp %103 : vector<2x32xf32>
    %cst_24 = arith.constant 1.000000e+00 : f32
    %105 = vector.broadcast %cst_24 : f32 to vector<2x32xf32>
    %106 = arith.addf %105, %104 : vector<2x32xf32>
    %107 = arith.divf %105, %106 : vector<2x32xf32>
    %108 = vector.extract_strided_slice %101 {offsets = [0, 32], sizes = [2, 32], strides = [1, 1]} : vector<2x128xf32> to vector<2x32xf32>
    %109 = arith.negf %108 : vector<2x32xf32>
    %110 = math.exp %109 : vector<2x32xf32>
    %cst_25 = arith.constant 1.000000e+00 : f32
    %111 = vector.broadcast %cst_25 : f32 to vector<2x32xf32>
    %112 = arith.addf %111, %110 : vector<2x32xf32>
    %113 = arith.divf %111, %112 : vector<2x32xf32>
    %114 = vector.extract_strided_slice %101 {offsets = [0, 64], sizes = [2, 32], strides = [1, 1]} : vector<2x128xf32> to vector<2x32xf32>
    %115 = math.tanh %114 : vector<2x32xf32>
    %116 = vector.extract_strided_slice %101 {offsets = [0, 96], sizes = [2, 32], strides = [1, 1]} : vector<2x128xf32> to vector<2x32xf32>
    %117 = arith.negf %116 : vector<2x32xf32>
    %118 = math.exp %117 : vector<2x32xf32>
    %cst_26 = arith.constant 1.000000e+00 : f32
    %119 = vector.broadcast %cst_26 : f32 to vector<2x32xf32>
    %120 = arith.addf %119, %118 : vector<2x32xf32>
    %121 = arith.divf %119, %120 : vector<2x32xf32>
    %122 = arith.mulf %113, %62 : vector<2x32xf32>
    %123 = arith.mulf %107, %115 : vector<2x32xf32>
    %124 = arith.addf %122, %123 : vector<2x32xf32>
    %125 = math.tanh %124 : vector<2x32xf32>
    %126 = arith.mulf %121, %125 : vector<2x32xf32>
    %c2_i32 = arith.constant 2 : i32
    %127 = arith.index_cast %c2_i32 : i32 to index
    %c0_27 = arith.constant 0 : index
    %c0_28 = arith.constant 0 : index
    %128 = vector.load %arg0[%127, %c0_27, %c0_28] : memref<5x2x128xf32, #tpu.memory_space<vmem>>, vector<1x2x128xf32>
    %129 = vector.shape_cast %128 : vector<1x2x128xf32> to vector<2x128xf32>
    %130 = arith.truncf %95 : vector<2x32xf32> to vector<2x32xbf16>
    %cst_29 = arith.constant dense<0.000000e+00> : vector<2x128xf32>
    %131 = tpu.matmul %130, %0, %cst_29 {dimension_numbers = #tpu.dot_dimension_numbers<[1], [0], [0], [1], [0, 0, 1, 1], [], []>} : vector<2x32xbf16>, vector<32x128xbf16>, vector<2x128xf32> -> vector<2x128xf32>
    %132 = arith.addf %129, %131 : vector<2x128xf32>
    %133 = vector.extract_strided_slice %132 {offsets = [0, 0], sizes = [2, 32], strides = [1, 1]} : vector<2x128xf32> to vector<2x32xf32>
    %134 = arith.negf %133 : vector<2x32xf32>
    %135 = math.exp %134 : vector<2x32xf32>
    %cst_30 = arith.constant 1.000000e+00 : f32
    %136 = vector.broadcast %cst_30 : f32 to vector<2x32xf32>
    %137 = arith.addf %136, %135 : vector<2x32xf32>
    %138 = arith.divf %136, %137 : vector<2x32xf32>
    %139 = vector.extract_strided_slice %132 {offsets = [0, 32], sizes = [2, 32], strides = [1, 1]} : vector<2x128xf32> to vector<2x32xf32>
    %140 = arith.negf %139 : vector<2x32xf32>
    %141 = math.exp %140 : vector<2x32xf32>
    %cst_31 = arith.constant 1.000000e+00 : f32
    %142 = vector.broadcast %cst_31 : f32 to vector<2x32xf32>
    %143 = arith.addf %142, %141 : vector<2x32xf32>
    %144 = arith.divf %142, %143 : vector<2x32xf32>
    %145 = vector.extract_strided_slice %132 {offsets = [0, 64], sizes = [2, 32], strides = [1, 1]} : vector<2x128xf32> to vector<2x32xf32>
    %146 = math.tanh %145 : vector<2x32xf32>
    %147 = vector.extract_strided_slice %132 {offsets = [0, 96], sizes = [2, 32], strides = [1, 1]} : vector<2x128xf32> to vector<2x32xf32>
    %148 = arith.negf %147 : vector<2x32xf32>
    %149 = math.exp %148 : vector<2x32xf32>
    %cst_32 = arith.constant 1.000000e+00 : f32
    %150 = vector.broadcast %cst_32 : f32 to vector<2x32xf32>
    %151 = arith.addf %150, %149 : vector<2x32xf32>
    %152 = arith.divf %150, %151 : vector<2x32xf32>
    %153 = arith.mulf %144, %93 : vector<2x32xf32>
    %154 = arith.mulf %138, %146 : vector<2x32xf32>
    %155 = arith.addf %153, %154 : vector<2x32xf32>
    %156 = math.tanh %155 : vector<2x32xf32>
    %157 = arith.mulf %152, %156 : vector<2x32xf32>
    %158 = arith.index_cast %c2_i32 : i32 to index
    %c0_33 = arith.constant 0 : index
    %c0_34 = arith.constant 0 : index
    %159 = vector.load %arg1[%158, %c0_33, %c0_34] : memref<5x2x128xf32, #tpu.memory_space<vmem>>, vector<1x2x128xf32>
    %160 = vector.shape_cast %159 : vector<1x2x128xf32> to vector<2x128xf32>
    %161 = arith.truncf %126 : vector<2x32xf32> to vector<2x32xbf16>
    %cst_35 = arith.constant dense<0.000000e+00> : vector<2x128xf32>
    %162 = tpu.matmul %161, %1, %cst_35 {dimension_numbers = #tpu.dot_dimension_numbers<[1], [0], [0], [1], [0, 0, 1, 1], [], []>} : vector<2x32xbf16>, vector<32x128xbf16>, vector<2x128xf32> -> vector<2x128xf32>
    %163 = arith.addf %160, %162 : vector<2x128xf32>
    %164 = vector.extract_strided_slice %163 {offsets = [0, 0], sizes = [2, 32], strides = [1, 1]} : vector<2x128xf32> to vector<2x32xf32>
    %165 = arith.negf %164 : vector<2x32xf32>
    %166 = math.exp %165 : vector<2x32xf32>
    %cst_36 = arith.constant 1.000000e+00 : f32
    %167 = vector.broadcast %cst_36 : f32 to vector<2x32xf32>
    %168 = arith.addf %167, %166 : vector<2x32xf32>
    %169 = arith.divf %167, %168 : vector<2x32xf32>
    %170 = vector.extract_strided_slice %163 {offsets = [0, 32], sizes = [2, 32], strides = [1, 1]} : vector<2x128xf32> to vector<2x32xf32>
    %171 = arith.negf %170 : vector<2x32xf32>
    %172 = math.exp %171 : vector<2x32xf32>
    %cst_37 = arith.constant 1.000000e+00 : f32
    %173 = vector.broadcast %cst_37 : f32 to vector<2x32xf32>
    %174 = arith.addf %173, %172 : vector<2x32xf32>
    %175 = arith.divf %173, %174 : vector<2x32xf32>
    %176 = vector.extract_strided_slice %163 {offsets = [0, 64], sizes = [2, 32], strides = [1, 1]} : vector<2x128xf32> to vector<2x32xf32>
    %177 = math.tanh %176 : vector<2x32xf32>
    %178 = vector.extract_strided_slice %163 {offsets = [0, 96], sizes = [2, 32], strides = [1, 1]} : vector<2x128xf32> to vector<2x32xf32>
    %179 = arith.negf %178 : vector<2x32xf32>
    %180 = math.exp %179 : vector<2x32xf32>
    %cst_38 = arith.constant 1.000000e+00 : f32
    %181 = vector.broadcast %cst_38 : f32 to vector<2x32xf32>
    %182 = arith.addf %181, %180 : vector<2x32xf32>
    %183 = arith.divf %181, %182 : vector<2x32xf32>
    %184 = arith.mulf %175, %124 : vector<2x32xf32>
    %185 = arith.mulf %169, %177 : vector<2x32xf32>
    %186 = arith.addf %184, %185 : vector<2x32xf32>
    %187 = math.tanh %186 : vector<2x32xf32>
    %188 = arith.mulf %183, %187 : vector<2x32xf32>
    %c3_i32 = arith.constant 3 : i32
    %189 = arith.index_cast %c3_i32 : i32 to index
    %c0_39 = arith.constant 0 : index
    %c0_40 = arith.constant 0 : index
    %190 = vector.load %arg0[%189, %c0_39, %c0_40] : memref<5x2x128xf32, #tpu.memory_space<vmem>>, vector<1x2x128xf32>
    %191 = vector.shape_cast %190 : vector<1x2x128xf32> to vector<2x128xf32>
    %192 = arith.truncf %157 : vector<2x32xf32> to vector<2x32xbf16>
    %cst_41 = arith.constant dense<0.000000e+00> : vector<2x128xf32>
    %193 = tpu.matmul %192, %0, %cst_41 {dimension_numbers = #tpu.dot_dimension_numbers<[1], [0], [0], [1], [0, 0, 1, 1], [], []>} : vector<2x32xbf16>, vector<32x128xbf16>, vector<2x128xf32> -> vector<2x128xf32>
    %194 = arith.addf %191, %193 : vector<2x128xf32>
    %195 = vector.extract_strided_slice %194 {offsets = [0, 0], sizes = [2, 32], strides = [1, 1]} : vector<2x128xf32> to vector<2x32xf32>
    %196 = arith.negf %195 : vector<2x32xf32>
    %197 = math.exp %196 : vector<2x32xf32>
    %cst_42 = arith.constant 1.000000e+00 : f32
    %198 = vector.broadcast %cst_42 : f32 to vector<2x32xf32>
    %199 = arith.addf %198, %197 : vector<2x32xf32>
    %200 = arith.divf %198, %199 : vector<2x32xf32>
    %201 = vector.extract_strided_slice %194 {offsets = [0, 32], sizes = [2, 32], strides = [1, 1]} : vector<2x128xf32> to vector<2x32xf32>
    %202 = arith.negf %201 : vector<2x32xf32>
    %203 = math.exp %202 : vector<2x32xf32>
    %cst_43 = arith.constant 1.000000e+00 : f32
    %204 = vector.broadcast %cst_43 : f32 to vector<2x32xf32>
    %205 = arith.addf %204, %203 : vector<2x32xf32>
    %206 = arith.divf %204, %205 : vector<2x32xf32>
    %207 = vector.extract_strided_slice %194 {offsets = [0, 64], sizes = [2, 32], strides = [1, 1]} : vector<2x128xf32> to vector<2x32xf32>
    %208 = math.tanh %207 : vector<2x32xf32>
    %209 = vector.extract_strided_slice %194 {offsets = [0, 96], sizes = [2, 32], strides = [1, 1]} : vector<2x128xf32> to vector<2x32xf32>
    %210 = arith.negf %209 : vector<2x32xf32>
    %211 = math.exp %210 : vector<2x32xf32>
    %cst_44 = arith.constant 1.000000e+00 : f32
    %212 = vector.broadcast %cst_44 : f32 to vector<2x32xf32>
    %213 = arith.addf %212, %211 : vector<2x32xf32>
    %214 = arith.divf %212, %213 : vector<2x32xf32>
    %215 = arith.mulf %206, %155 : vector<2x32xf32>
    %216 = arith.mulf %200, %208 : vector<2x32xf32>
    %217 = arith.addf %215, %216 : vector<2x32xf32>
    %218 = math.tanh %217 : vector<2x32xf32>
    %219 = arith.mulf %214, %218 : vector<2x32xf32>
    %220 = arith.index_cast %c3_i32 : i32 to index
    %c0_45 = arith.constant 0 : index
    %c0_46 = arith.constant 0 : index
    %221 = vector.load %arg1[%220, %c0_45, %c0_46] : memref<5x2x128xf32, #tpu.memory_space<vmem>>, vector<1x2x128xf32>
    %222 = vector.shape_cast %221 : vector<1x2x128xf32> to vector<2x128xf32>
    %223 = arith.truncf %188 : vector<2x32xf32> to vector<2x32xbf16>
    %cst_47 = arith.constant dense<0.000000e+00> : vector<2x128xf32>
    %224 = tpu.matmul %223, %1, %cst_47 {dimension_numbers = #tpu.dot_dimension_numbers<[1], [0], [0], [1], [0, 0, 1, 1], [], []>} : vector<2x32xbf16>, vector<32x128xbf16>, vector<2x128xf32> -> vector<2x128xf32>
    %225 = arith.addf %222, %224 : vector<2x128xf32>
    %226 = vector.extract_strided_slice %225 {offsets = [0, 0], sizes = [2, 32], strides = [1, 1]} : vector<2x128xf32> to vector<2x32xf32>
    %227 = arith.negf %226 : vector<2x32xf32>
    %228 = math.exp %227 : vector<2x32xf32>
    %cst_48 = arith.constant 1.000000e+00 : f32
    %229 = vector.broadcast %cst_48 : f32 to vector<2x32xf32>
    %230 = arith.addf %229, %228 : vector<2x32xf32>
    %231 = arith.divf %229, %230 : vector<2x32xf32>
    %232 = vector.extract_strided_slice %225 {offsets = [0, 32], sizes = [2, 32], strides = [1, 1]} : vector<2x128xf32> to vector<2x32xf32>
    %233 = arith.negf %232 : vector<2x32xf32>
    %234 = math.exp %233 : vector<2x32xf32>
    %cst_49 = arith.constant 1.000000e+00 : f32
    %235 = vector.broadcast %cst_49 : f32 to vector<2x32xf32>
    %236 = arith.addf %235, %234 : vector<2x32xf32>
    %237 = arith.divf %235, %236 : vector<2x32xf32>
    %238 = vector.extract_strided_slice %225 {offsets = [0, 64], sizes = [2, 32], strides = [1, 1]} : vector<2x128xf32> to vector<2x32xf32>
    %239 = math.tanh %238 : vector<2x32xf32>
    %240 = vector.extract_strided_slice %225 {offsets = [0, 96], sizes = [2, 32], strides = [1, 1]} : vector<2x128xf32> to vector<2x32xf32>
    %241 = arith.negf %240 : vector<2x32xf32>
    %242 = math.exp %241 : vector<2x32xf32>
    %cst_50 = arith.constant 1.000000e+00 : f32
    %243 = vector.broadcast %cst_50 : f32 to vector<2x32xf32>
    %244 = arith.addf %243, %242 : vector<2x32xf32>
    %245 = arith.divf %243, %244 : vector<2x32xf32>
    %246 = arith.mulf %237, %186 : vector<2x32xf32>
    %247 = arith.mulf %231, %239 : vector<2x32xf32>
    %248 = arith.addf %246, %247 : vector<2x32xf32>
    %249 = math.tanh %248 : vector<2x32xf32>
    %250 = arith.mulf %245, %249 : vector<2x32xf32>
    %c4_i32 = arith.constant 4 : i32
    %251 = arith.index_cast %c4_i32 : i32 to index
    %c0_51 = arith.constant 0 : index
    %c0_52 = arith.constant 0 : index
    %252 = vector.load %arg0[%251, %c0_51, %c0_52] : memref<5x2x128xf32, #tpu.memory_space<vmem>>, vector<1x2x128xf32>
    %253 = vector.shape_cast %252 : vector<1x2x128xf32> to vector<2x128xf32>
    %254 = arith.truncf %219 : vector<2x32xf32> to vector<2x32xbf16>
    %cst_53 = arith.constant dense<0.000000e+00> : vector<2x128xf32>
    %255 = tpu.matmul %254, %0, %cst_53 {dimension_numbers = #tpu.dot_dimension_numbers<[1], [0], [0], [1], [0, 0, 1, 1], [], []>} : vector<2x32xbf16>, vector<32x128xbf16>, vector<2x128xf32> -> vector<2x128xf32>
    %256 = arith.addf %253, %255 : vector<2x128xf32>
    %257 = vector.extract_strided_slice %256 {offsets = [0, 0], sizes = [2, 32], strides = [1, 1]} : vector<2x128xf32> to vector<2x32xf32>
    %258 = arith.negf %257 : vector<2x32xf32>
    %259 = math.exp %258 : vector<2x32xf32>
    %cst_54 = arith.constant 1.000000e+00 : f32
    %260 = vector.broadcast %cst_54 : f32 to vector<2x32xf32>
    %261 = arith.addf %260, %259 : vector<2x32xf32>
    %262 = arith.divf %260, %261 : vector<2x32xf32>
    %263 = vector.extract_strided_slice %256 {offsets = [0, 32], sizes = [2, 32], strides = [1, 1]} : vector<2x128xf32> to vector<2x32xf32>
    %264 = arith.negf %263 : vector<2x32xf32>
    %265 = math.exp %264 : vector<2x32xf32>
    %cst_55 = arith.constant 1.000000e+00 : f32
    %266 = vector.broadcast %cst_55 : f32 to vector<2x32xf32>
    %267 = arith.addf %266, %265 : vector<2x32xf32>
    %268 = arith.divf %266, %267 : vector<2x32xf32>
    %269 = vector.extract_strided_slice %256 {offsets = [0, 64], sizes = [2, 32], strides = [1, 1]} : vector<2x128xf32> to vector<2x32xf32>
    %270 = math.tanh %269 : vector<2x32xf32>
    %271 = vector.extract_strided_slice %256 {offsets = [0, 96], sizes = [2, 32], strides = [1, 1]} : vector<2x128xf32> to vector<2x32xf32>
    %272 = arith.negf %271 : vector<2x32xf32>
    %273 = math.exp %272 : vector<2x32xf32>
    %cst_56 = arith.constant 1.000000e+00 : f32
    %274 = vector.broadcast %cst_56 : f32 to vector<2x32xf32>
    %275 = arith.addf %274, %273 : vector<2x32xf32>
    %276 = arith.divf %274, %275 : vector<2x32xf32>
    %277 = arith.mulf %268, %217 : vector<2x32xf32>
    %278 = arith.mulf %262, %270 : vector<2x32xf32>
    %279 = arith.addf %277, %278 : vector<2x32xf32>
    %280 = math.tanh %279 : vector<2x32xf32>
    %281 = arith.mulf %276, %280 : vector<2x32xf32>
    %282 = arith.index_cast %c4_i32 : i32 to index
    %c0_57 = arith.constant 0 : index
    %c0_58 = arith.constant 0 : index
    %283 = vector.load %arg1[%282, %c0_57, %c0_58] : memref<5x2x128xf32, #tpu.memory_space<vmem>>, vector<1x2x128xf32>
    %284 = vector.shape_cast %283 : vector<1x2x128xf32> to vector<2x128xf32>
    %285 = arith.truncf %250 : vector<2x32xf32> to vector<2x32xbf16>
    %cst_59 = arith.constant dense<0.000000e+00> : vector<2x128xf32>
    %286 = tpu.matmul %285, %1, %cst_59 {dimension_numbers = #tpu.dot_dimension_numbers<[1], [0], [0], [1], [0, 0, 1, 1], [], []>} : vector<2x32xbf16>, vector<32x128xbf16>, vector<2x128xf32> -> vector<2x128xf32>
    %287 = arith.addf %284, %286 : vector<2x128xf32>
    %288 = vector.extract_strided_slice %287 {offsets = [0, 0], sizes = [2, 32], strides = [1, 1]} : vector<2x128xf32> to vector<2x32xf32>
    %289 = arith.negf %288 : vector<2x32xf32>
    %290 = math.exp %289 : vector<2x32xf32>
    %cst_60 = arith.constant 1.000000e+00 : f32
    %291 = vector.broadcast %cst_60 : f32 to vector<2x32xf32>
    %292 = arith.addf %291, %290 : vector<2x32xf32>
    %293 = arith.divf %291, %292 : vector<2x32xf32>
    %294 = vector.extract_strided_slice %287 {offsets = [0, 32], sizes = [2, 32], strides = [1, 1]} : vector<2x128xf32> to vector<2x32xf32>
    %295 = arith.negf %294 : vector<2x32xf32>
    %296 = math.exp %295 : vector<2x32xf32>
    %cst_61 = arith.constant 1.000000e+00 : f32
    %297 = vector.broadcast %cst_61 : f32 to vector<2x32xf32>
    %298 = arith.addf %297, %296 : vector<2x32xf32>
    %299 = arith.divf %297, %298 : vector<2x32xf32>
    %300 = vector.extract_strided_slice %287 {offsets = [0, 64], sizes = [2, 32], strides = [1, 1]} : vector<2x128xf32> to vector<2x32xf32>
    %301 = math.tanh %300 : vector<2x32xf32>
    %302 = vector.extract_strided_slice %287 {offsets = [0, 96], sizes = [2, 32], strides = [1, 1]} : vector<2x128xf32> to vector<2x32xf32>
    %303 = arith.negf %302 : vector<2x32xf32>
    %304 = math.exp %303 : vector<2x32xf32>
    %cst_62 = arith.constant 1.000000e+00 : f32
    %305 = vector.broadcast %cst_62 : f32 to vector<2x32xf32>
    %306 = arith.addf %305, %304 : vector<2x32xf32>
    %307 = arith.divf %305, %306 : vector<2x32xf32>
    %308 = arith.mulf %299, %248 : vector<2x32xf32>
    %309 = arith.mulf %293, %301 : vector<2x32xf32>
    %310 = arith.addf %308, %309 : vector<2x32xf32>
    %311 = math.tanh %310 : vector<2x32xf32>
    %312 = arith.mulf %307, %311 : vector<2x32xf32>
    %c5_i32 = arith.constant 5 : i32
    %313 = arith.addf %281, %312 : vector<2x32xf32>
    %c0_63 = arith.constant 0 : index
    %c0_64 = arith.constant 0 : index
    %314 = vector.load %arg4[%c0_63, %c0_64] : memref<2x32xf32, #tpu.memory_space<vmem>>, vector<2x32xf32>
    tpu.vector_store %arg4[%c0_63, %c0_64], %313 {strides = array<i32>} : memref<2x32xf32, #tpu.memory_space<vmem>>, vector<2x32xf32>,
    %315 = arith.addf %279, %310 : vector<2x32xf32>
    %c0_65 = arith.constant 0 : index
    %c0_66 = arith.constant 0 : index
    %316 = vector.load %arg5[%c0_65, %c0_66] : memref<2x32xf32, #tpu.memory_space<vmem>>, vector<2x32xf32>
    tpu.vector_store %arg5[%c0_65, %c0_66], %315 {strides = array<i32>} : memref<2x32xf32, #tpu.memory_space<vmem>>, vector<2x32xf32>,
    return
  }
}

module attributes {stable_mosaic.version = 11 : i64} {
  func.func @_decoder_kernel(%arg0: i32, %arg1: i32, %arg2: memref<8x2x128xf32, #tpu.memory_space<vmem>>, %arg3: memref<2x6x16xf32, #tpu.memory_space<vmem>>, %arg4: memref<2x6x16xf32, #tpu.memory_space<vmem>>, %arg5: memref<2x6x1xf32, #tpu.memory_space<vmem>>, %arg6: memref<2x32xf32, #tpu.memory_space<vmem>>, %arg7: memref<2x32xf32, #tpu.memory_space<vmem>>, %arg8: memref<32x16xbf16, #tpu.memory_space<vmem>>, %arg9: memref<1x16xf32, #tpu.memory_space<vmem>>, %arg10: memref<16x16xbf16, #tpu.memory_space<vmem>>, %arg11: memref<1x16xf32, #tpu.memory_space<vmem>>, %arg12: memref<16x128xbf16, #tpu.memory_space<vmem>>, %arg13: memref<32x128xbf16, #tpu.memory_space<vmem>>, %arg14: memref<8x2x32xf32, #tpu.memory_space<vmem>>, %arg15: memref<8x2x16xf32, #tpu.memory_space<vmem>>, %arg16: memref<2x32xf32, #tpu.memory_space<vmem>>, %arg17: memref<2x32xf32, #tpu.memory_space<vmem>>) attributes {dimension_semantics = [#tpu.dimension_semantics<parallel>, #tpu.dimension_semantics<arbitrary>], iteration_bounds = array<i64: 1, 1>, scalar_prefetch = 0 : i64, scratch_operands = 2 : i64, tpu.core_type = #tpu.core_type<tc>, window_params = [{transform_indices = @transform_0, window_bounds = array<i64: 8, 2, 128>}, {transform_indices = @transform_1, window_bounds = array<i64: 2, 6, 16>}, {transform_indices = @transform_2, window_bounds = array<i64: 2, 6, 16>}, {transform_indices = @transform_3, window_bounds = array<i64: 2, 6, 1>}, {transform_indices = @transform_4, window_bounds = array<i64: 2, 32>}, {transform_indices = @transform_5, window_bounds = array<i64: 2, 32>}, {pipeline_mode = #tpu.pipeline_mode<synchronous>, transform_indices = @transform_6, window_bounds = array<i64: 32, 16>}, {pipeline_mode = #tpu.pipeline_mode<synchronous>, transform_indices = @transform_7, window_bounds = array<i64: 1, 16>}, {pipeline_mode = #tpu.pipeline_mode<synchronous>, transform_indices = @transform_8, window_bounds = array<i64: 16, 16>}, {pipeline_mode = #tpu.pipeline_mode<synchronous>, transform_indices = @transform_9, window_bounds = array<i64: 1, 16>}, {pipeline_mode = #tpu.pipeline_mode<synchronous>, transform_indices = @transform_10, window_bounds = array<i64: 16, 128>}, {pipeline_mode = #tpu.pipeline_mode<synchronous>, transform_indices = @transform_11, window_bounds = array<i64: 32, 128>}, {transform_indices = @transform_12, window_bounds = array<i64: 8, 2, 32>}, {transform_indices = @transform_13, window_bounds = array<i64: 8, 2, 16>}]} {
    %c0 = arith.constant 0 : index
    %c0_0 = arith.constant 0 : index
    %c0_1 = arith.constant 0 : index
    %0 = vector.load %arg3[%c0, %c0_0, %c0_1] : memref<2x6x16xf32, #tpu.memory_space<vmem>>, vector<2x6x16xf32>
    %c0_2 = arith.constant 0 : index
    %c0_3 = arith.constant 0 : index
    %c0_4 = arith.constant 0 : index
    %1 = vector.load %arg4[%c0_2, %c0_3, %c0_4] : memref<2x6x16xf32, #tpu.memory_space<vmem>>, vector<2x6x16xf32>
    %c0_5 = arith.constant 0 : index
    %c0_6 = arith.constant 0 : index
    %c0_7 = arith.constant 0 : index
    %2 = vector.load %arg5[%c0_5, %c0_6, %c0_7] : memref<2x6x1xf32, #tpu.memory_space<vmem>>, vector<2x6x1xf32>
    %c0_8 = arith.constant 0 : index
    %c0_9 = arith.constant 0 : index
    %3 = vector.load %arg8[%c0_8, %c0_9] : memref<32x16xbf16, #tpu.memory_space<vmem>>, vector<32x16xbf16>
    %c0_10 = arith.constant 0 : index
    %c0_11 = arith.constant 0 : index
    %4 = vector.load %arg9[%c0_10, %c0_11] : memref<1x16xf32, #tpu.memory_space<vmem>>, vector<1x16xf32>
    %c0_12 = arith.constant 0 : index
    %c0_13 = arith.constant 0 : index
    %5 = vector.load %arg10[%c0_12, %c0_13] : memref<16x16xbf16, #tpu.memory_space<vmem>>, vector<16x16xbf16>
    %c0_14 = arith.constant 0 : index
    %c0_15 = arith.constant 0 : index
    %6 = vector.load %arg11[%c0_14, %c0_15] : memref<1x16xf32, #tpu.memory_space<vmem>>, vector<1x16xf32>
    %c0_16 = arith.constant 0 : index
    %c0_17 = arith.constant 0 : index
    %7 = vector.load %arg12[%c0_16, %c0_17] : memref<16x128xbf16, #tpu.memory_space<vmem>>, vector<16x128xbf16>
    %c0_18 = arith.constant 0 : index
    %c0_19 = arith.constant 0 : index
    %8 = vector.load %arg13[%c0_18, %c0_19] : memref<32x128xbf16, #tpu.memory_space<vmem>>, vector<32x128xbf16>
    %c0_i32 = arith.constant 0 : i32
    %9 = arith.cmpi eq, %arg1, %c0_i32 : i32
    %10 = arith.extui %9 : i1 to i32
    %c0_i32_20 = arith.constant 0 : i32
    %11 = arith.cmpi ne, %10, %c0_i32_20 : i32
    scf.if %11 {
      %c0_23 = arith.constant 0 : index
      %c0_24 = arith.constant 0 : index
      %13 = vector.load %arg6[%c0_23, %c0_24] : memref<2x32xf32, #tpu.memory_space<vmem>>, vector<2x32xf32>
      %c0_25 = arith.constant 0 : index
      %c0_26 = arith.constant 0 : index
      %14 = vector.load %arg16[%c0_25, %c0_26] : memref<2x32xf32, #tpu.memory_space<vmem>>, vector<2x32xf32>
      tpu.vector_store %arg16[%c0_25, %c0_26], %13 {strides = array<i32>} : memref<2x32xf32, #tpu.memory_space<vmem>>, vector<2x32xf32>,
      %c0_27 = arith.constant 0 : index
      %c0_28 = arith.constant 0 : index
      %15 = vector.load %arg7[%c0_27, %c0_28] : memref<2x32xf32, #tpu.memory_space<vmem>>, vector<2x32xf32>
      %c0_29 = arith.constant 0 : index
      %c0_30 = arith.constant 0 : index
      %16 = vector.load %arg17[%c0_29, %c0_30] : memref<2x32xf32, #tpu.memory_space<vmem>>, vector<2x32xf32>
      tpu.vector_store %arg17[%c0_29, %c0_30], %15 {strides = array<i32>} : memref<2x32xf32, #tpu.memory_space<vmem>>, vector<2x32xf32>,
    } else {
    }
    %c0_i32_21 = arith.constant 0 : i32
    %c8_i32 = arith.constant 8 : i32
    %12 = arith.addi %c0_i32_21, %c8_i32 : i32
    %c1_i32 = arith.constant 1 : i32
    scf.for %arg18 = %c0_i32_21 to %12 step %c1_i32  : i32 {
      %c1_i32_23 = arith.constant 1 : i32
      %13 = arith.muli %arg18, %c1_i32_23 : i32
      %c0_i32_24 = arith.constant 0 : i32
      %14 = arith.addi %c0_i32_24, %13 : i32
      %c0_25 = arith.constant 0 : index
      %c0_26 = arith.constant 0 : index
      %15 = vector.load %arg16[%c0_25, %c0_26] : memref<2x32xf32, #tpu.memory_space<vmem>>, vector<2x32xf32>
      %c0_27 = arith.constant 0 : index
      %c0_28 = arith.constant 0 : index
      %16 = vector.load %arg17[%c0_27, %c0_28] : memref<2x32xf32, #tpu.memory_space<vmem>>, vector<2x32xf32>
      %17 = arith.truncf %15 : vector<2x32xf32> to vector<2x32xbf16>
      %cst = arith.constant dense<0.000000e+00> : vector<2x16xf32>
      %18 = tpu.matmul %17, %3, %cst {dimension_numbers = #tpu.dot_dimension_numbers<[1], [0], [0], [1], [0, 0, 1, 1], [], []>} : vector<2x32xbf16>, vector<32x16xbf16>, vector<2x16xf32> -> vector<2x16xf32>
      %19 = vector.broadcast %4 : vector<1x16xf32> to vector<2x16xf32>
      %20 = arith.addf %18, %19 : vector<2x16xf32>
      %21 = vector.shape_cast %20 : vector<2x16xf32> to vector<2x1x16xf32>
      %22 = vector.broadcast %21 : vector<2x1x16xf32> to vector<2x6x16xf32>
      %23 = arith.mulf %22, %0 : vector<2x6x16xf32>
      %24 = vector.extract_strided_slice %23 {offsets = [0, 0, 0], sizes = [2, 6, 8], strides = [1, 1, 1]} : vector<2x6x16xf32> to vector<2x6x8xf32>
      %cst_29 = arith.constant dense<0.000000e+00> : vector<2x6xf32>
      %25 = vector.multi_reduction <add>, %24, %cst_29 [2] : vector<2x6x8xf32> to vector<2x6xf32>
      %26 = vector.shape_cast %25 : vector<2x6xf32> to vector<2x6x1xf32>
      %27 = vector.extract_strided_slice %23 {offsets = [0, 0, 8], sizes = [2, 6, 8], strides = [1, 1, 1]} : vector<2x6x16xf32> to vector<2x6x8xf32>
      %cst_30 = arith.constant dense<0.000000e+00> : vector<2x6xf32>
      %28 = vector.multi_reduction <add>, %27, %cst_30 [2] : vector<2x6x8xf32> to vector<2x6xf32>
      %29 = vector.shape_cast %28 : vector<2x6xf32> to vector<2x6x1xf32>
      %30 = tpu.concatenate %26, %29 in 2 : vector<2x6x1xf32>, vector<2x6x1xf32> -> vector<2x6x2xf32>
      %cst_31 = arith.constant 0.353553385 : f32
      %31 = vector.broadcast %cst_31 : f32 to vector<2x6x2xf32>
      %32 = arith.mulf %30, %31 : vector<2x6x2xf32>
      %33 = vector.broadcast %2 : vector<2x6x1xf32> to vector<2x6x2xf32>
      %34 = arith.addf %32, %33 : vector<2x6x2xf32>
      %cst_32 = arith.constant dense<0xFF800000> : vector<2x2xf32>
      %35 = vector.multi_reduction <maximumf>, %34, %cst_32 [1] : vector<2x6x2xf32> to vector<2x2xf32>
      %cst_33 = arith.constant 0xFF800000 : f32
      %36 = vector.broadcast %cst_33 : f32 to vector<2x2xf32>
      %37 = arith.maximumf %36, %35 : vector<2x2xf32>
      %38 = vector.shape_cast %37 : vector<2x2xf32> to vector<2x1x2xf32>
      %39 = vector.broadcast %38 : vector<2x1x2xf32> to vector<2x6x2xf32>
      %40 = arith.subf %34, %39 : vector<2x6x2xf32>
      %41 = math.exp %40 : vector<2x6x2xf32>
      %cst_34 = arith.constant dense<0.000000e+00> : vector<2x2xf32>
      %42 = vector.multi_reduction <add>, %41, %cst_34 [1] : vector<2x6x2xf32> to vector<2x2xf32>
      %43 = vector.shape_cast %42 : vector<2x2xf32> to vector<2x1x2xf32>
      %44 = vector.broadcast %43 : vector<2x1x2xf32> to vector<2x6x2xf32>
      %45 = arith.divf %41, %44 : vector<2x6x2xf32>
      %46 = vector.extract_strided_slice %45 {offsets = [0, 0, 0], sizes = [2, 6, 1], strides = [1, 1, 1]} : vector<2x6x2xf32> to vector<2x6x1xf32>
      %47 = vector.extract_strided_slice %1 {offsets = [0, 0, 0], sizes = [2, 6, 8], strides = [1, 1, 1]} : vector<2x6x16xf32> to vector<2x6x8xf32>
      %48 = vector.broadcast %46 : vector<2x6x1xf32> to vector<2x6x8xf32>
      %49 = arith.mulf %48, %47 : vector<2x6x8xf32>
      %cst_35 = arith.constant dense<0.000000e+00> : vector<2x8xf32>
      %50 = vector.multi_reduction <add>, %49, %cst_35 [1] : vector<2x6x8xf32> to vector<2x8xf32>
      %51 = vector.extract_strided_slice %45 {offsets = [0, 0, 1], sizes = [2, 6, 1], strides = [1, 1, 1]} : vector<2x6x2xf32> to vector<2x6x1xf32>
      %52 = vector.extract_strided_slice %1 {offsets = [0, 0, 8], sizes = [2, 6, 8], strides = [1, 1, 1]} : vector<2x6x16xf32> to vector<2x6x8xf32>
      %53 = vector.broadcast %51 : vector<2x6x1xf32> to vector<2x6x8xf32>
      %54 = arith.mulf %53, %52 : vector<2x6x8xf32>
      %cst_36 = arith.constant dense<0.000000e+00> : vector<2x8xf32>
      %55 = vector.multi_reduction <add>, %54, %cst_36 [1] : vector<2x6x8xf32> to vector<2x8xf32>
      %56 = tpu.concatenate %50, %55 in 1 : vector<2x8xf32>, vector<2x8xf32> -> vector<2x16xf32>
      %57 = arith.truncf %56 : vector<2x16xf32> to vector<2x16xbf16>
      %cst_37 = arith.constant dense<0.000000e+00> : vector<2x16xf32>
      %58 = tpu.matmul %57, %5, %cst_37 {dimension_numbers = #tpu.dot_dimension_numbers<[1], [0], [0], [1], [0, 0, 1, 1], [], []>} : vector<2x16xbf16>, vector<16x16xbf16>, vector<2x16xf32> -> vector<2x16xf32>
      %59 = vector.broadcast %6 : vector<1x16xf32> to vector<2x16xf32>
      %60 = arith.addf %58, %59 : vector<2x16xf32>
      %61 = arith.index_cast %14 : i32 to index
      %c0_38 = arith.constant 0 : index
      %c0_39 = arith.constant 0 : index
      %62 = vector.load %arg2[%61, %c0_38, %c0_39] : memref<8x2x128xf32, #tpu.memory_space<vmem>>, vector<1x2x128xf32>
      %63 = vector.shape_cast %62 : vector<1x2x128xf32> to vector<2x128xf32>
      %64 = arith.truncf %60 : vector<2x16xf32> to vector<2x16xbf16>
      %cst_40 = arith.constant dense<0.000000e+00> : vector<2x128xf32>
      %65 = tpu.matmul %64, %7, %cst_40 {dimension_numbers = #tpu.dot_dimension_numbers<[1], [0], [0], [1], [0, 0, 1, 1], [], []>} : vector<2x16xbf16>, vector<16x128xbf16>, vector<2x128xf32> -> vector<2x128xf32>
      %66 = arith.addf %63, %65 : vector<2x128xf32>
      %67 = arith.truncf %15 : vector<2x32xf32> to vector<2x32xbf16>
      %cst_41 = arith.constant dense<0.000000e+00> : vector<2x128xf32>
      %68 = tpu.matmul %67, %8, %cst_41 {dimension_numbers = #tpu.dot_dimension_numbers<[1], [0], [0], [1], [0, 0, 1, 1], [], []>} : vector<2x32xbf16>, vector<32x128xbf16>, vector<2x128xf32> -> vector<2x128xf32>
      %69 = arith.addf %66, %68 : vector<2x128xf32>
      %70 = vector.extract_strided_slice %69 {offsets = [0, 0], sizes = [2, 32], strides = [1, 1]} : vector<2x128xf32> to vector<2x32xf32>
      %71 = arith.negf %70 : vector<2x32xf32>
      %72 = math.exp %71 : vector<2x32xf32>
      %cst_42 = arith.constant 1.000000e+00 : f32
      %73 = vector.broadcast %cst_42 : f32 to vector<2x32xf32>
      %74 = arith.addf %73, %72 : vector<2x32xf32>
      %75 = arith.divf %73, %74 : vector<2x32xf32>
      %76 = vector.extract_strided_slice %69 {offsets = [0, 32], sizes = [2, 32], strides = [1, 1]} : vector<2x128xf32> to vector<2x32xf32>
      %77 = arith.negf %76 : vector<2x32xf32>
      %78 = math.exp %77 : vector<2x32xf32>
      %cst_43 = arith.constant 1.000000e+00 : f32
      %79 = vector.broadcast %cst_43 : f32 to vector<2x32xf32>
      %80 = arith.addf %79, %78 : vector<2x32xf32>
      %81 = arith.divf %79, %80 : vector<2x32xf32>
      %82 = vector.extract_strided_slice %69 {offsets = [0, 64], sizes = [2, 32], strides = [1, 1]} : vector<2x128xf32> to vector<2x32xf32>
      %83 = math.tanh %82 : vector<2x32xf32>
      %84 = vector.extract_strided_slice %69 {offsets = [0, 96], sizes = [2, 32], strides = [1, 1]} : vector<2x128xf32> to vector<2x32xf32>
      %85 = arith.negf %84 : vector<2x32xf32>
      %86 = math.exp %85 : vector<2x32xf32>
      %cst_44 = arith.constant 1.000000e+00 : f32
      %87 = vector.broadcast %cst_44 : f32 to vector<2x32xf32>
      %88 = arith.addf %87, %86 : vector<2x32xf32>
      %89 = arith.divf %87, %88 : vector<2x32xf32>
      %90 = arith.mulf %81, %16 : vector<2x32xf32>
      %91 = arith.mulf %75, %83 : vector<2x32xf32>
      %92 = arith.addf %90, %91 : vector<2x32xf32>
      %93 = math.tanh %92 : vector<2x32xf32>
      %94 = arith.mulf %89, %93 : vector<2x32xf32>
      %c0_45 = arith.constant 0 : index
      %c0_46 = arith.constant 0 : index
      %95 = vector.load %arg16[%c0_45, %c0_46] : memref<2x32xf32, #tpu.memory_space<vmem>>, vector<2x32xf32>
      tpu.vector_store %arg16[%c0_45, %c0_46], %94 {strides = array<i32>} : memref<2x32xf32, #tpu.memory_space<vmem>>, vector<2x32xf32>,
      %c0_47 = arith.constant 0 : index
      %c0_48 = arith.constant 0 : index
      %96 = vector.load %arg17[%c0_47, %c0_48] : memref<2x32xf32, #tpu.memory_space<vmem>>, vector<2x32xf32>
      tpu.vector_store %arg17[%c0_47, %c0_48], %92 {strides = array<i32>} : memref<2x32xf32, #tpu.memory_space<vmem>>, vector<2x32xf32>,
      %97 = arith.index_cast %14 : i32 to index
      %c0_49 = arith.constant 0 : index
      %c0_50 = arith.constant 0 : index
      %98 = vector.load %arg14[%97, %c0_49, %c0_50] : memref<8x2x32xf32, #tpu.memory_space<vmem>>, vector<1x2x32xf32>
      %99 = vector.shape_cast %98 : vector<1x2x32xf32> to vector<2x32xf32>
      %100 = vector.shape_cast %94 : vector<2x32xf32> to vector<1x2x32xf32>
      tpu.vector_store %arg14[%97, %c0_49, %c0_50], %100 {strides = array<i32>} : memref<8x2x32xf32, #tpu.memory_space<vmem>>, vector<1x2x32xf32>,
      %101 = arith.index_cast %14 : i32 to index
      %c0_51 = arith.constant 0 : index
      %c0_52 = arith.constant 0 : index
      %102 = vector.load %arg15[%101, %c0_51, %c0_52] : memref<8x2x16xf32, #tpu.memory_space<vmem>>, vector<1x2x16xf32>
      %103 = vector.shape_cast %102 : vector<1x2x16xf32> to vector<2x16xf32>
      %104 = vector.shape_cast %60 : vector<2x16xf32> to vector<1x2x16xf32>
      tpu.vector_store %arg15[%101, %c0_51, %c0_52], %104 {strides = array<i32>} : memref<8x2x16xf32, #tpu.memory_space<vmem>>, vector<1x2x16xf32>,
    }
    %c8_i32_22 = arith.constant 8 : i32
    return
  }
  func.func @transform_0(%arg0: i32, %arg1: i32) -> (i32, i32, i32) {
    %c0_i32 = arith.constant 0 : i32
    %c0_i32_0 = arith.constant 0 : i32
    return %arg1, %arg0, %c0_i32 : i32, i32, i32
  }
  func.func @transform_1(%arg0: i32, %arg1: i32) -> (i32, i32, i32) {
    %c0_i32 = arith.constant 0 : i32
    %c0_i32_0 = arith.constant 0 : i32
    %c0_i32_1 = arith.constant 0 : i32
    return %arg0, %c0_i32, %c0_i32_0 : i32, i32, i32
  }
  func.func @transform_2(%arg0: i32, %arg1: i32) -> (i32, i32, i32) {
    %c0_i32 = arith.constant 0 : i32
    %c0_i32_0 = arith.constant 0 : i32
    %c0_i32_1 = arith.constant 0 : i32
    return %arg0, %c0_i32, %c0_i32_0 : i32, i32, i32
  }
  func.func @transform_3(%arg0: i32, %arg1: i32) -> (i32, i32, i32) {
    %c0_i32 = arith.constant 0 : i32
    %c0_i32_0 = arith.constant 0 : i32
    %c0_i32_1 = arith.constant 0 : i32
    return %arg0, %c0_i32, %c0_i32_0 : i32, i32, i32
  }
  func.func @transform_4(%arg0: i32, %arg1: i32) -> (i32, i32) {
    %c0_i32 = arith.constant 0 : i32
    %c0_i32_0 = arith.constant 0 : i32
    return %arg0, %c0_i32 : i32, i32
  }
  func.func @transform_5(%arg0: i32, %arg1: i32) -> (i32, i32) {
    %c0_i32 = arith.constant 0 : i32
    %c0_i32_0 = arith.constant 0 : i32
    return %arg0, %c0_i32 : i32, i32
  }
  func.func @transform_6(%arg0: i32, %arg1: i32) -> (i32, i32) {
    %c0_i32 = arith.constant 0 : i32
    %c0_i32_0 = arith.constant 0 : i32
    %c0_i32_1 = arith.constant 0 : i32
    return %c0_i32, %c0_i32_0 : i32, i32
  }
  func.func @transform_7(%arg0: i32, %arg1: i32) -> (i32, i32) {
    %c0_i32 = arith.constant 0 : i32
    %c0_i32_0 = arith.constant 0 : i32
    %c0_i32_1 = arith.constant 0 : i32
    return %c0_i32, %c0_i32_0 : i32, i32
  }
  func.func @transform_8(%arg0: i32, %arg1: i32) -> (i32, i32) {
    %c0_i32 = arith.constant 0 : i32
    %c0_i32_0 = arith.constant 0 : i32
    %c0_i32_1 = arith.constant 0 : i32
    return %c0_i32, %c0_i32_0 : i32, i32
  }
  func.func @transform_9(%arg0: i32, %arg1: i32) -> (i32, i32) {
    %c0_i32 = arith.constant 0 : i32
    %c0_i32_0 = arith.constant 0 : i32
    %c0_i32_1 = arith.constant 0 : i32
    return %c0_i32, %c0_i32_0 : i32, i32
  }
  func.func @transform_10(%arg0: i32, %arg1: i32) -> (i32, i32) {
    %c0_i32 = arith.constant 0 : i32
    %c0_i32_0 = arith.constant 0 : i32
    %c0_i32_1 = arith.constant 0 : i32
    return %c0_i32, %c0_i32_0 : i32, i32
  }
  func.func @transform_11(%arg0: i32, %arg1: i32) -> (i32, i32) {
    %c0_i32 = arith.constant 0 : i32
    %c0_i32_0 = arith.constant 0 : i32
    %c0_i32_1 = arith.constant 0 : i32
    return %c0_i32, %c0_i32_0 : i32, i32
  }
  func.func @transform_12(%arg0: i32, %arg1: i32) -> (i32, i32, i32) {
    %c0_i32 = arith.constant 0 : i32
    %c0_i32_0 = arith.constant 0 : i32
    return %arg1, %arg0, %c0_i32 : i32, i32, i32
  }
  func.func @transform_13(%arg0: i32, %arg1: i32) -> (i32, i32, i32) {
    %c0_i32 = arith.constant 0 : i32
    %c0_i32_0 = arith.constant 0 : i32
    return %arg1, %arg0, %c0_i32 : i32, i32, i32
  }
}

module attributes {stable_mosaic.version = 11 : i64} {
  func.func @_head_kernel(%arg0: i32, %arg1: i32, %arg2: memref<1x8x32xf32, #tpu.memory_space<vmem>>, %arg3: memref<1x8x16xf32, #tpu.memory_space<vmem>>, %arg4: memref<32x32xbf16, #tpu.memory_space<vmem>>, %arg5: memref<1x32xf32, #tpu.memory_space<vmem>>, %arg6: memref<32x32xbf16, #tpu.memory_space<vmem>>, %arg7: memref<16x32xbf16, #tpu.memory_space<vmem>>, %arg8: memref<1x32xf32, #tpu.memory_space<vmem>>, %arg9: memref<32x32xbf16, #tpu.memory_space<vmem>>, %arg10: memref<16x32xbf16, #tpu.memory_space<vmem>>, %arg11: memref<1x32xf32, #tpu.memory_space<vmem>>, %arg12: memref<1x8x32xf32, #tpu.memory_space<vmem>>) attributes {dimension_semantics = [#tpu.dimension_semantics<parallel>, #tpu.dimension_semantics<parallel>], iteration_bounds = array<i64: 2, 1>, scalar_prefetch = 0 : i64, scratch_operands = 0 : i64, tpu.core_type = #tpu.core_type<tc>, window_params = [{transform_indices = @transform_0, window_bounds = array<i64: 1, 8, 32>}, {transform_indices = @transform_1, window_bounds = array<i64: 1, 8, 16>}, {transform_indices = @transform_2, window_bounds = array<i64: 32, 32>}, {transform_indices = @transform_3, window_bounds = array<i64: 1, 32>}, {transform_indices = @transform_4, window_bounds = array<i64: 32, 32>}, {transform_indices = @transform_5, window_bounds = array<i64: 16, 32>}, {transform_indices = @transform_6, window_bounds = array<i64: 1, 32>}, {transform_indices = @transform_7, window_bounds = array<i64: 32, 32>}, {transform_indices = @transform_8, window_bounds = array<i64: 16, 32>}, {transform_indices = @transform_9, window_bounds = array<i64: 1, 32>}, {transform_indices = @transform_10, window_bounds = array<i64: 1, 8, 32>}]} {
    %c0 = arith.constant 0 : index
    %c0_0 = arith.constant 0 : index
    %c0_1 = arith.constant 0 : index
    %0 = vector.load %arg2[%c0, %c0_0, %c0_1] : memref<1x8x32xf32, #tpu.memory_space<vmem>>, vector<1x8x32xf32>
    %1 = vector.shape_cast %0 : vector<1x8x32xf32> to vector<8x32xf32>
    %2 = arith.truncf %1 : vector<8x32xf32> to vector<8x32xbf16>
    %c0_2 = arith.constant 0 : index
    %c0_3 = arith.constant 0 : index
    %c0_4 = arith.constant 0 : index
    %3 = vector.load %arg3[%c0_2, %c0_3, %c0_4] : memref<1x8x16xf32, #tpu.memory_space<vmem>>, vector<1x8x16xf32>
    %4 = vector.shape_cast %3 : vector<1x8x16xf32> to vector<8x16xf32>
    %5 = arith.truncf %4 : vector<8x16xf32> to vector<8x16xbf16>
    %c0_5 = arith.constant 0 : index
    %c0_6 = arith.constant 0 : index
    %6 = vector.load %arg4[%c0_5, %c0_6] : memref<32x32xbf16, #tpu.memory_space<vmem>>, vector<32x32xbf16>
    %cst = arith.constant dense<0.000000e+00> : vector<8x32xf32>
    %7 = tpu.matmul %2, %6, %cst {dimension_numbers = #tpu.dot_dimension_numbers<[1], [0], [0], [1], [0, 0, 1, 1], [], []>} : vector<8x32xbf16>, vector<32x32xbf16>, vector<8x32xf32> -> vector<8x32xf32>
    %c0_7 = arith.constant 0 : index
    %c0_8 = arith.constant 0 : index
    %8 = vector.load %arg5[%c0_7, %c0_8] : memref<1x32xf32, #tpu.memory_space<vmem>>, vector<1x32xf32>
    %9 = vector.broadcast %8 : vector<1x32xf32> to vector<8x32xf32>
    %10 = arith.addf %7, %9 : vector<8x32xf32>
    %c0_9 = arith.constant 0 : index
    %c0_10 = arith.constant 0 : index
    %11 = vector.load %arg6[%c0_9, %c0_10] : memref<32x32xbf16, #tpu.memory_space<vmem>>, vector<32x32xbf16>
    %cst_11 = arith.constant dense<0.000000e+00> : vector<8x32xf32>
    %12 = tpu.matmul %2, %11, %cst_11 {dimension_numbers = #tpu.dot_dimension_numbers<[1], [0], [0], [1], [0, 0, 1, 1], [], []>} : vector<8x32xbf16>, vector<32x32xbf16>, vector<8x32xf32> -> vector<8x32xf32>
    %c0_12 = arith.constant 0 : index
    %c0_13 = arith.constant 0 : index
    %13 = vector.load %arg7[%c0_12, %c0_13] : memref<16x32xbf16, #tpu.memory_space<vmem>>, vector<16x32xbf16>
    %cst_14 = arith.constant dense<0.000000e+00> : vector<8x32xf32>
    %14 = tpu.matmul %5, %13, %cst_14 {dimension_numbers = #tpu.dot_dimension_numbers<[1], [0], [0], [1], [0, 0, 1, 1], [], []>} : vector<8x16xbf16>, vector<16x32xbf16>, vector<8x32xf32> -> vector<8x32xf32>
    %15 = arith.addf %12, %14 : vector<8x32xf32>
    %c0_15 = arith.constant 0 : index
    %c0_16 = arith.constant 0 : index
    %16 = vector.load %arg8[%c0_15, %c0_16] : memref<1x32xf32, #tpu.memory_space<vmem>>, vector<1x32xf32>
    %17 = vector.broadcast %16 : vector<1x32xf32> to vector<8x32xf32>
    %18 = arith.addf %15, %17 : vector<8x32xf32>
    %c0_17 = arith.constant 0 : index
    %c0_18 = arith.constant 0 : index
    %19 = vector.load %arg9[%c0_17, %c0_18] : memref<32x32xbf16, #tpu.memory_space<vmem>>, vector<32x32xbf16>
    %cst_19 = arith.constant dense<0.000000e+00> : vector<8x32xf32>
    %20 = tpu.matmul %2, %19, %cst_19 {dimension_numbers = #tpu.dot_dimension_numbers<[1], [0], [0], [1], [0, 0, 1, 1], [], []>} : vector<8x32xbf16>, vector<32x32xbf16>, vector<8x32xf32> -> vector<8x32xf32>
    %c0_20 = arith.constant 0 : index
    %c0_21 = arith.constant 0 : index
    %21 = vector.load %arg10[%c0_20, %c0_21] : memref<16x32xbf16, #tpu.memory_space<vmem>>, vector<16x32xbf16>
    %cst_22 = arith.constant dense<0.000000e+00> : vector<8x32xf32>
    %22 = tpu.matmul %5, %21, %cst_22 {dimension_numbers = #tpu.dot_dimension_numbers<[1], [0], [0], [1], [0, 0, 1, 1], [], []>} : vector<8x16xbf16>, vector<16x32xbf16>, vector<8x32xf32> -> vector<8x32xf32>
    %23 = arith.addf %20, %22 : vector<8x32xf32>
    %c0_23 = arith.constant 0 : index
    %c0_24 = arith.constant 0 : index
    %24 = vector.load %arg11[%c0_23, %c0_24] : memref<1x32xf32, #tpu.memory_space<vmem>>, vector<1x32xf32>
    %25 = vector.broadcast %24 : vector<1x32xf32> to vector<8x32xf32>
    %26 = arith.addf %23, %25 : vector<8x32xf32>
    %27 = arith.negf %26 : vector<8x32xf32>
    %28 = math.exp %27 : vector<8x32xf32>
    %cst_25 = arith.constant 1.000000e+00 : f32
    %29 = vector.broadcast %cst_25 : f32 to vector<8x32xf32>
    %30 = arith.addf %29, %28 : vector<8x32xf32>
    %31 = arith.divf %29, %30 : vector<8x32xf32>
    %32 = arith.subf %18, %10 : vector<8x32xf32>
    %33 = arith.mulf %31, %32 : vector<8x32xf32>
    %34 = arith.addf %10, %33 : vector<8x32xf32>
    %c0_26 = arith.constant 0 : index
    %c0_27 = arith.constant 0 : index
    %c0_28 = arith.constant 0 : index
    %35 = vector.load %arg12[%c0_26, %c0_27, %c0_28] : memref<1x8x32xf32, #tpu.memory_space<vmem>>, vector<1x8x32xf32>
    %36 = vector.shape_cast %35 : vector<1x8x32xf32> to vector<8x32xf32>
    %37 = vector.shape_cast %34 : vector<8x32xf32> to vector<1x8x32xf32>
    tpu.vector_store %arg12[%c0_26, %c0_27, %c0_28], %37 {strides = array<i32>} : memref<1x8x32xf32, #tpu.memory_space<vmem>>, vector<1x8x32xf32>,
    return
  }
  func.func @transform_0(%arg0: i32, %arg1: i32) -> (i32, i32, i32) {
    %c0_i32 = arith.constant 0 : i32
    %c0_i32_0 = arith.constant 0 : i32
    %c0_i32_1 = arith.constant 0 : i32
    return %arg0, %c0_i32, %c0_i32_0 : i32, i32, i32
  }
  func.func @transform_1(%arg0: i32, %arg1: i32) -> (i32, i32, i32) {
    %c0_i32 = arith.constant 0 : i32
    %c0_i32_0 = arith.constant 0 : i32
    %c0_i32_1 = arith.constant 0 : i32
    return %arg0, %c0_i32, %c0_i32_0 : i32, i32, i32
  }
  func.func @transform_2(%arg0: i32, %arg1: i32) -> (i32, i32) {
    %c0_i32 = arith.constant 0 : i32
    %c0_i32_0 = arith.constant 0 : i32
    return %c0_i32, %arg1 : i32, i32
  }
  func.func @transform_3(%arg0: i32, %arg1: i32) -> (i32, i32) {
    %c0_i32 = arith.constant 0 : i32
    %c0_i32_0 = arith.constant 0 : i32
    return %c0_i32, %arg1 : i32, i32
  }
  func.func @transform_4(%arg0: i32, %arg1: i32) -> (i32, i32) {
    %c0_i32 = arith.constant 0 : i32
    %c0_i32_0 = arith.constant 0 : i32
    return %c0_i32, %arg1 : i32, i32
  }
  func.func @transform_5(%arg0: i32, %arg1: i32) -> (i32, i32) {
    %c0_i32 = arith.constant 0 : i32
    %c0_i32_0 = arith.constant 0 : i32
    return %c0_i32, %arg1 : i32, i32
  }
  func.func @transform_6(%arg0: i32, %arg1: i32) -> (i32, i32) {
    %c0_i32 = arith.constant 0 : i32
    %c0_i32_0 = arith.constant 0 : i32
    return %c0_i32, %arg1 : i32, i32
  }
  func.func @transform_7(%arg0: i32, %arg1: i32) -> (i32, i32) {
    %c0_i32 = arith.constant 0 : i32
    %c0_i32_0 = arith.constant 0 : i32
    return %c0_i32, %arg1 : i32, i32
  }
  func.func @transform_8(%arg0: i32, %arg1: i32) -> (i32, i32) {
    %c0_i32 = arith.constant 0 : i32
    %c0_i32_0 = arith.constant 0 : i32
    return %c0_i32, %arg1 : i32, i32
  }
  func.func @transform_9(%arg0: i32, %arg1: i32) -> (i32, i32) {
    %c0_i32 = arith.constant 0 : i32
    %c0_i32_0 = arith.constant 0 : i32
    return %c0_i32, %arg1 : i32, i32
  }
  func.func @transform_10(%arg0: i32, %arg1: i32) -> (i32, i32, i32) {
    %c0_i32 = arith.constant 0 : i32
    %c0_i32_0 = arith.constant 0 : i32
    return %arg0, %c0_i32, %arg1 : i32, i32, i32
  }
}

</mosaic_0001>

<llo_original>
// kernel: knowledge_seq2seq_forward.5
$region0: #{knowledge_seq2seq_forward.5}
  #allocation0 [shape = 'u32[]', space=smem, size = 0x4, offset = 0x4, fixed_abs, tag = 'smem constant byte address 0x4 - core index']
  #allocation1 [shape = 'u32[144,128]{1,0:T(1,128)}', space=vmem, size = 0x12000, scoped, tag = 'internal scratch']
  %s0 = inlined_call_operand.vmem [shape: f32[2,8,32], index: 0, kind: input, shape index: {}]
  %s1 = inlined_call_operand.vmem [shape: f32[2,8,16], index: 1, kind: input, shape index: {}]
  %s2 = inlined_call_operand.vmem [shape: bf16[32,32], index: 2, kind: input, shape index: {}]
  %s3 = inlined_call_operand.vmem [shape: f32[1,32], index: 3, kind: input, shape index: {}]
  %s4 = inlined_call_operand.vmem [shape: bf16[32,32], index: 4, kind: input, shape index: {}]
  %s5 = inlined_call_operand.vmem [shape: bf16[16,32], index: 5, kind: input, shape index: {}]
  %s6 = inlined_call_operand.vmem [shape: f32[1,32], index: 6, kind: input, shape index: {}]
  %s7 = inlined_call_operand.vmem [shape: bf16[32,32], index: 7, kind: input, shape index: {}]
  %s8 = inlined_call_operand.vmem [shape: bf16[16,32], index: 8, kind: input, shape index: {}]
  %s9 = inlined_call_operand.vmem [shape: f32[1,32], index: 9, kind: input, shape index: {}]
  %s10 = inlined_call_operand.hbm [shape: f32[2,8,32], index: 10, kind: output, shape index: {}]
  %s11 = sld [smem:[#allocation0]]
  $region73: #{knowledge_seq2seq_forward.5} parent=0
    _
  %s13 = ssub.s32 1, %s11
  %s14 = scalar_select 0, %s13, %s11
  $region1: #{knowledge_seq2seq_forward.5} parent=0
    #allocation2 [shape = 'u8[8192]{0}', space=vmem, size = 0x2000, scoped, tag = 'output window, operand 0']
    #allocation3 [shape = 's32[2]{0}', space=sflag, size = 0x8, scoped, tag = 'scoped memory for knowledge_seq2seq_forward.5']
    %15 = vsyncpa [#allocation3], 0
    %s16 = scalar_lea.sflag [#allocation3], 1
    %17 = vsyncpa %s16, 0
    loop: start=0, step=1, limit=4
    $region2: #{knowledge_seq2seq_forward.5} parent=1 // loop_pre_header
      _
    $region3: #{knowledge_seq2seq_forward.5} parent=1 // loop_header
      %s19 = sphi 0, %s23
      %p20 = scmp.ge.s32.totalorder %s19, 4
      %s26 = sphi 0, %s38
      %s27 = sphi 0, %s34
      %s28 = sphi 0, %s26
      %s29 = sphi 0, %s27
      %s30 = sphi 0, %s28
      %s31 = sphi 0, %s29
      %s41 = sphi 0, %s43
      %s44 = sphi 0, %s41
      %s45 = sphi 0, %s44
      %s61 = sphi 0, %s45
      %s67 = sphi 0, %s69
      %s70 = sphi 0, %s67
      %s71 = sphi 0, %s70
      %s87 = sphi 0, %s71
      %s93 = sphi 0, %s95
      %s96 = sphi 0, %s93
      %s97 = sphi 0, %s96
      %s113 = sphi 0, %s97
      %s119 = sphi 0, %s121
      %s122 = sphi 0, %s119
      %s123 = sphi 0, %s122
      %s139 = sphi 0, %s123
      %s145 = sphi 0, %s147
      %s148 = sphi 0, %s145
      %s149 = sphi 0, %s148
      %s165 = sphi 0, %s149
      %s171 = sphi 0, %s173
      %s174 = sphi 0, %s171
      %s175 = sphi 0, %s174
      %s191 = sphi 0, %s175
      %s197 = sphi 0, %s199
      %s200 = sphi 0, %s197
      %s201 = sphi 0, %s200
      %s217 = sphi 0, %s201
      %s223 = sphi 0, %s225
      %s226 = sphi 0, %s223
      %s227 = sphi 0, %s226
      %s243 = sphi 0, %s227
      %s249 = sphi 0, %s251
      %s252 = sphi 0, %s249
      %s253 = sphi 0, %s252
      %s269 = sphi 0, %s253
      %s275 = sphi 0, %s277
      %s278 = sphi 0, %s275
      %s279 = sphi 0, %s278
      %s295 = sphi 0, %s279
      %s303 = sphi 0, %s305
      %s306 = sphi 0, %s303
      %s307 = sphi 0, %s306
      %s323 = sphi 0, %s307
    $region4: #{knowledge_seq2seq_forward.5} parent=1 // loop_header_branch
      %22 = sbr.rel (%p20) target = $region8
    $region5: #{knowledge_seq2seq_forward.5} parent=1 // loop_body
      %s24 = ssub.s32 %s19, 1
      %s25 = ssub.s32 %s19, 2
      %s32 = sadd.s32 1, %s27
      %p33 = scmp.ge.s32.totalorder %s32, 1
      %s34 = scalar_select %p33, 0, %s32
      %s35 = sadd.s32 1, %s26
      %s36 = scalar_select %p33, %s35, %s26
      %p37 = scmp.ge.s32.totalorder %s36, 2
      %s38 = scalar_select %p37, 0, %s36
      %s39 = ssub.s32 %s26, %s38
      %p40 = scmp.eq.s32.totalorder %s39, 0
      %s42 = sadd.s32 %s41, 1
      %s43 = scalar_select %p40, %s41, %s42
      %p46 = pneg %p40
      %p47 = scmp.eq.s32.totalorder %s19, 1
      %p48 = por %p46, %p47
      %p49 = scmp.ne.s32.totalorder %s41, %s44
      %p50 = scmp.eq.s32.totalorder %s19, 0
      %p51 = por %p49, %p50
      %p52 = scmp.ne.s32.totalorder %s41, %s44
      %p53 = scmp.eq.s32.totalorder %s24, 1
      %p54 = por %p52, %p53
      %p55 = scmp.ne.s32.totalorder %s44, %s45
      %p56 = scmp.eq.s32.totalorder %s24, 0
      %p57 = por %p55, %p56
      %p58 = scmp.ne.s32.totalorder %s44, %s45
      %p59 = scmp.eq.s32.totalorder %s25, 1
      %p60 = por %p58, %p59
      %p62 = scmp.ne.s32.totalorder %s45, %s61
      %p63 = scmp.eq.s32.totalorder %s25, 0
      %p64 = por %p62, %p63
      %s65 = ssub.s32 %s26, %s38
      %p66 = scmp.eq.s32.totalorder %s65, 0
      %s68 = sadd.s32 %s67, 1
      %s69 = scalar_select %p66, %s67, %s68
      %p72 = pneg %p66
      %p73 = scmp.eq.s32.totalorder %s19, 1
      %p74 = por %p72, %p73
      %p75 = scmp.ne.s32.totalorder %s67, %s70
      %p76 = scmp.eq.s32.totalorder %s19, 0
      %p77 = por %p75, %p76
      %p78 = scmp.ne.s32.totalorder %s67, %s70
      %p79 = scmp.eq.s32.totalorder %s24, 1
      %p80 = por %p78, %p79
      %p81 = scmp.ne.s32.totalorder %s70, %s71
      %p82 = scmp.eq.s32.totalorder %s24, 0
      %p83 = por %p81, %p82
      %p84 = scmp.ne.s32.totalorder %s70, %s71
      %p85 = scmp.eq.s32.totalorder %s25, 1
      %p86 = por %p84, %p85
      %p88 = scmp.ne.s32.totalorder %s71, %s87
      %p89 = scmp.eq.s32.totalorder %s25, 0
      %p90 = por %p88, %p89
      %s91 = ssub.s32 %s27, %s34
      %p92 = scmp.eq.s32.totalorder %s91, 0
      %s94 = sadd.s32 %s93, 1
      %s95 = scalar_select %p92, %s93, %s94
      %p98 = pneg %p92
      %p99 = scmp.eq.s32.totalorder %s19, 1
      %p100 = por %p98, %p99
      %p101 = scmp.ne.s32.totalorder %s93, %s96
      %p102 = scmp.eq.s32.totalorder %s19, 0
      %p103 = por %p101, %p102
      %p104 = scmp.ne.s32.totalorder %s93, %s96
      %p105 = scmp.eq.s32.totalorder %s24, 1
      %p106 = por %p104, %p105
      %p107 = scmp.ne.s32.totalorder %s96, %s97
      %p108 = scmp.eq.s32.totalorder %s24, 0
      %p109 = por %p107, %p108
      %p110 = scmp.ne.s32.totalorder %s96, %s97
      %p111 = scmp.eq.s32.totalorder %s25, 1
      %p112 = por %p110, %p111
      %p114 = scmp.ne.s32.totalorder %s97, %s113
      %p115 = scmp.eq.s32.totalorder %s25, 0
      %p116 = por %p114, %p115
      %s117 = ssub.s32 %s27, %s34
      %p118 = scmp.eq.s32.totalorder %s117, 0
      %s120 = sadd.s32 %s119, 1
      %s121 = scalar_select %p118, %s119, %s120
      %p124 = pneg %p118
      %p125 = scmp.eq.s32.totalorder %s19, 1
      %p126 = por %p124, %p125
      %p127 = scmp.ne.s32.totalorder %s119, %s122
      %p128 = scmp.eq.s32.totalorder %s19, 0
      %p129 = por %p127, %p128
      %p130 = scmp.ne.s32.totalorder %s119, %s122
      %p131 = scmp.eq.s32.totalorder %s24, 1
      %p132 = por %p130, %p131
      %p133 = scmp.ne.s32.totalorder %s122, %s123
      %p134 = scmp.eq.s32.totalorder %s24, 0
      %p135 = por %p133, %p134
      %p136 = scmp.ne.s32.totalorder %s122, %s123
      %p137 = scmp.eq.s32.totalorder %s25, 1
      %p138 = por %p136, %p137
      %p140 = scmp.ne.s32.totalorder %s123, %s139
      %p141 = scmp.eq.s32.totalorder %s25, 0
      %p142 = por %p140, %p141
      %s143 = ssub.s32 %s27, %s34
      %p144 = scmp.eq.s32.totalorder %s143, 0
      %s146 = sadd.s32 %s145, 1
      %s147 = scalar_select %p144, %s145, %s146
      %p150 = pneg %p144
      %p151 = scmp.eq.s32.totalorder %s19, 1
      %p152 = por %p150, %p151
      %p153 = scmp.ne.s32.totalorder %s145, %s148
      %p154 = scmp.eq.s32.totalorder %s19, 0
      %p155 = por %p153, %p154
      %p156 = scmp.ne.s32.totalorder %s145, %s148
      %p157 = scmp.eq.s32.totalorder %s24, 1
      %p158 = por %p156, %p157
      %p159 = scmp.ne.s32.totalorder %s148, %s149
      %p160 = scmp.eq.s32.totalorder %s24, 0
      %p161 = por %p159, %p160
      %p162 = scmp.ne.s32.totalorder %s148, %s149
      %p163 = scmp.eq.s32.totalorder %s25, 1
      %p164 = por %p162, %p163
      %p166 = scmp.ne.s32.totalorder %s149, %s165
      %p167 = scmp.eq.s32.totalorder %s25, 0
      %p168 = por %p166, %p167
      %s169 = ssub.s32 %s27, %s34
      %p170 = scmp.eq.s32.totalorder %s169, 0
      %s172 = sadd.s32 %s171, 1
      %s173 = scalar_select %p170, %s171, %s172
      %p176 = pneg %p170
      %p177 = scmp.eq.s32.totalorder %s19, 1
      %p178 = por %p176, %p177
      %p179 = scmp.ne.s32.totalorder %s171, %s174
      %p180 = scmp.eq.s32.totalorder %s19, 0
      %p181 = por %p179, %p180
      %p182 = scmp.ne.s32.totalorder %s171, %s174
      %p183 = scmp.eq.s32.totalorder %s24, 1
      %p184 = por %p182, %p183
      %p185 = scmp.ne.s32.totalorder %s174, %s175
      %p186 = scmp.eq.s32.totalorder %s24, 0
      %p187 = por %p185, %p186
      %p188 = scmp.ne.s32.totalorder %s174, %s175
      %p189 = scmp.eq.s32.totalorder %s25, 1
      %p190 = por %p188, %p189
      %p192 = scmp.ne.s32.totalorder %s175, %s191
      %p193 = scmp.eq.s32.totalorder %s25, 0
      %p194 = por %p192, %p193
      %s195 = ssub.s32 %s27, %s34
      %p196 = scmp.eq.s32.totalorder %s195, 0
      %s198 = sadd.s32 %s197, 1
      %s199 = scalar_select %p196, %s197, %s198
      %p202 = pneg %p196
      %p203 = scmp.eq.s32.totalorder %s19, 1
      %p204 = por %p202, %p203
      %p205 = scmp.ne.s32.totalorder %s197, %s200
      %p206 = scmp.eq.s32.totalorder %s19, 0
      %p207 = por %p205, %p206
      %p208 = scmp.ne.s32.totalorder %s197, %s200
      %p209 = scmp.eq.s32.totalorder %s24, 1
      %p210 = por %p208, %p209
      %p211 = scmp.ne.s32.totalorder %s200, %s201
      %p212 = scmp.eq.s32.totalorder %s24, 0
      %p213 = por %p211, %p212
      %p214 = scmp.ne.s32.totalorder %s200, %s201
      %p215 = scmp.eq.s32.totalorder %s25, 1
      %p216 = por %p214, %p215
      %p218 = scmp.ne.s32.totalorder %s201, %s217
      %p219 = scmp.eq.s32.totalorder %s25, 0
      %p220 = por %p218, %p219
      %s221 = ssub.s32 %s27, %s34
      %p222 = scmp.eq.s32.totalorder %s221, 0
      %s224 = sadd.s32 %s223, 1
      %s225 = scalar_select %p222, %s223, %s224
      %p228 = pneg %p222
      %p229 = scmp.eq.s32.totalorder %s19, 1
      %p230 = por %p228, %p229
      %p231 = scmp.ne.s32.totalorder %s223, %s226
      %p232 = scmp.eq.s32.totalorder %s19, 0
      %p233 = por %p231, %p232
      %p234 = scmp.ne.s32.totalorder %s223, %s226
      %p235 = scmp.eq.s32.totalorder %s24, 1
      %p236 = por %p234, %p235
      %p237 = scmp.ne.s32.totalorder %s226, %s227
      %p238 = scmp.eq.s32.totalorder %s24, 0
      %p239 = por %p237, %p238
      %p240 = scmp.ne.s32.totalorder %s226, %s227
      %p241 = scmp.eq.s32.totalorder %s25, 1
      %p242 = por %p240, %p241
      %p244 = scmp.ne.s32.totalorder %s227, %s243
      %p245 = scmp.eq.s32.totalorder %s25, 0
      %p246 = por %p244, %p245
      %s247 = ssub.s32 %s27, %s34
      %p248 = scmp.eq.s32.totalorder %s247, 0
      %s250 = sadd.s32 %s249, 1
      %s251 = scalar_select %p248, %s249, %s250
      %p254 = pneg %p248
      %p255 = scmp.eq.s32.totalorder %s19, 1
      %p256 = por %p254, %p255
      %p257 = scmp.ne.s32.totalorder %s249, %s252
      %p258 = scmp.eq.s32.totalorder %s19, 0
      %p259 = por %p257, %p258
      %p260 = scmp.ne.s32.totalorder %s249, %s252
      %p261 = scmp.eq.s32.totalorder %s24, 1
      %p262 = por %p260, %p261
      %p263 = scmp.ne.s32.totalorder %s252, %s253
      %p264 = scmp.eq.s32.totalorder %s24, 0
      %p265 = por %p263, %p264
      %p266 = scmp.ne.s32.totalorder %s252, %s253
      %p267 = scmp.eq.s32.totalorder %s25, 1
      %p268 = por %p266, %p267
      %p270 = scmp.ne.s32.totalorder %s253, %s269
      %p271 = scmp.eq.s32.totalorder %s25, 0
      %p272 = por %p270, %p271
      %s273 = ssub.s32 %s27, %s34
      %p274 = scmp.eq.s32.totalorder %s273, 0
      %s276 = sadd.s32 %s275, 1
      %s277 = scalar_select %p274, %s275, %s276
      %p280 = pneg %p274
      %p281 = scmp.eq.s32.totalorder %s19, 1
      %p282 = por %p280, %p281
      %p283 = scmp.ne.s32.totalorder %s275, %s278
      %p284 = scmp.eq.s32.totalorder %s19, 0
      %p285 = por %p283, %p284
      %p286 = scmp.ne.s32.totalorder %s275, %s278
      %p287 = scmp.eq.s32.totalorder %s24, 1
      %p288 = por %p286, %p287
      %p289 = scmp.ne.s32.totalorder %s278, %s279
      %p290 = scmp.eq.s32.totalorder %s24, 0
      %p291 = por %p289, %p290
      %p292 = scmp.ne.s32.totalorder %s278, %s279
      %p293 = scmp.eq.s32.totalorder %s25, 1
      %p294 = por %p292, %p293
      %p296 = scmp.ne.s32.totalorder %s279, %s295
      %p297 = scmp.eq.s32.totalorder %s25, 0
      %p298 = por %p296, %p297
      %s299 = ssub.s32 %s26, %s38
      %s300 = ssub.s32 %s27, %s34
      %s301 = sor.u32 %s299, %s300
      %p302 = scmp.eq.s32.totalorder %s301, 0
      %s304 = sadd.s32 %s303, 1
      %s305 = scalar_select %p302, %s303, %s304
      %p308 = pneg %p302
      %p309 = scmp.eq.s32.totalorder %s19, 1
      %p310 = por %p308, %p309
      %p311 = scmp.ne.s32.totalorder %s303, %s306
      %p312 = scmp.eq.s32.totalorder %s19, 0
      %p313 = por %p311, %p312
      %p314 = scmp.ne.s32.totalorder %s303, %s306
      %p315 = scmp.eq.s32.totalorder %s24, 1
      %p316 = por %p314, %p315
      %p317 = scmp.ne.s32.totalorder %s306, %s307
      %p318 = scmp.eq.s32.totalorder %s24, 0
      %p319 = por %p317, %p318
      %p320 = scmp.ne.s32.totalorder %s306, %s307
      %p321 = scmp.eq.s32.totalorder %s25, 1
      %p322 = por %p320, %p321
      %p324 = scmp.ne.s32.totalorder %s307, %s323
      %p325 = scmp.eq.s32.totalorder %s25, 0
      %p326 = por %p324, %p325
      %p327 = scmp.le.s32.totalorder 1, %s19
      %p328 = scmp.lt.s32.totalorder %s19, 3
      %p329 = pnand %p327, %p328
      %p330 = pneg %p329
      // Predicated region
      $region9: #{knowledge_seq2seq_forward.5} parent=5 // pred_check
        _
      $region10: #{knowledge_seq2seq_forward.5} parent=5 // pred_check_branch
        %332 = sbr.rel (%p329) target = $region12
      $region11: #{knowledge_seq2seq_forward.5} parent=5 // pred_region
        %s333 = ssub.s32 %s19, 1
        // Predicated region
        $region13: #{knowledge_seq2seq_forward.5} parent=11 // pred_check
          %p334 = pneg %p109
        $region14: #{knowledge_seq2seq_forward.5} parent=11 // pred_check_branch
          %336 = sbr.rel (%p334) target = $region16
        $region15: #{knowledge_seq2seq_forward.5} parent=11 // pred_region
          %p337 = scmp.lt.s32.totalorder %s29, 0
          %s338 = scalar_select %p337, %s29, 0
          %s339 = smul.addr %s338, 4
          %s340 = scalar_lea.vmem %s2, %s339
        $region16: #{knowledge_seq2seq_forward.5} parent=11 // pred_fallthru
          _
        // Predicated region
        $region17: #{knowledge_seq2seq_forward.5} parent=11 // pred_check
          %p341 = pneg %p135
        $region18: #{knowledge_seq2seq_forward.5} parent=11 // pred_check_branch
          %343 = sbr.rel (%p341) target = $region20
        $region19: #{knowledge_seq2seq_forward.5} parent=11 // pred_region
          %p344 = scmp.lt.s32.totalorder %s29, 0
          %s345 = scalar_select %p344, %s29, 0
          %s346 = scalar_lea.vmem %s3, %s345
        $region20: #{knowledge_seq2seq_forward.5} parent=11 // pred_fallthru
          _
        // Predicated region
        $region21: #{knowledge_seq2seq_forward.5} parent=11 // pred_check
          %p347 = pneg %p161
        $region22: #{knowledge_seq2seq_forward.5} parent=11 // pred_check_branch
          %349 = sbr.rel (%p347) target = $region24
        $region23: #{knowledge_seq2seq_forward.5} parent=11 // pred_region
          %p350 = scmp.lt.s32.totalorder %s29, 0
          %s351 = scalar_select %p350, %s29, 0
          %s352 = smul.addr %s351, 4
          %s353 = scalar_lea.vmem %s4, %s352
        $region24: #{knowledge_seq2seq_forward.5} parent=11 // pred_fallthru
          _
        // Predicated region
        $region25: #{knowledge_seq2seq_forward.5} parent=11 // pred_check
          %p354 = pneg %p187
        $region26: #{knowledge_seq2seq_forward.5} parent=11 // pred_check_branch
          %356 = sbr.rel (%p354) target = $region28
        $region27: #{knowledge_seq2seq_forward.5} parent=11 // pred_region
          %p357 = scmp.lt.s32.totalorder %s29, 0
          %s358 = scalar_select %p357, %s29, 0
          %s359 = smul.addr %s358, 4
          %s360 = scalar_lea.vmem %s5, %s359
        $region28: #{knowledge_seq2seq_forward.5} parent=11 // pred_fallthru
          _
        // Predicated region
        $region29: #{knowledge_seq2seq_forward.5} parent=11 // pred_check
          %p361 = pneg %p213
        $region30: #{knowledge_seq2seq_forward.5} parent=11 // pred_check_branch
          %363 = sbr.rel (%p361) target = $region32
        $region31: #{knowledge_seq2seq_forward.5} parent=11 // pred_region
          %p364 = scmp.lt.s32.totalorder %s29, 0
          %s365 = scalar_select %p364, %s29, 0
          %s366 = scalar_lea.vmem %s6, %s365
        $region32: #{knowledge_seq2seq_forward.5} parent=11 // pred_fallthru
          _
        // Predicated region
        $region33: #{knowledge_seq2seq_forward.5} parent=11 // pred_check
          %p367 = pneg %p239
        $region34: #{knowledge_seq2seq_forward.5} parent=11 // pred_check_branch
          %369 = sbr.rel (%p367) target = $region36
        $region35: #{knowledge_seq2seq_forward.5} parent=11 // pred_region
          %p370 = scmp.lt.s32.totalorder %s29, 0
          %s371 = scalar_select %p370, %s29, 0
          %s372 = smul.addr %s371, 4
          %s373 = scalar_lea.vmem %s7, %s372
        $region36: #{knowledge_seq2seq_forward.5} parent=11 // pred_fallthru
          _
        // Predicated region
        $region37: #{knowledge_seq2seq_forward.5} parent=11 // pred_check
          %p374 = pneg %p265
        $region38: #{knowledge_seq2seq_forward.5} parent=11 // pred_check_branch
          %376 = sbr.rel (%p374) target = $region40
        $region39: #{knowledge_seq2seq_forward.5} parent=11 // pred_region
          %p377 = scmp.lt.s32.totalorder %s29, 0
          %s378 = scalar_select %p377, %s29, 0
          %s379 = smul.addr %s378, 4
          %s380 = scalar_lea.vmem %s8, %s379
        $region40: #{knowledge_seq2seq_forward.5} parent=11 // pred_fallthru
          _
        // Predicated region
        $region41: #{knowledge_seq2seq_forward.5} parent=11 // pred_check
          %p381 = pneg %p291
        $region42: #{knowledge_seq2seq_forward.5} parent=11 // pred_check_branch
          %383 = sbr.rel (%p381) target = $region44
        $region43: #{knowledge_seq2seq_forward.5} parent=11 // pred_region
          %p384 = scmp.lt.s32.totalorder %s29, 0
          %s385 = scalar_select %p384, %s29, 0
          %s386 = scalar_lea.vmem %s9, %s385
        $region44: #{knowledge_seq2seq_forward.5} parent=11 // pred_fallthru
          _
      $region12: #{knowledge_seq2seq_forward.5} parent=5 // pred_fallthru
        _
      %p387 = scmp.lt.s32.totalorder %s19, 2
      // Predicated region
      $region45: #{knowledge_seq2seq_forward.5} parent=5 // pred_check
        %p388 = pneg %p387
      $region46: #{knowledge_seq2seq_forward.5} parent=5 // pred_check_branch
        %390 = sbr.rel (%p388) target = $region48
      $region47: #{knowledge_seq2seq_forward.5} parent=5 // pred_region
        // Predicated region
        $region49: #{knowledge_seq2seq_forward.5} parent=47 // pred_check
          %p391 = pneg %p51
        $region50: #{knowledge_seq2seq_forward.5} parent=47 // pred_check_branch
          %393 = sbr.rel (%p391) target = $region52
        $region51: #{knowledge_seq2seq_forward.5} parent=47 // pred_region
          %p394 = scmp.lt.s32.totalorder %s26, 1
          %s395 = scalar_select %p394, %s26, 1
          %s396 = smul.addr %s395, 8
          %s397 = scalar_lea.vmem %s0, %s396
        $region52: #{knowledge_seq2seq_forward.5} parent=47 // pred_fallthru
          _
        // Predicated region
        $region53: #{knowledge_seq2seq_forward.5} parent=47 // pred_check
          %p398 = pneg %p77
        $region54: #{knowledge_seq2seq_forward.5} parent=47 // pred_check_branch
          %400 = sbr.rel (%p398) target = $region56
        $region55: #{knowledge_seq2seq_forward.5} parent=47 // pred_region
          %p401 = scmp.lt.s32.totalorder %s26, 1
          %s402 = scalar_select %p401, %s26, 1
          %s403 = smul.addr %s402, 8
          %s404 = scalar_lea.vmem %s1, %s403
        $region56: #{knowledge_seq2seq_forward.5} parent=47 // pred_fallthru
          _
      $region48: #{knowledge_seq2seq_forward.5} parent=5 // pred_fallthru
        _
      %p405 = scmp.le.s32.totalorder 1, %s19
      %p406 = scmp.lt.s32.totalorder %s19, 3
      %p407 = pnand %p405, %p406
      %p408 = pneg %p407
      // Predicated region
      $region57: #{knowledge_seq2seq_forward.5} parent=5 // pred_check
        _
      $region58: #{knowledge_seq2seq_forward.5} parent=5 // pred_check_branch
        %410 = sbr.rel (%p407) target = $region60
      $region59: #{knowledge_seq2seq_forward.5} parent=5 // pred_region
        %s411 = ssub.s32 %s19, 1
        %p412 = scmp.lt.s32.totalorder %s28, 1
        %s413 = scalar_select %p412, %s28, 1
        %s414 = smul.addr %s413, 8
        %s415 = scalar_lea.vmem %s0, %s414
        %p416 = pneg %p57
        %p417 = pneg %p54
        %p418 = scmp.lt.s32.totalorder %s28, 1
        %s419 = scalar_select %p418, %s28, 1
        %s420 = smul.addr %s419, 8
        %s421 = scalar_lea.vmem %s1, %s420
        %p422 = pneg %p83
        %p423 = pneg %p80
        %p424 = scmp.lt.s32.totalorder %s29, 0
        %s425 = scalar_select %p424, %s29, 0
        %s426 = smul.addr %s425, 4
        %s427 = scalar_lea.vmem %s2, %s426
        %p428 = pneg %p109
        %p429 = pneg %p106
        %p430 = scmp.lt.s32.totalorder %s29, 0
        %s431 = scalar_select %p430, %s29, 0
        %s432 = scalar_lea.vmem %s3, %s431
        %p433 = pneg %p135
        %p434 = pneg %p132
        %p435 = scmp.lt.s32.totalorder %s29, 0
        %s436 = scalar_select %p435, %s29, 0
        %s437 = smul.addr %s436, 4
        %s438 = scalar_lea.vmem %s4, %s437
        %p439 = pneg %p161
        %p440 = pneg %p158
        %p441 = scmp.lt.s32.totalorder %s29, 0
        %s442 = scalar_select %p441, %s29, 0
        %s443 = smul.addr %s442, 4
        %s444 = scalar_lea.vmem %s5, %s443
        %p445 = pneg %p187
        %p446 = pneg %p184
        %p447 = scmp.lt.s32.totalorder %s29, 0
        %s448 = scalar_select %p447, %s29, 0
        %s449 = scalar_lea.vmem %s6, %s448
        %p450 = pneg %p213
        %p451 = pneg %p210
        %p452 = scmp.lt.s32.totalorder %s29, 0
        %s453 = scalar_select %p452, %s29, 0
        %s454 = smul.addr %s453, 4
        %s455 = scalar_lea.vmem %s7, %s454
        %p456 = pneg %p239
        %p457 = pneg %p236
        %p458 = scmp.lt.s32.totalorder %s29, 0
        %s459 = scalar_select %p458, %s29, 0
        %s460 = smul.addr %s459, 4
        %s461 = scalar_lea.vmem %s8, %s460
        %p462 = pneg %p265
        %p463 = pneg %p262
        %p464 = scmp.lt.s32.totalorder %s29, 0
        %s465 = scalar_select %p464, %s29, 0
        %s466 = scalar_lea.vmem %s9, %s465
        %p467 = pneg %p291
        %p468 = pneg %p288
        %p469 = pneg %p319
        %p470 = pneg %p316
        %s471 = sand.u32 %s306, 1
        %s472 = scalar_lea.sflag [#allocation3], %s471
        %s473 = sand.u32 %s306, 1
        %s474 = smul.addr %s473, 8
        %s475 = scalar_lea.vmem [#allocation2], %s474
        %p476 = scmp.lt.s32.totalorder %s28, 1
        %s477 = scalar_select %p476, %s28, 1
        %s478 = smul.addr %s477, 8
        %s479 = scalar_lea.vmem %s0, %s478
        %p480 = scmp.lt.s32.totalorder %s28, 1
        %s481 = scalar_select %p480, %s28, 1
        %s482 = smul.addr %s481, 8
        %s483 = scalar_lea.vmem %s1, %s482
        %p484 = scmp.lt.s32.totalorder %s29, 0
        %s485 = scalar_select %p484, %s29, 0
        %s486 = smul.addr %s485, 4
        %s487 = scalar_lea.vmem %s2, %s486
        %p488 = scmp.lt.s32.totalorder %s29, 0
        %s489 = scalar_select %p488, %s29, 0
        %s490 = scalar_lea.vmem %s3, %s489
        %p491 = scmp.lt.s32.totalorder %s29, 0
        %s492 = scalar_select %p491, %s29, 0
        %s493 = smul.addr %s492, 4
        %s494 = scalar_lea.vmem %s4, %s493
        %p495 = scmp.lt.s32.totalorder %s29, 0
        %s496 = scalar_select %p495, %s29, 0
        %s497 = smul.addr %s496, 4
        %s498 = scalar_lea.vmem %s5, %s497
        %p499 = scmp.lt.s32.totalorder %s29, 0
        %s500 = scalar_select %p499, %s29, 0
        %s501 = scalar_lea.vmem %s6, %s500
        %p502 = scmp.lt.s32.totalorder %s29, 0
        %s503 = scalar_select %p502, %s29, 0
        %s504 = smul.addr %s503, 4
        %s505 = scalar_lea.vmem %s7, %s504
        %p506 = scmp.lt.s32.totalorder %s29, 0
        %s507 = scalar_select %p506, %s29, 0
        %s508 = smul.addr %s507, 4
        %s509 = scalar_lea.vmem %s8, %s508
        %p510 = scmp.lt.s32.totalorder %s29, 0
        %s511 = scalar_select %p510, %s29, 0
        %s512 = scalar_lea.vmem %s9, %s511
        %v514 = vld [vmem:[%s479] sm:$0xff]
        %v515 = vpack.c.bf16 %v514, %v514
        %v516 = vld [vmem:[%s483] sm:$0xff]
        %v517 = vpack.c.bf16 %v516, %v516
        %v518 = vld [vmem:[%s487] sm:$0xf]
        %v519 = vld [vmem:[%s487 + $0x4] sm:$0xf]
        %v520 = vld [vmem:[%s487 + $0x8] sm:$0xf]
        %v521 = vld [vmem:[%s487 + $0xc] sm:$0xf]
        %v522 = vld [vmem:[%s490] sm:$0x1]
        %v524 = vlaneseq
        %v525 = vshrl.u32 %v524, 7
        %v526 = vsub.s32 0, %v525
        %v527 = vrot.slane %v522, %v526
        %v533 = vunpack.c.l.b16 %v518
        %v534 = vunpack.c.l.b16 %v519
        %v535 = vunpack.c.l.b16 %v520
        %v536 = vunpack.c.l.b16 %v521
        %v537 = vpack.c.b16 %v534, %v533
        %v538 = vpack.c.b16 %v536, %v535
        %vm541 = vcmask 261120
        %v543 = vsel %vm541, %v515, 0
        %545 = vmatprep.subr.bf16.mxu0 0
        %546 = vmatpush1.bf16.msra.mxu0 %v537
        %547 = vmatprep.subr.bf16.mxu0 0
        %548 = vmatpush1.bf16.msra.mxu0 %v538
        %549 = vmatprep.subr.bf16.mxu0 0
        %550 = vmatpush1.bf16.msra.mxu0 0
        %551 = vmatprep.subr.bf16.mxu0 0
        %552 = vmatpush1.bf16.msra.mxu0 0
        %553 = vmatprep.subr.bf16.mxu0 0
        %554 = vmatpush1.bf16.msra.mxu0 0
        %555 = vmatprep.subr.bf16.mxu0 0
        %556 = vmatpush1.bf16.msra.mxu0 0
        %557 = vmatprep.subr.bf16.mxu0 0
        %558 = vmatpush1.bf16.msra.mxu0 0
        %559 = vmatprep.subr.bf16.mxu0 0
        %560 = vmatpush1.bf16.msra.mxu0 0
        %561 = vmatprep.subr.bf16.mxu0 0
        %562 = vmatpush1.bf16.msra.mxu0 0
        %563 = vmatprep.subr.bf16.mxu0 0
        %564 = vmatpush1.bf16.msra.mxu0 0
        %565 = vmatprep.subr.bf16.mxu0 0
        %566 = vmatpush1.bf16.msra.mxu0 0
        %567 = vmatprep.subr.bf16.mxu0 0
        %568 = vmatpush1.bf16.msra.mxu0 0
        %569 = vmatprep.subr.bf16.mxu0 0
        %570 = vmatpush1.bf16.msra.mxu0 0
        %571 = vmatprep.subr.bf16.mxu0 0
        %572 = vmatpush1.bf16.msra.mxu0 0
        %573 = vmatprep.subr.bf16.mxu0 0
        %574 = vmatpush1.bf16.msra.mxu0 0
        %575 = vmatprep.subr.bf16.mxu0 0
        %576 = vmatpush1.bf16.msra.mxu0 0
        %577 = vmatprep.mubr.bf16.mxu0 0
        %578 = vmatmul.mubr.bf16.gmra.mrb[0].mxu0 %v543
        %v579 = vpop.f32.mrb[0].mxu0
        %v580 = vadd.f32 %v527, %v579
        %v581 = vpop.f32.mrb[0].mxu0
        %v582 = vpop.f32.mrb[0].mxu0
        %v583 = vpop.f32.mrb[0].mxu0
        %584 = vdwg.mxu0
        %v585 = vld [vmem:[%s494] sm:$0xf]
        %v586 = vld [vmem:[%s494 + $0x4] sm:$0xf]
        %v587 = vld [vmem:[%s494 + $0x8] sm:$0xf]
        %v588 = vld [vmem:[%s494 + $0xc] sm:$0xf]
        %v589 = vld [vmem:[%s498] sm:$0xf]
        %v590 = vld [vmem:[%s498 + $0x4] sm:$0xf]
        %v593 = vunpack.c.l.b16 %v589
        %v594 = vunpack.c.l.b16 %v590
        %v595 = vpack.c.b16 %v594, %v593
        %vm597 = vcmask 130048
        %v599 = vsel %vm597, %v517, 0
        %601 = vmatprep.subr.bf16.mxu0 0
        %602 = vmatpush1.bf16.msra.mxu0 %v595
        %603 = vmatprep.subr.bf16.mxu0 0
        %604 = vmatpush1.bf16.msra.mxu0 0
        %605 = vmatprep.subr.bf16.mxu0 0
        %606 = vmatpush1.bf16.msra.mxu0 0
        %607 = vmatprep.subr.bf16.mxu0 0
        %608 = vmatpush1.bf16.msra.mxu0 0
        %609 = vmatprep.subr.bf16.mxu0 0
        %610 = vmatpush1.bf16.msra.mxu0 0
        %611 = vmatprep.subr.bf16.mxu0 0
        %612 = vmatpush1.bf16.msra.mxu0 0
        %613 = vmatprep.subr.bf16.mxu0 0
        %614 = vmatpush1.bf16.msra.mxu0 0
        %615 = vmatprep.subr.bf16.mxu0 0
        %616 = vmatpush1.bf16.msra.mxu0 0
        %617 = vmatprep.subr.bf16.mxu0 0
        %618 = vmatpush1.bf16.msra.mxu0 0
        %619 = vmatprep.subr.bf16.mxu0 0
        %620 = vmatpush1.bf16.msra.mxu0 0
        %621 = vmatprep.subr.bf16.mxu0 0
        %622 = vmatpush1.bf16.msra.mxu0 0
        %623 = vmatprep.subr.bf16.mxu0 0
        %624 = vmatpush1.bf16.msra.mxu0 0
        %625 = vmatprep.subr.bf16.mxu0 0
        %626 = vmatpush1.bf16.msra.mxu0 0
        %627 = vmatprep.subr.bf16.mxu0 0
        %628 = vmatpush1.bf16.msra.mxu0 0
        %629 = vmatprep.subr.bf16.mxu0 0
        %630 = vmatpush1.bf16.msra.mxu0 0
        %631 = vmatprep.subr.bf16.mxu0 0
        %632 = vmatpush1.bf16.msra.mxu0 0
        %633 = vmatprep.mubr.bf16.mxu0 0
        %634 = vmatmul.mubr.bf16.gmra.mrb[0].mxu0 %v599
        %v635 = vpop.f32.mrb[0].mxu0
        %v636 = vadd.f32 0.0, %v635
        %v637 = vpop.f32.mrb[0].mxu0
        %v638 = vpop.f32.mrb[0].mxu0
        %v639 = vpop.f32.mrb[0].mxu0
        %640 = vdwg.mxu0
        %v645 = vunpack.c.l.b16 %v585
        %v646 = vunpack.c.l.b16 %v586
        %v647 = vunpack.c.l.b16 %v587
        %v648 = vunpack.c.l.b16 %v588
        %v649 = vpack.c.b16 %v646, %v645
        %v650 = vpack.c.b16 %v648, %v647
        %653 = vmatprep.subr.bf16.mxu0 0
        %654 = vmatpush1.bf16.msra.mxu0 %v649
        %655 = vmatprep.subr.bf16.mxu0 0
        %656 = vmatpush1.bf16.msra.mxu0 %v650
        %657 = vmatprep.subr.bf16.mxu0 0
        %658 = vmatpush1.bf16.msra.mxu0 0
        %659 = vmatprep.subr.bf16.mxu0 0
        %660 = vmatpush1.bf16.msra.mxu0 0
        %661 = vmatprep.subr.bf16.mxu0 0
        %662 = vmatpush1.bf16.msra.mxu0 0
        %663 = vmatprep.subr.bf16.mxu0 0
        %664 = vmatpush1.bf16.msra.mxu0 0
        %665 = vmatprep.subr.bf16.mxu0 0
        %666 = vmatpush1.bf16.msra.mxu0 0
        %667 = vmatprep.subr.bf16.mxu0 0
        %668 = vmatpush1.bf16.msra.mxu0 0
        %669 = vmatprep.subr.bf16.mxu0 0
        %670 = vmatpush1.bf16.msra.mxu0 0
        %671 = vmatprep.subr.bf16.mxu0 0
        %672 = vmatpush1.bf16.msra.mxu0 0
        %673 = vmatprep.subr.bf16.mxu0 0
        %674 = vmatpush1.bf16.msra.mxu0 0
        %675 = vmatprep.subr.bf16.mxu0 0
        %676 = vmatpush1.bf16.msra.mxu0 0
        %677 = vmatprep.subr.bf16.mxu0 0
        %678 = vmatpush1.bf16.msra.mxu0 0
        %679 = vmatprep.subr.bf16.mxu0 0
        %680 = vmatpush1.bf16.msra.mxu0 0
        %681 = vmatprep.subr.bf16.mxu0 0
        %682 = vmatpush1.bf16.msra.mxu0 0
        %683 = vmatprep.subr.bf16.mxu0 0
        %684 = vmatpush1.bf16.msra.mxu0 0
        %685 = vmatprep.mubr.bf16.mxu0 0
        %686 = vmatmul.mubr.bf16.gmra.mrb[0].mxu0 %v543
        %v687 = vpop.f32.mrb[0].mxu0
        %v688 = vadd.f32 %v636, %v687
        %v689 = vpop.f32.mrb[0].mxu0
        %v690 = vpop.f32.mrb[0].mxu0
        %v691 = vpop.f32.mrb[0].mxu0
        %692 = vdwg.mxu0
        %v693 = vld [vmem:[%s501] sm:$0x1]
        %v695 = vlaneseq
        %v696 = vshrl.u32 %v695, 7
        %v697 = vsub.s32 0, %v696
        %v698 = vrot.slane %v693, %v697
        %v700 = vadd.f32 %v688, %v698
        %v701 = vld [vmem:[%s505] sm:$0xf]
        %v702 = vld [vmem:[%s505 + $0x4] sm:$0xf]
        %v703 = vld [vmem:[%s505 + $0x8] sm:$0xf]
        %v704 = vld [vmem:[%s505 + $0xc] sm:$0xf]
        %v705 = vld [vmem:[%s509] sm:$0xf]
        %v706 = vld [vmem:[%s509 + $0x4] sm:$0xf]
        %v709 = vunpack.c.l.b16 %v705
        %v710 = vunpack.c.l.b16 %v706
        %v711 = vpack.c.b16 %v710, %v709
        %713 = vmatprep.subr.bf16.mxu0 0
        %714 = vmatpush1.bf16.msra.mxu0 %v711
        %715 = vmatprep.subr.bf16.mxu0 0
        %716 = vmatpush1.bf16.msra.mxu0 0
        %717 = vmatprep.subr.bf16.mxu0 0
        %718 = vmatpush1.bf16.msra.mxu0 0
        %719 = vmatprep.subr.bf16.mxu0 0
        %720 = vmatpush1.bf16.msra.mxu0 0
        %721 = vmatprep.subr.bf16.mxu0 0
        %722 = vmatpush1.bf16.msra.mxu0 0
        %723 = vmatprep.subr.bf16.mxu0 0
        %724 = vmatpush1.bf16.msra.mxu0 0
        %725 = vmatprep.subr.bf16.mxu0 0
        %726 = vmatpush1.bf16.msra.mxu0 0
        %727 = vmatprep.subr.bf16.mxu0 0
        %728 = vmatpush1.bf16.msra.mxu0 0
        %729 = vmatprep.subr.bf16.mxu0 0
        %730 = vmatpush1.bf16.msra.mxu0 0
        %731 = vmatprep.subr.bf16.mxu0 0
        %732 = vmatpush1.bf16.msra.mxu0 0
        %733 = vmatprep.subr.bf16.mxu0 0
        %734 = vmatpush1.bf16.msra.mxu0 0
        %735 = vmatprep.subr.bf16.mxu0 0
        %736 = vmatpush1.bf16.msra.mxu0 0
        %737 = vmatprep.subr.bf16.mxu0 0
        %738 = vmatpush1.bf16.msra.mxu0 0
        %739 = vmatprep.subr.bf16.mxu0 0
        %740 = vmatpush1.bf16.msra.mxu0 0
        %741 = vmatprep.subr.bf16.mxu0 0
        %742 = vmatpush1.bf16.msra.mxu0 0
        %743 = vmatprep.subr.bf16.mxu0 0
        %744 = vmatpush1.bf16.msra.mxu0 0
        %745 = vmatprep.mubr.bf16.mxu0 0
        %746 = vmatmul.mubr.bf16.gmra.mrb[0].mxu0 %v599
        %v747 = vpop.f32.mrb[0].mxu0
        %v748 = vadd.f32 0.0, %v747
        %v749 = vpop.f32.mrb[0].mxu0
        %v750 = vpop.f32.mrb[0].mxu0
        %v751 = vpop.f32.mrb[0].mxu0
        %752 = vdwg.mxu0
        %v757 = vunpack.c.l.b16 %v701
        %v758 = vunpack.c.l.b16 %v702
        %v759 = vunpack.c.l.b16 %v703
        %v760 = vunpack.c.l.b16 %v704
        %v761 = vpack.c.b16 %v758, %v757
        %v762 = vpack.c.b16 %v760, %v759
        %765 = vmatprep.subr.bf16.mxu0 0
        %766 = vmatpush1.bf16.msra.mxu0 %v761
        %767 = vmatprep.subr.bf16.mxu0 0
        %768 = vmatpush1.bf16.msra.mxu0 %v762
        %769 = vmatprep.subr.bf16.mxu0 0
        %770 = vmatpush1.bf16.msra.mxu0 0
        %771 = vmatprep.subr.bf16.mxu0 0
        %772 = vmatpush1.bf16.msra.mxu0 0
        %773 = vmatprep.subr.bf16.mxu0 0
        %774 = vmatpush1.bf16.msra.mxu0 0
        %775 = vmatprep.subr.bf16.mxu0 0
        %776 = vmatpush1.bf16.msra.mxu0 0
        %777 = vmatprep.subr.bf16.mxu0 0
        %778 = vmatpush1.bf16.msra.mxu0 0
        %779 = vmatprep.subr.bf16.mxu0 0
        %780 = vmatpush1.bf16.msra.mxu0 0
        %781 = vmatprep.subr.bf16.mxu0 0
        %782 = vmatpush1.bf16.msra.mxu0 0
        %783 = vmatprep.subr.bf16.mxu0 0
        %784 = vmatpush1.bf16.msra.mxu0 0
        %785 = vmatprep.subr.bf16.mxu0 0
        %786 = vmatpush1.bf16.msra.mxu0 0
        %787 = vmatprep.subr.bf16.mxu0 0
        %788 = vmatpush1.bf16.msra.mxu0 0
        %789 = vmatprep.subr.bf16.mxu0 0
        %790 = vmatpush1.bf16.msra.mxu0 0
        %791 = vmatprep.subr.bf16.mxu0 0
        %792 = vmatpush1.bf16.msra.mxu0 0
        %793 = vmatprep.subr.bf16.mxu0 0
        %794 = vmatpush1.bf16.msra.mxu0 0
        %795 = vmatprep.subr.bf16.mxu0 0
        %796 = vmatpush1.bf16.msra.mxu0 0
        %797 = vmatprep.mubr.bf16.mxu0 0
        %798 = vmatmul.mubr.bf16.gmra.mrb[0].mxu0 %v543
        %v799 = vpop.f32.mrb[0].mxu0
        %v800 = vadd.f32 %v748, %v799
        %v801 = vpop.f32.mrb[0].mxu0
        %v802 = vpop.f32.mrb[0].mxu0
        %v803 = vpop.f32.mrb[0].mxu0
        %804 = vdwg.mxu0
        %v805 = vld [vmem:[%s512] sm:$0x1]
        %v807 = vlaneseq
        %v808 = vshrl.u32 %v807, 7
        %v809 = vsub.s32 0, %v808
        %v810 = vrot.slane %v805, %v809
        %v812 = vadd.f32 %v800, %v810
        %v813 = vxor.u32 %v812, 2147483648
        %v814 = vmul.f32 %v813, 1.442695
        %v815 = vpow.pop %v814
        %v816 = vadd.f32 %v815, 1.0
        %v817 = vrcp.pop %v816
        %v818 = vmul.f32 1.0, %v817
        %v819 = vsub.f32 %v700, %v580
        %v820 = vmul.f32 %v818, %v819
        %v821 = vadd.f32 %v580, %v820
        %822 = vst.msk [vmem:[%s475] sm:$0xff] %vm541, %v821
        %s823 = sand.u32 %s306, 1
        %s824 = scalar_lea.sflag [#allocation3], %s823
        %s825 = sand.u32 %s306, 1
        %s826 = smul.addr %s825, 8
        %s827 = scalar_lea.vmem [#allocation2], %s826
        // Predicated region
        $region61: #{knowledge_seq2seq_forward.5} parent=59 // pred_check
          %p828 = pneg %p316
        $region62: #{knowledge_seq2seq_forward.5} parent=59 // pred_check_branch
          %830 = sbr.rel (%p828) target = $region64
        $region63: #{knowledge_seq2seq_forward.5} parent=59 // pred_region
          %s832 = ssub.s32 128, 128
          %833 = vsyncadd %s824, %s832
          %s834 = sadd.s32 %s29, %s28
          %s835 = smul.addr %s834, 128
          %s836 = scalar_lea.hbm %s10, %s835
          %s838 = sshll.u32 %s827, 4
          %s839 = int_to_ptr.vmem [resolvable:$true] %s838
          %841 = dma.vmem_to_hbm [thread:$0]  %s839, 128, %s836, %s824
        $region64: #{knowledge_seq2seq_forward.5} parent=59 // pred_fallthru
          _
      $region60: #{knowledge_seq2seq_forward.5} parent=5 // pred_fallthru
        _
      %p842 = scmp.le.s32.totalorder 2, %s19
      // Predicated region
      $region65: #{knowledge_seq2seq_forward.5} parent=5 // pred_check
        %p843 = pneg %p842
      $region66: #{knowledge_seq2seq_forward.5} parent=5 // pred_check_branch
        %845 = sbr.rel (%p843) target = $region68
      $region67: #{knowledge_seq2seq_forward.5} parent=5 // pred_region
        %s846 = ssub.s32 %s19, 2
        // Predicated region
        $region69: #{knowledge_seq2seq_forward.5} parent=67 // pred_check
          %p847 = pneg %p322
        $region70: #{knowledge_seq2seq_forward.5} parent=67 // pred_check_branch
          %849 = sbr.rel (%p847) target = $region72
        $region71: #{knowledge_seq2seq_forward.5} parent=67 // pred_region
          %s850 = sand.u32 %s307, 1
          %s851 = scalar_lea.sflag [#allocation3], %s850
          %s852 = sand.u32 %s307, 1
          %s853 = smul.addr %s852, 8
          %s854 = scalar_lea.vmem [#allocation2], %s853
          %855 = dma.done %s851, 128
        $region72: #{knowledge_seq2seq_forward.5} parent=67 // pred_fallthru
          _
      $region68: #{knowledge_seq2seq_forward.5} parent=5 // pred_fallthru
        _
    $region6: #{knowledge_seq2seq_forward.5} parent=1 // loop_footer
      %s23 = sadd.s32 1, %s19
    $region7: #{knowledge_seq2seq_forward.5} parent=1 // loop_footer_branch
      %18 = sbr.rel target = $region3
    $region8: #{knowledge_seq2seq_forward.5} parent=1 // loop_exit
      _
    %856 = vsyncpa [#allocation3], 1
    %s857 = scalar_lea.sflag [#allocation3], 1
    %858 = vsyncpa %s857, 1

// kernel: knowledge_seq2seq_forward.3
$region0: #{knowledge_seq2seq_forward.3}
  #allocation0 [shape = 'u32[]', space=smem, size = 0x4, offset = 0x4, fixed_abs, tag = 'smem constant byte address 0x4 - core index']
  #allocation1 [shape = 'u32[144,128]{1,0:T(1,128)}', space=vmem, size = 0x12000, scoped, tag = 'internal scratch']
  %s0 = inlined_call_operand.vmem [shape: f32[5,2,128], index: 0, kind: input, shape index: {}]
  %s1 = inlined_call_operand.vmem [shape: f32[5,2,128], index: 1, kind: input, shape index: {}]
  %s2 = inlined_call_operand.vmem [shape: bf16[32,128], index: 2, kind: input, shape index: {}]
  %s3 = inlined_call_operand.vmem [shape: bf16[32,128], index: 3, kind: input, shape index: {}]
  %s4 = inlined_call_operand.vmem [shape: f32[2,32], index: 4, kind: output, shape index: {0}]
  %s5 = inlined_call_operand.vmem [shape: f32[2,32], index: 5, kind: output, shape index: {1}]
  %6 = xla_tuple %s4, %s5
  %s7 = sld [smem:[#allocation0]]
  $region34: #{knowledge_seq2seq_forward.3} parent=0
    _
  %s9 = ssub.s32 1, %s7
  %s10 = scalar_select 0, %s9, %s7
  // Predicated region
  $region2: #{knowledge_seq2seq_forward.3} parent=0 // pred_check
    _
  $region3: #{knowledge_seq2seq_forward.3} parent=0 // pred_check_branch
    %12 = sbr.rel (0) target = $region5
  $region4: #{knowledge_seq2seq_forward.3} parent=0 // pred_region
    _
  $region5: #{knowledge_seq2seq_forward.3} parent=0 // pred_fallthru
    _
  // Predicated region
  $region6: #{knowledge_seq2seq_forward.3} parent=0 // pred_check
    _
  $region7: #{knowledge_seq2seq_forward.3} parent=0 // pred_check_branch
    %14 = sbr.rel (0) target = $region9
  $region8: #{knowledge_seq2seq_forward.3} parent=0 // pred_region
    _
  $region9: #{knowledge_seq2seq_forward.3} parent=0 // pred_fallthru
    _
  // Predicated region
  $region10: #{knowledge_seq2seq_forward.3} parent=0 // pred_check
    _
  $region11: #{knowledge_seq2seq_forward.3} parent=0 // pred_check_branch
    %16 = sbr.rel (0) target = $region13
  $region12: #{knowledge_seq2seq_forward.3} parent=0 // pred_region
    _
  $region13: #{knowledge_seq2seq_forward.3} parent=0 // pred_fallthru
    _
  // Predicated region
  $region14: #{knowledge_seq2seq_forward.3} parent=0 // pred_check
    _
  $region15: #{knowledge_seq2seq_forward.3} parent=0 // pred_check_branch
    %18 = sbr.rel (0) target = $region17
  $region16: #{knowledge_seq2seq_forward.3} parent=0 // pred_region
    _
  $region17: #{knowledge_seq2seq_forward.3} parent=0 // pred_fallthru
    _
  %v20 = vld [vmem:[%s2] sm:$0xf]
  %v21 = vld [vmem:[%s2 + $0x4] sm:$0xf]
  %v22 = vld [vmem:[%s2 + $0x8] sm:$0xf]
  %v23 = vld [vmem:[%s2 + $0xc] sm:$0xf]
  %v24 = vld [vmem:[%s3] sm:$0xf]
  %v25 = vld [vmem:[%s3 + $0x4] sm:$0xf]
  %v26 = vld [vmem:[%s3 + $0x8] sm:$0xf]
  %v27 = vld [vmem:[%s3 + $0xc] sm:$0xf]
  %v28 = vld [vmem:[%s0] sm:$0x3]
  %v33 = vunpack.c.l.b16 %v20
  %v34 = vunpack.c.l.b16 %v21
  %v35 = vunpack.c.l.b16 %v22
  %v36 = vunpack.c.l.b16 %v23
  %v37 = vpack.c.b16 %v34, %v33
  %v38 = vpack.c.b16 %v36, %v35
  %vm41 = vcmask 261120
  %v43 = vsel %vm41, 0, 0
  %45 = vmatprep.subr.bf16.mxu0 0
  %46 = vmatpush1.bf16.msra.mxu0 %v37
  %47 = vmatprep.subr.bf16.mxu0 0
  %48 = vmatpush1.bf16.msra.mxu0 %v38
  %49 = vmatprep.subr.bf16.mxu0 0
  %50 = vmatpush1.bf16.msra.mxu0 0
  %51 = vmatprep.subr.bf16.mxu0 0
  %52 = vmatpush1.bf16.msra.mxu0 0
  %53 = vmatprep.subr.bf16.mxu0 0
  %54 = vmatpush1.bf16.msra.mxu0 0
  %55 = vmatprep.subr.bf16.mxu0 0
  %56 = vmatpush1.bf16.msra.mxu0 0
  %57 = vmatprep.subr.bf16.mxu0 0
  %58 = vmatpush1.bf16.msra.mxu0 0
  %59 = vmatprep.subr.bf16.mxu0 0
  %60 = vmatpush1.bf16.msra.mxu0 0
  %61 = vmatprep.subr.bf16.mxu0 0
  %62 = vmatpush1.bf16.msra.mxu0 0
  %63 = vmatprep.subr.bf16.mxu0 0
  %64 = vmatpush1.bf16.msra.mxu0 0
  %65 = vmatprep.subr.bf16.mxu0 0
  %66 = vmatpush1.bf16.msra.mxu0 0
  %67 = vmatprep.subr.bf16.mxu0 0
  %68 = vmatpush1.bf16.msra.mxu0 0
  %69 = vmatprep.subr.bf16.mxu0 0
  %70 = vmatpush1.bf16.msra.mxu0 0
  %71 = vmatprep.subr.bf16.mxu0 0
  %72 = vmatpush1.bf16.msra.mxu0 0
  %73 = vmatprep.subr.bf16.mxu0 0
  %74 = vmatpush1.bf16.msra.mxu0 0
  %75 = vmatprep.subr.bf16.mxu0 0
  %76 = vmatpush1.bf16.msra.mxu0 0
  %77 = vmatprep.mubr.bf16.mxu0 0
  %78 = vmatmul.mubr.bf16.gmra.mrb[0].mxu0 %v43
  %v79 = vpop.f32.mrb[0].mxu0
  %v80 = vadd.f32 0.0, %v79
  %v81 = vpop.f32.mrb[0].mxu0
  %v82 = vpop.f32.mrb[0].mxu0
  %v83 = vpop.f32.mrb[0].mxu0
  %84 = vdwg.mxu0
  %v85 = vadd.f32 %v28, %v80
  %v86 = vxor.u32 %v85, 2147483648
  %v87 = vmul.f32 %v86, 1.442695
  %v88 = vpow.pop %v87
  %v89 = vadd.f32 %v88, 1.0
  %v90 = vrcp.pop %v89
  %v91 = vmul.f32 1.0, %v90
  %v92 = vtanh.pop %v85
  %v93 = vmul.f32 %v91, 0.0
  %95 = vrot.lane.b32.xlu0 %v92, 64
  %v96 = vpop.permute.xlu0 %95
  %v98 = vmul.f32 %v91, %v96
  %100 = vrot.lane.b32.xlu0 %v98, 32
  %v101 = vpop.permute.xlu0 %100
  %v103 = vadd.f32 %v93, %v101
  %v104 = vtanh.pop %v103
  %106 = vrot.lane.b32.xlu0 %v104, 64
  %v107 = vpop.permute.xlu0 %106
  %v109 = vmul.f32 %v91, %v107
  %v110 = vld [vmem:[%s1] sm:$0x3]
  %v115 = vunpack.c.l.b16 %v24
  %v116 = vunpack.c.l.b16 %v25
  %v117 = vunpack.c.l.b16 %v26
  %v118 = vunpack.c.l.b16 %v27
  %v119 = vpack.c.b16 %v116, %v115
  %v120 = vpack.c.b16 %v118, %v117
  %123 = vmatprep.subr.bf16.mxu0 0
  %124 = vmatpush1.bf16.msra.mxu0 %v119
  %125 = vmatprep.subr.bf16.mxu0 0
  %126 = vmatpush1.bf16.msra.mxu0 %v120
  %127 = vmatprep.subr.bf16.mxu0 0
  %128 = vmatpush1.bf16.msra.mxu0 0
  %129 = vmatprep.subr.bf16.mxu0 0
  %130 = vmatpush1.bf16.msra.mxu0 0
  %131 = vmatprep.subr.bf16.mxu0 0
  %132 = vmatpush1.bf16.msra.mxu0 0
  %133 = vmatprep.subr.bf16.mxu0 0
  %134 = vmatpush1.bf16.msra.mxu0 0
  %135 = vmatprep.subr.bf16.mxu0 0
  %136 = vmatpush1.bf16.msra.mxu0 0
  %137 = vmatprep.subr.bf16.mxu0 0
  %138 = vmatpush1.bf16.msra.mxu0 0
  %139 = vmatprep.subr.bf16.mxu0 0
  %140 = vmatpush1.bf16.msra.mxu0 0
  %141 = vmatprep.subr.bf16.mxu0 0
  %142 = vmatpush1.bf16.msra.mxu0 0
  %143 = vmatprep.subr.bf16.mxu0 0
  %144 = vmatpush1.bf16.msra.mxu0 0
  %145 = vmatprep.subr.bf16.mxu0 0
  %146 = vmatpush1.bf16.msra.mxu0 0
  %147 = vmatprep.subr.bf16.mxu0 0
  %148 = vmatpush1.bf16.msra.mxu0 0
  %149 = vmatprep.subr.bf16.mxu0 0
  %150 = vmatpush1.bf16.msra.mxu0 0
  %151 = vmatprep.subr.bf16.mxu0 0
  %152 = vmatpush1.bf16.msra.mxu0 0
  %153 = vmatprep.subr.bf16.mxu0 0
  %154 = vmatpush1.bf16.msra.mxu0 0
  %155 = vmatprep.mubr.bf16.mxu0 0
  %156 = vmatmul.mubr.bf16.gmra.mrb[0].mxu0 %v43
  %v157 = vpop.f32.mrb[0].mxu0
  %v158 = vadd.f32 0.0, %v157
  %v159 = vpop.f32.mrb[0].mxu0
  %v160 = vpop.f32.mrb[0].mxu0
  %v161 = vpop.f32.mrb[0].mxu0
  %162 = vdwg.mxu0
  %v163 = vadd.f32 %v110, %v158
  %v164 = vxor.u32 %v163, 2147483648
  %v165 = vmul.f32 %v164, 1.442695
  %v166 = vpow.pop %v165
  %v167 = vadd.f32 %v166, 1.0
  %v168 = vrcp.pop %v167
  %v169 = vmul.f32 1.0, %v168
  %v170 = vtanh.pop %v163
  %v171 = vmul.f32 %v169, 0.0
  %173 = vrot.lane.b32.xlu0 %v170, 64
  %v174 = vpop.permute.xlu0 %173
  %v176 = vmul.f32 %v169, %v174
  %178 = vrot.lane.b32.xlu0 %v176, 32
  %v179 = vpop.permute.xlu0 %178
  %v181 = vadd.f32 %v171, %v179
  %v182 = vtanh.pop %v181
  %184 = vrot.lane.b32.xlu0 %v182, 64
  %v185 = vpop.permute.xlu0 %184
  %v187 = vmul.f32 %v169, %v185
  %s188 = scalar_lea.vmem %s0, 2
  %v189 = vld [vmem:[%s188] sm:$0x3]
  %v190 = vpack.c.bf16 %v109, %v109
  %192 = vrot.lane.b32.xlu0 %v190, 32
  %v193 = vpop.permute.xlu0 %192
  %v195 = vsel %vm41, %v193, 0
  %197 = vmatprep.subr.bf16.mxu0 0
  %198 = vmatpush1.bf16.msra.mxu0 %v37
  %199 = vmatprep.subr.bf16.mxu0 0
  %200 = vmatpush1.bf16.msra.mxu0 %v38
  %201 = vmatprep.subr.bf16.mxu0 0
  %202 = vmatpush1.bf16.msra.mxu0 0
  %203 = vmatprep.subr.bf16.mxu0 0
  %204 = vmatpush1.bf16.msra.mxu0 0
  %205 = vmatprep.subr.bf16.mxu0 0
  %206 = vmatpush1.bf16.msra.mxu0 0
  %207 = vmatprep.subr.bf16.mxu0 0
  %208 = vmatpush1.bf16.msra.mxu0 0
  %209 = vmatprep.subr.bf16.mxu0 0
  %210 = vmatpush1.bf16.msra.mxu0 0
  %211 = vmatprep.subr.bf16.mxu0 0
  %212 = vmatpush1.bf16.msra.mxu0 0
  %213 = vmatprep.subr.bf16.mxu0 0
  %214 = vmatpush1.bf16.msra.mxu0 0
  %215 = vmatprep.subr.bf16.mxu0 0
  %216 = vmatpush1.bf16.msra.mxu0 0
  %217 = vmatprep.subr.bf16.mxu0 0
  %218 = vmatpush1.bf16.msra.mxu0 0
  %219 = vmatprep.subr.bf16.mxu0 0
  %220 = vmatpush1.bf16.msra.mxu0 0
  %221 = vmatprep.subr.bf16.mxu0 0
  %222 = vmatpush1.bf16.msra.mxu0 0
  %223 = vmatprep.subr.bf16.mxu0 0
  %224 = vmatpush1.bf16.msra.mxu0 0
  %225 = vmatprep.subr.bf16.mxu0 0
  %226 = vmatpush1.bf16.msra.mxu0 0
  %227 = vmatprep.subr.bf16.mxu0 0
  %228 = vmatpush1.bf16.msra.mxu0 0
  %229 = vmatprep.mubr.bf16.mxu0 0
  %230 = vmatmul.mubr.bf16.gmra.mrb[0].mxu0 %v195
  %v231 = vpop.f32.mrb[0].mxu0
  %v232 = vadd.f32 0.0, %v231
  %v233 = vpop.f32.mrb[0].mxu0
  %v234 = vpop.f32.mrb[0].mxu0
  %v235 = vpop.f32.mrb[0].mxu0
  %236 = vdwg.mxu0
  %v237 = vadd.f32 %v189, %v232
  %v238 = vxor.u32 %v237, 2147483648
  %v239 = vmul.f32 %v238, 1.442695
  %v240 = vpow.pop %v239
  %v241 = vadd.f32 %v240, 1.0
  %v242 = vrcp.pop %v241
  %v243 = vmul.f32 1.0, %v242
  %v244 = vtanh.pop %v237
  %v245 = vmul.f32 %v243, %v103
  %247 = vrot.lane.b32.xlu0 %v244, 64
  %v248 = vpop.permute.xlu0 %247
  %v250 = vmul.f32 %v243, %v248
  %252 = vrot.lane.b32.xlu0 %v250, 32
  %v253 = vpop.permute.xlu0 %252
  %v255 = vadd.f32 %v245, %v253
  %v256 = vtanh.pop %v255
  %258 = vrot.lane.b32.xlu0 %v256, 64
  %v259 = vpop.permute.xlu0 %258
  %v261 = vmul.f32 %v243, %v259
  %s262 = scalar_lea.vmem %s1, 2
  %v263 = vld [vmem:[%s262] sm:$0x3]
  %v264 = vpack.c.bf16 %v187, %v187
  %266 = vrot.lane.b32.xlu0 %v264, 32
  %v267 = vpop.permute.xlu0 %266
  %v269 = vsel %vm41, %v267, 0
  %271 = vmatprep.subr.bf16.mxu0 0
  %272 = vmatpush1.bf16.msra.mxu0 %v119
  %273 = vmatprep.subr.bf16.mxu0 0
  %274 = vmatpush1.bf16.msra.mxu0 %v120
  %275 = vmatprep.subr.bf16.mxu0 0
  %276 = vmatpush1.bf16.msra.mxu0 0
  %277 = vmatprep.subr.bf16.mxu0 0
  %278 = vmatpush1.bf16.msra.mxu0 0
  %279 = vmatprep.subr.bf16.mxu0 0
  %280 = vmatpush1.bf16.msra.mxu0 0
  %281 = vmatprep.subr.bf16.mxu0 0
  %282 = vmatpush1.bf16.msra.mxu0 0
  %283 = vmatprep.subr.bf16.mxu0 0
  %284 = vmatpush1.bf16.msra.mxu0 0
  %285 = vmatprep.subr.bf16.mxu0 0
  %286 = vmatpush1.bf16.msra.mxu0 0
  %287 = vmatprep.subr.bf16.mxu0 0
  %288 = vmatpush1.bf16.msra.mxu0 0
  %289 = vmatprep.subr.bf16.mxu0 0
  %290 = vmatpush1.bf16.msra.mxu0 0
  %291 = vmatprep.subr.bf16.mxu0 0
  %292 = vmatpush1.bf16.msra.mxu0 0
  %293 = vmatprep.subr.bf16.mxu0 0
  %294 = vmatpush1.bf16.msra.mxu0 0
  %295 = vmatprep.subr.bf16.mxu0 0
  %296 = vmatpush1.bf16.msra.mxu0 0
  %297 = vmatprep.subr.bf16.mxu0 0
  %298 = vmatpush1.bf16.msra.mxu0 0
  %299 = vmatprep.subr.bf16.mxu0 0
  %300 = vmatpush1.bf16.msra.mxu0 0
  %301 = vmatprep.subr.bf16.mxu0 0
  %302 = vmatpush1.bf16.msra.mxu0 0
  %303 = vmatprep.mubr.bf16.mxu0 0
  %304 = vmatmul.mubr.bf16.gmra.mrb[0].mxu0 %v269
  %v305 = vpop.f32.mrb[0].mxu0
  %v306 = vadd.f32 0.0, %v305
  %v307 = vpop.f32.mrb[0].mxu0
  %v308 = vpop.f32.mrb[0].mxu0
  %v309 = vpop.f32.mrb[0].mxu0
  %310 = vdwg.mxu0
  %v311 = vadd.f32 %v263, %v306
  %v312 = vxor.u32 %v311, 2147483648
  %v313 = vmul.f32 %v312, 1.442695
  %v314 = vpow.pop %v313
  %v315 = vadd.f32 %v314, 1.0
  %v316 = vrcp.pop %v315
  %v317 = vmul.f32 1.0, %v316
  %v318 = vtanh.pop %v311
  %v319 = vmul.f32 %v317, %v181
  %321 = vrot.lane.b32.xlu0 %v318, 64
  %v322 = vpop.permute.xlu0 %321
  %v324 = vmul.f32 %v317, %v322
  %326 = vrot.lane.b32.xlu0 %v324, 32
  %v327 = vpop.permute.xlu0 %326
  %v329 = vadd.f32 %v319, %v327
  %v330 = vtanh.pop %v329
  %332 = vrot.lane.b32.xlu0 %v330, 64
  %v333 = vpop.permute.xlu0 %332
  %v335 = vmul.f32 %v317, %v333
  %s336 = scalar_lea.vmem %s0, 4
  %v337 = vld [vmem:[%s336] sm:$0x3]
  %v338 = vpack.c.bf16 %v261, %v261
  %340 = vrot.lane.b32.xlu0 %v338, 32
  %v341 = vpop.permute.xlu0 %340
  %v343 = vsel %vm41, %v341, 0
  %345 = vmatprep.subr.bf16.mxu0 0
  %346 = vmatpush1.bf16.msra.mxu0 %v37
  %347 = vmatprep.subr.bf16.mxu0 0
  %348 = vmatpush1.bf16.msra.mxu0 %v38
  %349 = vmatprep.subr.bf16.mxu0 0
  %350 = vmatpush1.bf16.msra.mxu0 0
  %351 = vmatprep.subr.bf16.mxu0 0
  %352 = vmatpush1.bf16.msra.mxu0 0
  %353 = vmatprep.subr.bf16.mxu0 0
  %354 = vmatpush1.bf16.msra.mxu0 0
  %355 = vmatprep.subr.bf16.mxu0 0
  %356 = vmatpush1.bf16.msra.mxu0 0
  %357 = vmatprep.subr.bf16.mxu0 0
  %358 = vmatpush1.bf16.msra.mxu0 0
  %359 = vmatprep.subr.bf16.mxu0 0
  %360 = vmatpush1.bf16.msra.mxu0 0
  %361 = vmatprep.subr.bf16.mxu0 0
  %362 = vmatpush1.bf16.msra.mxu0 0
  %363 = vmatprep.subr.bf16.mxu0 0
  %364 = vmatpush1.bf16.msra.mxu0 0
  %365 = vmatprep.subr.bf16.mxu0 0
  %366 = vmatpush1.bf16.msra.mxu0 0
  %367 = vmatprep.subr.bf16.mxu0 0
  %368 = vmatpush1.bf16.msra.mxu0 0
  %369 = vmatprep.subr.bf16.mxu0 0
  %370 = vmatpush1.bf16.msra.mxu0 0
  %371 = vmatprep.subr.bf16.mxu0 0
  %372 = vmatpush1.bf16.msra.mxu0 0
  %373 = vmatprep.subr.bf16.mxu0 0
  %374 = vmatpush1.bf16.msra.mxu0 0
  %375 = vmatprep.subr.bf16.mxu0 0
  %376 = vmatpush1.bf16.msra.mxu0 0
  %377 = vmatprep.mubr.bf16.mxu0 0
  %378 = vmatmul.mubr.bf16.gmra.mrb[0].mxu0 %v343
  %v379 = vpop.f32.mrb[0].mxu0
  %v380 = vadd.f32 0.0, %v379
  %v381 = vpop.f32.mrb[0].mxu0
  %v382 = vpop.f32.mrb[0].mxu0
  %v383 = vpop.f32.mrb[0].mxu0
  %384 = vdwg.mxu0
  %v385 = vadd.f32 %v337, %v380
  %v386 = vxor.u32 %v385, 2147483648
  %v387 = vmul.f32 %v386, 1.442695
  %v388 = vpow.pop %v387
  %v389 = vadd.f32 %v388, 1.0
  %v390 = vrcp.pop %v389
  %v391 = vmul.f32 1.0, %v390
  %v392 = vtanh.pop %v385
  %v393 = vmul.f32 %v391, %v255
  %395 = vrot.lane.b32.xlu0 %v392, 64
  %v396 = vpop.permute.xlu0 %395
  %v398 = vmul.f32 %v391, %v396
  %400 = vrot.lane.b32.xlu0 %v398, 32
  %v401 = vpop.permute.xlu0 %400
  %v403 = vadd.f32 %v393, %v401
  %v404 = vtanh.pop %v403
  %406 = vrot.lane.b32.xlu0 %v404, 64
  %v407 = vpop.permute.xlu0 %406
  %v409 = vmul.f32 %v391, %v407
  %s410 = scalar_lea.vmem %s1, 4
  %v411 = vld [vmem:[%s410] sm:$0x3]
  %v412 = vpack.c.bf16 %v335, %v335
  %414 = vrot.lane.b32.xlu0 %v412, 32
  %v415 = vpop.permute.xlu0 %414
  %v417 = vsel %vm41, %v415, 0
  %419 = vmatprep.subr.bf16.mxu0 0
  %420 = vmatpush1.bf16.msra.mxu0 %v119
  %421 = vmatprep.subr.bf16.mxu0 0
  %422 = vmatpush1.bf16.msra.mxu0 %v120
  %423 = vmatprep.subr.bf16.mxu0 0
  %424 = vmatpush1.bf16.msra.mxu0 0
  %425 = vmatprep.subr.bf16.mxu0 0
  %426 = vmatpush1.bf16.msra.mxu0 0
  %427 = vmatprep.subr.bf16.mxu0 0
  %428 = vmatpush1.bf16.msra.mxu0 0
  %429 = vmatprep.subr.bf16.mxu0 0
  %430 = vmatpush1.bf16.msra.mxu0 0
  %431 = vmatprep.subr.bf16.mxu0 0
  %432 = vmatpush1.bf16.msra.mxu0 0
  %433 = vmatprep.subr.bf16.mxu0 0
  %434 = vmatpush1.bf16.msra.mxu0 0
  %435 = vmatprep.subr.bf16.mxu0 0
  %436 = vmatpush1.bf16.msra.mxu0 0
  %437 = vmatprep.subr.bf16.mxu0 0
  %438 = vmatpush1.bf16.msra.mxu0 0
  %439 = vmatprep.subr.bf16.mxu0 0
  %440 = vmatpush1.bf16.msra.mxu0 0
  %441 = vmatprep.subr.bf16.mxu0 0
  %442 = vmatpush1.bf16.msra.mxu0 0
  %443 = vmatprep.subr.bf16.mxu0 0
  %444 = vmatpush1.bf16.msra.mxu0 0
  %445 = vmatprep.subr.bf16.mxu0 0
  %446 = vmatpush1.bf16.msra.mxu0 0
  %447 = vmatprep.subr.bf16.mxu0 0
  %448 = vmatpush1.bf16.msra.mxu0 0
  %449 = vmatprep.subr.bf16.mxu0 0
  %450 = vmatpush1.bf16.msra.mxu0 0
  %451 = vmatprep.mubr.bf16.mxu0 0
  %452 = vmatmul.mubr.bf16.gmra.mrb[0].mxu0 %v417
  %v453 = vpop.f32.mrb[0].mxu0
  %v454 = vadd.f32 0.0, %v453
  %v455 = vpop.f32.mrb[0].mxu0
  %v456 = vpop.f32.mrb[0].mxu0
  %v457 = vpop.f32.mrb[0].mxu0
  %458 = vdwg.mxu0
  %v459 = vadd.f32 %v411, %v454
  %v460 = vxor.u32 %v459, 2147483648
  %v461 = vmul.f32 %v460, 1.442695
  %v462 = vpow.pop %v461
  %v463 = vadd.f32 %v462, 1.0
  %v464 = vrcp.pop %v463
  %v465 = vmul.f32 1.0, %v464
  %v466 = vtanh.pop %v459
  %v467 = vmul.f32 %v465, %v329
  %469 = vrot.lane.b32.xlu0 %v466, 64
  %v470 = vpop.permute.xlu0 %469
  %v472 = vmul.f32 %v465, %v470
  %474 = vrot.lane.b32.xlu0 %v472, 32
  %v475 = vpop.permute.xlu0 %474
  %v477 = vadd.f32 %v467, %v475
  %v478 = vtanh.pop %v477
  %480 = vrot.lane.b32.xlu0 %v478, 64
  %v481 = vpop.permute.xlu0 %480
  %v483 = vmul.f32 %v465, %v481
  %s484 = scalar_lea.vmem %s0, 6
  %v485 = vld [vmem:[%s484] sm:$0x3]
  %v486 = vpack.c.bf16 %v409, %v409
  %488 = vrot.lane.b32.xlu0 %v486, 32
  %v489 = vpop.permute.xlu0 %488
  %v491 = vsel %vm41, %v489, 0
  %493 = vmatprep.subr.bf16.mxu0 0
  %494 = vmatpush1.bf16.msra.mxu0 %v37
  %495 = vmatprep.subr.bf16.mxu0 0
  %496 = vmatpush1.bf16.msra.mxu0 %v38
  %497 = vmatprep.subr.bf16.mxu0 0
  %498 = vmatpush1.bf16.msra.mxu0 0
  %499 = vmatprep.subr.bf16.mxu0 0
  %500 = vmatpush1.bf16.msra.mxu0 0
  %501 = vmatprep.subr.bf16.mxu0 0
  %502 = vmatpush1.bf16.msra.mxu0 0
  %503 = vmatprep.subr.bf16.mxu0 0
  %504 = vmatpush1.bf16.msra.mxu0 0
  %505 = vmatprep.subr.bf16.mxu0 0
  %506 = vmatpush1.bf16.msra.mxu0 0
  %507 = vmatprep.subr.bf16.mxu0 0
  %508 = vmatpush1.bf16.msra.mxu0 0
  %509 = vmatprep.subr.bf16.mxu0 0
  %510 = vmatpush1.bf16.msra.mxu0 0
  %511 = vmatprep.subr.bf16.mxu0 0
  %512 = vmatpush1.bf16.msra.mxu0 0
  %513 = vmatprep.subr.bf16.mxu0 0
  %514 = vmatpush1.bf16.msra.mxu0 0
  %515 = vmatprep.subr.bf16.mxu0 0
  %516 = vmatpush1.bf16.msra.mxu0 0
  %517 = vmatprep.subr.bf16.mxu0 0
  %518 = vmatpush1.bf16.msra.mxu0 0
  %519 = vmatprep.subr.bf16.mxu0 0
  %520 = vmatpush1.bf16.msra.mxu0 0
  %521 = vmatprep.subr.bf16.mxu0 0
  %522 = vmatpush1.bf16.msra.mxu0 0
  %523 = vmatprep.subr.bf16.mxu0 0
  %524 = vmatpush1.bf16.msra.mxu0 0
  %525 = vmatprep.mubr.bf16.mxu0 0
  %526 = vmatmul.mubr.bf16.gmra.mrb[0].mxu0 %v491
  %v527 = vpop.f32.mrb[0].mxu0
  %v528 = vadd.f32 0.0, %v527
  %v529 = vpop.f32.mrb[0].mxu0
  %v530 = vpop.f32.mrb[0].mxu0
  %v531 = vpop.f32.mrb[0].mxu0
  %532 = vdwg.mxu0
  %v533 = vadd.f32 %v485, %v528
  %v534 = vxor.u32 %v533, 2147483648
  %v535 = vmul.f32 %v534, 1.442695
  %v536 = vpow.pop %v535
  %v537 = vadd.f32 %v536, 1.0
  %v538 = vrcp.pop %v537
  %v539 = vmul.f32 1.0, %v538
  %v540 = vtanh.pop %v533
  %v541 = vmul.f32 %v539, %v403
  %543 = vrot.lane.b32.xlu0 %v540, 64
  %v544 = vpop.permute.xlu0 %543
  %v546 = vmul.f32 %v539, %v544
  %548 = vrot.lane.b32.xlu0 %v546, 32
  %v549 = vpop.permute.xlu0 %548
  %v551 = vadd.f32 %v541, %v549
  %v552 = vtanh.pop %v551
  %554 = vrot.lane.b32.xlu0 %v552, 64
  %v555 = vpop.permute.xlu0 %554
  %v557 = vmul.f32 %v539, %v555
  %s558 = scalar_lea.vmem %s1, 6
  %v559 = vld [vmem:[%s558] sm:$0x3]
  %v560 = vpack.c.bf16 %v483, %v483
  %562 = vrot.lane.b32.xlu0 %v560, 32
  %v563 = vpop.permute.xlu0 %562
  %v565 = vsel %vm41, %v563, 0
  %567 = vmatprep.subr.bf16.mxu0 0
  %568 = vmatpush1.bf16.msra.mxu0 %v119
  %569 = vmatprep.subr.bf16.mxu0 0
  %570 = vmatpush1.bf16.msra.mxu0 %v120
  %571 = vmatprep.subr.bf16.mxu0 0
  %572 = vmatpush1.bf16.msra.mxu0 0
  %573 = vmatprep.subr.bf16.mxu0 0
  %574 = vmatpush1.bf16.msra.mxu0 0
  %575 = vmatprep.subr.bf16.mxu0 0
  %576 = vmatpush1.bf16.msra.mxu0 0
  %577 = vmatprep.subr.bf16.mxu0 0
  %578 = vmatpush1.bf16.msra.mxu0 0
  %579 = vmatprep.subr.bf16.mxu0 0
  %580 = vmatpush1.bf16.msra.mxu0 0
  %581 = vmatprep.subr.bf16.mxu0 0
  %582 = vmatpush1.bf16.msra.mxu0 0
  %583 = vmatprep.subr.bf16.mxu0 0
  %584 = vmatpush1.bf16.msra.mxu0 0
  %585 = vmatprep.subr.bf16.mxu0 0
  %586 = vmatpush1.bf16.msra.mxu0 0
  %587 = vmatprep.subr.bf16.mxu0 0
  %588 = vmatpush1.bf16.msra.mxu0 0
  %589 = vmatprep.subr.bf16.mxu0 0
  %590 = vmatpush1.bf16.msra.mxu0 0
  %591 = vmatprep.subr.bf16.mxu0 0
  %592 = vmatpush1.bf16.msra.mxu0 0
  %593 = vmatprep.subr.bf16.mxu0 0
  %594 = vmatpush1.bf16.msra.mxu0 0
  %595 = vmatprep.subr.bf16.mxu0 0
  %596 = vmatpush1.bf16.msra.mxu0 0
  %597 = vmatprep.subr.bf16.mxu0 0
  %598 = vmatpush1.bf16.msra.mxu0 0
  %599 = vmatprep.mubr.bf16.mxu0 0
  %600 = vmatmul.mubr.bf16.gmra.mrb[0].mxu0 %v565
  %v601 = vpop.f32.mrb[0].mxu0
  %v602 = vadd.f32 0.0, %v601
  %v603 = vpop.f32.mrb[0].mxu0
  %v604 = vpop.f32.mrb[0].mxu0
  %v605 = vpop.f32.mrb[0].mxu0
  %606 = vdwg.mxu0
  %v607 = vadd.f32 %v559, %v602
  %v608 = vxor.u32 %v607, 2147483648
  %v609 = vmul.f32 %v608, 1.442695
  %v610 = vpow.pop %v609
  %v611 = vadd.f32 %v610, 1.0
  %v612 = vrcp.pop %v611
  %v613 = vmul.f32 1.0, %v612
  %v614 = vtanh.pop %v607
  %v615 = vmul.f32 %v613, %v477
  %617 = vrot.lane.b32.xlu0 %v614, 64
  %v618 = vpop.permute.xlu0 %617
  %v620 = vmul.f32 %v613, %v618
  %622 = vrot.lane.b32.xlu0 %v620, 32
  %v623 = vpop.permute.xlu0 %622
  %v625 = vadd.f32 %v615, %v623
  %v626 = vtanh.pop %v625
  %628 = vrot.lane.b32.xlu0 %v626, 64
  %v629 = vpop.permute.xlu0 %628
  %v631 = vmul.f32 %v613, %v629
  %s632 = scalar_lea.vmem %s0, 8
  %v633 = vld [vmem:[%s632] sm:$0x3]
  %v634 = vpack.c.bf16 %v557, %v557
  %636 = vrot.lane.b32.xlu0 %v634, 32
  %v637 = vpop.permute.xlu0 %636
  %v639 = vsel %vm41, %v637, 0
  %641 = vmatprep.subr.bf16.mxu0 0
  %642 = vmatpush1.bf16.msra.mxu0 %v37
  %643 = vmatprep.subr.bf16.mxu0 0
  %644 = vmatpush1.bf16.msra.mxu0 %v38
  %645 = vmatprep.subr.bf16.mxu0 0
  %646 = vmatpush1.bf16.msra.mxu0 0
  %647 = vmatprep.subr.bf16.mxu0 0
  %648 = vmatpush1.bf16.msra.mxu0 0
  %649 = vmatprep.subr.bf16.mxu0 0
  %650 = vmatpush1.bf16.msra.mxu0 0
  %651 = vmatprep.subr.bf16.mxu0 0
  %652 = vmatpush1.bf16.msra.mxu0 0
  %653 = vmatprep.subr.bf16.mxu0 0
  %654 = vmatpush1.bf16.msra.mxu0 0
  %655 = vmatprep.subr.bf16.mxu0 0
  %656 = vmatpush1.bf16.msra.mxu0 0
  %657 = vmatprep.subr.bf16.mxu0 0
  %658 = vmatpush1.bf16.msra.mxu0 0
  %659 = vmatprep.subr.bf16.mxu0 0
  %660 = vmatpush1.bf16.msra.mxu0 0
  %661 = vmatprep.subr.bf16.mxu0 0
  %662 = vmatpush1.bf16.msra.mxu0 0
  %663 = vmatprep.subr.bf16.mxu0 0
  %664 = vmatpush1.bf16.msra.mxu0 0
  %665 = vmatprep.subr.bf16.mxu0 0
  %666 = vmatpush1.bf16.msra.mxu0 0
  %667 = vmatprep.subr.bf16.mxu0 0
  %668 = vmatpush1.bf16.msra.mxu0 0
  %669 = vmatprep.subr.bf16.mxu0 0
  %670 = vmatpush1.bf16.msra.mxu0 0
  %671 = vmatprep.subr.bf16.mxu0 0
  %672 = vmatpush1.bf16.msra.mxu0 0
  %673 = vmatprep.mubr.bf16.mxu0 0
  %674 = vmatmul.mubr.bf16.gmra.mrb[0].mxu0 %v639
  %v675 = vpop.f32.mrb[0].mxu0
  %v676 = vadd.f32 0.0, %v675
  %v677 = vpop.f32.mrb[0].mxu0
  %v678 = vpop.f32.mrb[0].mxu0
  %v679 = vpop.f32.mrb[0].mxu0
  %680 = vdwg.mxu0
  %v681 = vadd.f32 %v633, %v676
  %v682 = vxor.u32 %v681, 2147483648
  %v683 = vmul.f32 %v682, 1.442695
  %v684 = vpow.pop %v683
  %v685 = vadd.f32 %v684, 1.0
  %v686 = vrcp.pop %v685
  %v687 = vmul.f32 1.0, %v686
  %v688 = vtanh.pop %v681
  %v689 = vmul.f32 %v687, %v551
  %691 = vrot.lane.b32.xlu0 %v688, 64
  %v692 = vpop.permute.xlu0 %691
  %v694 = vmul.f32 %v687, %v692
  %696 = vrot.lane.b32.xlu0 %v694, 32
  %v697 = vpop.permute.xlu0 %696
  %v699 = vadd.f32 %v689, %v697
  %v700 = vtanh.pop %v699
  %702 = vrot.lane.b32.xlu0 %v700, 64
  %v703 = vpop.permute.xlu0 %702
  %v705 = vmul.f32 %v687, %v703
  %s706 = scalar_lea.vmem %s1, 8
  %v707 = vld [vmem:[%s706] sm:$0x3]
  %v708 = vpack.c.bf16 %v631, %v631
  %710 = vrot.lane.b32.xlu0 %v708, 32
  %v711 = vpop.permute.xlu0 %710
  %v713 = vsel %vm41, %v711, 0
  %715 = vmatprep.subr.bf16.mxu0 0
  %716 = vmatpush1.bf16.msra.mxu0 %v119
  %717 = vmatprep.subr.bf16.mxu0 0
  %718 = vmatpush1.bf16.msra.mxu0 %v120
  %719 = vmatprep.subr.bf16.mxu0 0
  %720 = vmatpush1.bf16.msra.mxu0 0
  %721 = vmatprep.subr.bf16.mxu0 0
  %722 = vmatpush1.bf16.msra.mxu0 0
  %723 = vmatprep.subr.bf16.mxu0 0
  %724 = vmatpush1.bf16.msra.mxu0 0
  %725 = vmatprep.subr.bf16.mxu0 0
  %726 = vmatpush1.bf16.msra.mxu0 0
  %727 = vmatprep.subr.bf16.mxu0 0
  %728 = vmatpush1.bf16.msra.mxu0 0
  %729 = vmatprep.subr.bf16.mxu0 0
  %730 = vmatpush1.bf16.msra.mxu0 0
  %731 = vmatprep.subr.bf16.mxu0 0
  %732 = vmatpush1.bf16.msra.mxu0 0
  %733 = vmatprep.subr.bf16.mxu0 0
  %734 = vmatpush1.bf16.msra.mxu0 0
  %735 = vmatprep.subr.bf16.mxu0 0
  %736 = vmatpush1.bf16.msra.mxu0 0
  %737 = vmatprep.subr.bf16.mxu0 0
  %738 = vmatpush1.bf16.msra.mxu0 0
  %739 = vmatprep.subr.bf16.mxu0 0
  %740 = vmatpush1.bf16.msra.mxu0 0
  %741 = vmatprep.subr.bf16.mxu0 0
  %742 = vmatpush1.bf16.msra.mxu0 0
  %743 = vmatprep.subr.bf16.mxu0 0
  %744 = vmatpush1.bf16.msra.mxu0 0
  %745 = vmatprep.subr.bf16.mxu0 0
  %746 = vmatpush1.bf16.msra.mxu0 0
  %747 = vmatprep.mubr.bf16.mxu0 0
  %748 = vmatmul.mubr.bf16.gmra.mrb[0].mxu0 %v713
  %v749 = vpop.f32.mrb[0].mxu0
  %v750 = vadd.f32 0.0, %v749
  %v751 = vpop.f32.mrb[0].mxu0
  %v752 = vpop.f32.mrb[0].mxu0
  %v753 = vpop.f32.mrb[0].mxu0
  %754 = vdwg.mxu0
  %v755 = vadd.f32 %v707, %v750
  %v756 = vxor.u32 %v755, 2147483648
  %v757 = vmul.f32 %v756, 1.442695
  %v758 = vpow.pop %v757
  %v759 = vadd.f32 %v758, 1.0
  %v760 = vrcp.pop %v759
  %v761 = vmul.f32 1.0, %v760
  %v762 = vtanh.pop %v755
  %v763 = vmul.f32 %v761, %v625
  %765 = vrot.lane.b32.xlu0 %v762, 64
  %v766 = vpop.permute.xlu0 %765
  %v768 = vmul.f32 %v761, %v766
  %770 = vrot.lane.b32.xlu0 %v768, 32
  %v771 = vpop.permute.xlu0 %770
  %v773 = vadd.f32 %v763, %v771
  %v774 = vtanh.pop %v773
  %776 = vrot.lane.b32.xlu0 %v774, 64
  %v777 = vpop.permute.xlu0 %776
  %v779 = vmul.f32 %v761, %v777
  %v780 = vadd.f32 %v705, %v779
  %782 = vrot.lane.b32.xlu0 %v780, 32
  %v783 = vpop.permute.xlu0 %782
  %vm785 = vcmask 254976
  %786 = vst.msk [vmem:[%s4] sm:$0x3] %vm785, %v783
  %v787 = vadd.f32 %v699, %v773
  %789 = vrot.lane.b32.xlu0 %v787, 96
  %v790 = vpop.permute.xlu0 %789
  %792 = vst.msk [vmem:[%s5] sm:$0x3] %vm785, %v790
  // Predicated region
  $region18: #{knowledge_seq2seq_forward.3} parent=0 // pred_check
    _
  $region19: #{knowledge_seq2seq_forward.3} parent=0 // pred_check_branch
    %794 = sbr.rel (0) target = $region21
  $region20: #{knowledge_seq2seq_forward.3} parent=0 // pred_region
    _
  $region21: #{knowledge_seq2seq_forward.3} parent=0 // pred_fallthru
    _
  // Predicated region
  $region22: #{knowledge_seq2seq_forward.3} parent=0 // pred_check
    _
  $region23: #{knowledge_seq2seq_forward.3} parent=0 // pred_check_branch
    %796 = sbr.rel (0) target = $region25
  $region24: #{knowledge_seq2seq_forward.3} parent=0 // pred_region
    _
  $region25: #{knowledge_seq2seq_forward.3} parent=0 // pred_fallthru
    _
  // Predicated region
  $region26: #{knowledge_seq2seq_forward.3} parent=0 // pred_check
    _
  $region27: #{knowledge_seq2seq_forward.3} parent=0 // pred_check_branch
    %798 = sbr.rel (0) target = $region29
  $region28: #{knowledge_seq2seq_forward.3} parent=0 // pred_region
    _
  $region29: #{knowledge_seq2seq_forward.3} parent=0 // pred_fallthru
    _
  // Predicated region
  $region30: #{knowledge_seq2seq_forward.3} parent=0 // pred_check
    _
  $region31: #{knowledge_seq2seq_forward.3} parent=0 // pred_check_branch
    %800 = sbr.rel (0) target = $region33
  $region32: #{knowledge_seq2seq_forward.3} parent=0 // pred_region
    _
  $region33: #{knowledge_seq2seq_forward.3} parent=0 // pred_fallthru
    _

// kernel: knowledge_seq2seq_forward.4
$region0: #{knowledge_seq2seq_forward.4}
  #allocation0 [shape = 'u32[]', space=smem, size = 0x4, offset = 0x4, fixed_abs, tag = 'smem constant byte address 0x4 - core index']
  #allocation1 [shape = 'u32[144,128]{1,0:T(1,128)}', space=vmem, size = 0x12000, scoped, tag = 'internal scratch']
  #allocation2 [shape = 'f32[2,32]{1,0:T(2,128)}', space=vmem, size = 0x400, scoped, tag = 'scratch operand']
  #allocation3 [shape = 'f32[2,32]{1,0:T(2,128)}', space=vmem, size = 0x400, scoped, tag = 'scratch operand']
  %s0 = inlined_call_operand.vmem [shape: f32[8,2,128], index: 0, kind: input, shape index: {}]
  %s1 = inlined_call_operand.vmem [shape: f32[2,6,16], index: 1, kind: input, shape index: {}]
  %s2 = inlined_call_operand.vmem [shape: f32[2,6,16], index: 2, kind: input, shape index: {}]
  %s3 = inlined_call_operand.vmem [shape: f32[2,6,1], index: 3, kind: input, shape index: {}]
  %s4 = inlined_call_operand.vmem [shape: f32[2,32], index: 4, kind: input, shape index: {}]
  %s5 = inlined_call_operand.vmem [shape: f32[2,32], index: 5, kind: input, shape index: {}]
  %s6 = inlined_call_operand.vmem [shape: bf16[32,16], index: 6, kind: input, shape index: {}]
  %s7 = inlined_call_operand.vmem [shape: f32[1,16], index: 7, kind: input, shape index: {}]
  %s8 = inlined_call_operand.vmem [shape: bf16[16,16], index: 8, kind: input, shape index: {}]
  %s9 = inlined_call_operand.vmem [shape: f32[1,16], index: 9, kind: input, shape index: {}]
  %s10 = inlined_call_operand.vmem [shape: bf16[16,128], index: 10, kind: input, shape index: {}]
  %s11 = inlined_call_operand.vmem [shape: bf16[32,128], index: 11, kind: input, shape index: {}]
  %s12 = inlined_call_operand.vmem [shape: f32[8,2,32], index: 12, kind: output, shape index: {0}]
  %s13 = inlined_call_operand.vmem [shape: f32[8,2,16], index: 13, kind: output, shape index: {1}]
  %14 = xla_tuple %s12, %s13
  %s15 = sld [smem:[#allocation0]]
  $region77: #{knowledge_seq2seq_forward.4} parent=0
    _
  %s17 = ssub.s32 1, %s15
  %s18 = scalar_select 0, %s17, %s15
  // Predicated region
  $region2: #{knowledge_seq2seq_forward.4} parent=0 // pred_check
    _
  $region3: #{knowledge_seq2seq_forward.4} parent=0 // pred_check_branch
    %20 = sbr.rel (0) target = $region5
  $region4: #{knowledge_seq2seq_forward.4} parent=0 // pred_region
    _
  $region5: #{knowledge_seq2seq_forward.4} parent=0 // pred_fallthru
    _
  // Predicated region
  $region6: #{knowledge_seq2seq_forward.4} parent=0 // pred_check
    _
  $region7: #{knowledge_seq2seq_forward.4} parent=0 // pred_check_branch
    %22 = sbr.rel (0) target = $region9
  $region8: #{knowledge_seq2seq_forward.4} parent=0 // pred_region
    _
  $region9: #{knowledge_seq2seq_forward.4} parent=0 // pred_fallthru
    _
  // Predicated region
  $region10: #{knowledge_seq2seq_forward.4} parent=0 // pred_check
    _
  $region11: #{knowledge_seq2seq_forward.4} parent=0 // pred_check_branch
    %24 = sbr.rel (0) target = $region13
  $region12: #{knowledge_seq2seq_forward.4} parent=0 // pred_region
    _
  $region13: #{knowledge_seq2seq_forward.4} parent=0 // pred_fallthru
    _
  // Predicated region
  $region14: #{knowledge_seq2seq_forward.4} parent=0 // pred_check
    _
  $region15: #{knowledge_seq2seq_forward.4} parent=0 // pred_check_branch
    %26 = sbr.rel (0) target = $region17
  $region16: #{knowledge_seq2seq_forward.4} parent=0 // pred_region
    _
  $region17: #{knowledge_seq2seq_forward.4} parent=0 // pred_fallthru
    _
  // Predicated region
  $region18: #{knowledge_seq2seq_forward.4} parent=0 // pred_check
    _
  $region19: #{knowledge_seq2seq_forward.4} parent=0 // pred_check_branch
    %28 = sbr.rel (0) target = $region21
  $region20: #{knowledge_seq2seq_forward.4} parent=0 // pred_region
    _
  $region21: #{knowledge_seq2seq_forward.4} parent=0 // pred_fallthru
    _
  // Predicated region
  $region22: #{knowledge_seq2seq_forward.4} parent=0 // pred_check
    _
  $region23: #{knowledge_seq2seq_forward.4} parent=0 // pred_check_branch
    %30 = sbr.rel (0) target = $region25
  $region24: #{knowledge_seq2seq_forward.4} parent=0 // pred_region
    _
  $region25: #{knowledge_seq2seq_forward.4} parent=0 // pred_fallthru
    _
  // Predicated region
  $region26: #{knowledge_seq2seq_forward.4} parent=0 // pred_check
    _
  $region27: #{knowledge_seq2seq_forward.4} parent=0 // pred_check_branch
    %32 = sbr.rel (0) target = $region29
  $region28: #{knowledge_seq2seq_forward.4} parent=0 // pred_region
    _
  $region29: #{knowledge_seq2seq_forward.4} parent=0 // pred_fallthru
    _
  // Predicated region
  $region30: #{knowledge_seq2seq_forward.4} parent=0 // pred_check
    _
  $region31: #{knowledge_seq2seq_forward.4} parent=0 // pred_check_branch
    %34 = sbr.rel (0) target = $region33
  $region32: #{knowledge_seq2seq_forward.4} parent=0 // pred_region
    _
  $region33: #{knowledge_seq2seq_forward.4} parent=0 // pred_fallthru
    _
  // Predicated region
  $region34: #{knowledge_seq2seq_forward.4} parent=0 // pred_check
    _
  $region35: #{knowledge_seq2seq_forward.4} parent=0 // pred_check_branch
    %36 = sbr.rel (0) target = $region37
  $region36: #{knowledge_seq2seq_forward.4} parent=0 // pred_region
    _
  $region37: #{knowledge_seq2seq_forward.4} parent=0 // pred_fallthru
    _
  // Predicated region
  $region38: #{knowledge_seq2seq_forward.4} parent=0 // pred_check
    _
  $region39: #{knowledge_seq2seq_forward.4} parent=0 // pred_check_branch
    %38 = sbr.rel (0) target = $region41
  $region40: #{knowledge_seq2seq_forward.4} parent=0 // pred_region
    _
  $region41: #{knowledge_seq2seq_forward.4} parent=0 // pred_fallthru
    _
  // Predicated region
  $region42: #{knowledge_seq2seq_forward.4} parent=0 // pred_check
    _
  $region43: #{knowledge_seq2seq_forward.4} parent=0 // pred_check_branch
    %40 = sbr.rel (0) target = $region45
  $region44: #{knowledge_seq2seq_forward.4} parent=0 // pred_region
    _
  $region45: #{knowledge_seq2seq_forward.4} parent=0 // pred_fallthru
    _
  // Predicated region
  $region46: #{knowledge_seq2seq_forward.4} parent=0 // pred_check
    _
  $region47: #{knowledge_seq2seq_forward.4} parent=0 // pred_check_branch
    %42 = sbr.rel (0) target = $region49
  $region48: #{knowledge_seq2seq_forward.4} parent=0 // pred_region
    _
  $region49: #{knowledge_seq2seq_forward.4} parent=0 // pred_fallthru
    _
  %v44 = vld [vmem:[%s1] sm:$0x3f]
  %v45 = vld [vmem:[%s1 + $0x8] sm:$0x3f]
  %v46 = vld [vmem:[%s2] sm:$0x3f]
  %v47 = vld [vmem:[%s2 + $0x8] sm:$0x3f]
  %v48 = vld [vmem:[%s3] sm:$0x3f]
  %v49 = vld [vmem:[%s3 + $0x8] sm:$0x3f]
  %v50 = vld [vmem:[%s6] sm:$0xf]
  %v51 = vld [vmem:[%s6 + $0x4] sm:$0xf]
  %v52 = vld [vmem:[%s6 + $0x8] sm:$0xf]
  %v53 = vld [vmem:[%s6 + $0xc] sm:$0xf]
  %v54 = vld [vmem:[%s7] sm:$0x1]
  %v55 = vld [vmem:[%s8] sm:$0xf]
  %v56 = vld [vmem:[%s8 + $0x4] sm:$0xf]
  %v57 = vld [vmem:[%s9] sm:$0x1]
  %v58 = vld [vmem:[%s10] sm:$0xf]
  %v59 = vld [vmem:[%s10 + $0x4] sm:$0xf]
  %v60 = vld [vmem:[%s11] sm:$0xf]
  %v61 = vld [vmem:[%s11 + $0x4] sm:$0xf]
  %v62 = vld [vmem:[%s11 + $0x8] sm:$0xf]
  %v63 = vld [vmem:[%s11 + $0xc] sm:$0xf]
  %p64 = scmp.eq.s32.totalorder 0, 0
  // Predicated region
  $region50: #{knowledge_seq2seq_forward.4} parent=0 // pred_check
    %p65 = pneg %p64
  $region51: #{knowledge_seq2seq_forward.4} parent=0 // pred_check_branch
    %67 = sbr.rel (%p65) target = $region53
  $region52: #{knowledge_seq2seq_forward.4} parent=0 // pred_region
    %v68 = vld [vmem:[%s4] sm:$0x3]
    %vm69 = vcmask 254976
    %70 = vst.msk [vmem:[#allocation2] sm:$0x3] %vm69, %v68
    %v71 = vld [vmem:[%s5] sm:$0x3]
    %72 = vst.msk [vmem:[#allocation3] sm:$0x3] %vm69, %v71
  $region53: #{knowledge_seq2seq_forward.4} parent=0 // pred_fallthru
    _
  loop: start=0, step=1, limit=8
  $region54: #{knowledge_seq2seq_forward.4} parent=0 // loop_pre_header
    _
  $region55: #{knowledge_seq2seq_forward.4} parent=0 // loop_header
    %s74 = sphi 0, %s78
    %p75 = scmp.ge.s32.totalorder %s74, 8
  $region56: #{knowledge_seq2seq_forward.4} parent=0 // loop_header_branch
    %77 = sbr.rel (%p75) target = $region60
  $region57: #{knowledge_seq2seq_forward.4} parent=0 // loop_body
    %v79 = vld [vmem:[#allocation2] sm:$0x3]
    %v80 = vld [vmem:[#allocation3] sm:$0x3]
    %v81 = vpack.c.bf16 %v79, %v79
    %v83 = vlaneseq
    %v84 = vshrl.u32 %v83, 7
    %v85 = vsub.s32 0, %v84
    %v86 = vrot.slane %v54, %v85
    %v92 = vunpack.c.l.b16 %v50
    %v93 = vunpack.c.l.b16 %v51
    %v94 = vunpack.c.l.b16 %v52
    %v95 = vunpack.c.l.b16 %v53
    %v96 = vpack.c.b16 %v93, %v92
    %v97 = vpack.c.b16 %v95, %v94
    %vm100 = vcmask 261120
    %v102 = vsel %vm100, %v81, 0
    %104 = vmatprep.subr.bf16.mxu0 0
    %105 = vmatpush1.bf16.msra.mxu0 %v96
    %106 = vmatprep.subr.bf16.mxu0 0
    %107 = vmatpush1.bf16.msra.mxu0 %v97
    %108 = vmatprep.subr.bf16.mxu0 0
    %109 = vmatpush1.bf16.msra.mxu0 0
    %110 = vmatprep.subr.bf16.mxu0 0
    %111 = vmatpush1.bf16.msra.mxu0 0
    %112 = vmatprep.subr.bf16.mxu0 0
    %113 = vmatpush1.bf16.msra.mxu0 0
    %114 = vmatprep.subr.bf16.mxu0 0
    %115 = vmatpush1.bf16.msra.mxu0 0
    %116 = vmatprep.subr.bf16.mxu0 0
    %117 = vmatpush1.bf16.msra.mxu0 0
    %118 = vmatprep.subr.bf16.mxu0 0
    %119 = vmatpush1.bf16.msra.mxu0 0
    %120 = vmatprep.subr.bf16.mxu0 0
    %121 = vmatpush1.bf16.msra.mxu0 0
    %122 = vmatprep.subr.bf16.mxu0 0
    %123 = vmatpush1.bf16.msra.mxu0 0
    %124 = vmatprep.subr.bf16.mxu0 0
    %125 = vmatpush1.bf16.msra.mxu0 0
    %126 = vmatprep.subr.bf16.mxu0 0
    %127 = vmatpush1.bf16.msra.mxu0 0
    %128 = vmatprep.subr.bf16.mxu0 0
    %129 = vmatpush1.bf16.msra.mxu0 0
    %130 = vmatprep.subr.bf16.mxu0 0
    %131 = vmatpush1.bf16.msra.mxu0 0
    %132 = vmatprep.subr.bf16.mxu0 0
    %133 = vmatpush1.bf16.msra.mxu0 0
    %134 = vmatprep.subr.bf16.mxu0 0
    %135 = vmatpush1.bf16.msra.mxu0 0
    %136 = vmatprep.mubr.bf16.mxu0 0
    %137 = vmatmul.mubr.bf16.gmra.mrb[0].mxu0 %v102
    %v138 = vpop.f32.mrb[0].mxu0
    %v139 = vadd.f32 %v86, %v138
    %v140 = vpop.f32.mrb[0].mxu0
    %v141 = vpop.f32.mrb[0].mxu0
    %v142 = vpop.f32.mrb[0].mxu0
    %143 = vdwg.mxu0
    %v146 = vunpack.c.l.s4 1966171168
    %v147 = vunpack.c.0.s8 %v146
    %v148 = vlaneseq
    %v149 = vshrl.u32 %v148, 7
    %v150 = vsub.s32 %v147, %v149
    %v151 = vrot.slane %v139, %v150
    %v152 = vcombine.high %v151, %v151
    %v154 = vunpack.c.l.s4 1966171168
    %v155 = vunpack.c.0.s8 %v154
    %v156 = vlaneseq
    %v157 = vshrl.u32 %v156, 7
    %v158 = vsub.s32 %v155, %v157
    %v159 = vrot.slane %v151, %v158
    %v161 = vunpack.c.l.s4 1966171168
    %v162 = vunpack.c.0.s8 %v161
    %v163 = vlaneseq
    %v164 = vshrl.u32 %v163, 7
    %v165 = vsub.s32 %v162, %v164
    %v166 = vrot.slane %v152, %v165
    %v167 = vlaneseq
    %v168 = vshrl.u32 %v167, 7
    %v169 = vsub.s32 0, %v168
    %v170 = vrot.slane %v159, %v169
    %v171 = vlaneseq
    %v172 = vshrl.u32 %v171, 7
    %v173 = vsub.s32 0, %v172
    %v174 = vrot.slane %v166, %v173
    %v177 = vmul.f32 %v170, %v44
    %v178 = vmul.f32 %v174, %v45
    %vm179 = vcmask 62464
    %v180 = vsel %vm179, %v177, 0.0
    %181 = vadd.xlane.f32.xlu0 %v180
    %v182 = vpop.xlane.xlu0 %181
    %v183 = vsel %vm179, %v178, 0.0
    %184 = vadd.xlane.f32.xlu0 %v183
    %v185 = vpop.xlane.xlu0 %184
    %188 = vrot.lane.b32.xlu0 %v177, 120
    %v189 = vpop.permute.xlu0 %188
    %190 = vrot.lane.b32.xlu0 %v178, 120
    %v191 = vpop.permute.xlu0 %190
    %v194 = vsel %vm179, %v189, 0.0
    %195 = vadd.xlane.f32.xlu0 %v194
    %v196 = vpop.xlane.xlu0 %195
    %v197 = vsel %vm179, %v191, 0.0
    %198 = vadd.xlane.f32.xlu0 %v197
    %v199 = vpop.xlane.xlu0 %198
    %vm200 = vcmask 7168
    %v201 = vsel %vm200, %v182, %v196
    %v202 = vsel %vm200, %v185, %v199
    %v203 = vmul.f32 %v201, 0.35355338
    %v204 = vmul.f32 %v202, 0.35355338
    %206 = vset.pattern.permute.xlu0 0
    %207 = vperm.xlu0 %206, %v48
    %v208 = vpop.permute.xlu0 %207
    %211 = vset.pattern.permute.xlu0 0
    %212 = vperm.xlu0 %211, %v49
    %v213 = vpop.permute.xlu0 %212
    %v215 = vadd.f32 %v203, %v208
    %v216 = vadd.f32 %v204, %v213
    %vm217 = vcmask 13312
    %v218 = vsel %vm217, %v215, -inf
    %v219 = vrot.slane %v218, 4
    %v220 = vmax.f32 %v218, %v219
    %v221 = vrot.slane %v220, 2
    %v222 = vmax.f32 %v220, %v221
    %v223 = vrot.slane %v222, 1
    %v224 = vmax.f32 %v222, %v223
    %v225 = vsel %vm217, %v216, -inf
    %v226 = vrot.slane %v225, 4
    %v227 = vmax.f32 %v225, %v226
    %v228 = vrot.slane %v227, 2
    %v229 = vmax.f32 %v227, %v228
    %v230 = vrot.slane %v229, 1
    %v231 = vmax.f32 %v229, %v230
    %v232 = vsub.f32 %v215, %v224
    %v233 = vsub.f32 %v216, %v231
    %v234 = vmul.f32 %v232, 1.442695
    %v235 = vpow.pop %v234
    %v236 = vmul.f32 %v233, 1.442695
    %v237 = vpow.pop %v236
    %v238 = vsel %vm217, %v235, 0.0
    %v239 = vrot.slane %v238, 4
    %v240 = vadd.f32 %v238, %v239
    %v241 = vrot.slane %v240, 2
    %v242 = vadd.f32 %v240, %v241
    %v243 = vrot.slane %v242, 1
    %v244 = vadd.f32 %v242, %v243
    %v245 = vsel %vm217, %v237, 0.0
    %v246 = vrot.slane %v245, 4
    %v247 = vadd.f32 %v245, %v246
    %v248 = vrot.slane %v247, 2
    %v249 = vadd.f32 %v247, %v248
    %v250 = vrot.slane %v249, 1
    %v251 = vadd.f32 %v249, %v250
    %v252 = vrcp.pop %v244
    %v253 = vmul.f32 %v235, %v252
    %v254 = vrcp.pop %v251
    %v255 = vmul.f32 %v237, %v254
    %257 = vset.pattern.permute.xlu0 0
    %258 = vperm.xlu0 %257, %v253
    %v259 = vpop.permute.xlu0 %258
    %262 = vset.pattern.permute.xlu0 0
    %263 = vperm.xlu0 %262, %v255
    %v264 = vpop.permute.xlu0 %263
    %v266 = vmul.f32 %v259, %v46
    %v267 = vmul.f32 %v264, %v47
    %v268 = vsel %vm179, %v266, 0.0
    %v269 = vrot.slane %v268, 4
    %v270 = vadd.f32 %v268, %v269
    %v271 = vrot.slane %v270, 2
    %v272 = vadd.f32 %v270, %v271
    %v273 = vrot.slane %v272, 1
    %v274 = vadd.f32 %v272, %v273
    %v275 = vsel %vm179, %v267, 0.0
    %v276 = vrot.slane %v275, 4
    %v277 = vadd.f32 %v275, %v276
    %v278 = vrot.slane %v277, 2
    %v279 = vadd.f32 %v277, %v278
    %v280 = vrot.slane %v279, 1
    %v281 = vadd.f32 %v279, %v280
    %282 = vset.pattern.permute.xlu0 1
    %283 = vperm.xlu0 %282, %v253
    %v284 = vpop.permute.xlu0 %283
    %286 = vset.pattern.permute.xlu0 1
    %287 = vperm.xlu0 %286, %v255
    %v288 = vpop.permute.xlu0 %287
    %v290 = vmul.f32 %v284, %v46
    %v291 = vmul.f32 %v288, %v47
    %vm292 = vcmask 128064
    %v293 = vsel %vm292, %v290, 0.0
    %v294 = vrot.slane %v293, 4
    %v295 = vadd.f32 %v293, %v294
    %v296 = vrot.slane %v295, 2
    %v297 = vadd.f32 %v295, %v296
    %v298 = vrot.slane %v297, 1
    %v299 = vadd.f32 %v297, %v298
    %v300 = vsel %vm292, %v291, 0.0
    %v301 = vrot.slane %v300, 4
    %v302 = vadd.f32 %v300, %v301
    %v303 = vrot.slane %v302, 2
    %v304 = vadd.f32 %v302, %v303
    %v305 = vrot.slane %v304, 1
    %v306 = vadd.f32 %v304, %v305
    %vm309 = vcmask 1041409
    %v310 = vsel %vm309, %v281, %v274
    %v314 = vsel %vm309, %v306, %v299
    %vm316 = vcmask 64512
    %v317 = vsel %vm316, %v310, %v314
    %v318 = vpack.c.bf16 %v317, %v317
    %v320 = vlaneseq
    %v321 = vshrl.u32 %v320, 7
    %v322 = vsub.s32 0, %v321
    %v323 = vrot.slane %v57, %v322
    %v327 = vunpack.c.l.b16 %v55
    %v328 = vunpack.c.l.b16 %v56
    %v329 = vpack.c.b16 %v328, %v327
    %vm331 = vcmask 130048
    %v333 = vsel %vm331, %v318, 0
    %335 = vmatprep.subr.bf16.mxu0 0
    %336 = vmatpush1.bf16.msra.mxu0 %v329
    %337 = vmatprep.subr.bf16.mxu0 0
    %338 = vmatpush1.bf16.msra.mxu0 0
    %339 = vmatprep.subr.bf16.mxu0 0
    %340 = vmatpush1.bf16.msra.mxu0 0
    %341 = vmatprep.subr.bf16.mxu0 0
    %342 = vmatpush1.bf16.msra.mxu0 0
    %343 = vmatprep.subr.bf16.mxu0 0
    %344 = vmatpush1.bf16.msra.mxu0 0
    %345 = vmatprep.subr.bf16.mxu0 0
    %346 = vmatpush1.bf16.msra.mxu0 0
    %347 = vmatprep.subr.bf16.mxu0 0
    %348 = vmatpush1.bf16.msra.mxu0 0
    %349 = vmatprep.subr.bf16.mxu0 0
    %350 = vmatpush1.bf16.msra.mxu0 0
    %351 = vmatprep.subr.bf16.mxu0 0
    %352 = vmatpush1.bf16.msra.mxu0 0
    %353 = vmatprep.subr.bf16.mxu0 0
    %354 = vmatpush1.bf16.msra.mxu0 0
    %355 = vmatprep.subr.bf16.mxu0 0
    %356 = vmatpush1.bf16.msra.mxu0 0
    %357 = vmatprep.subr.bf16.mxu0 0
    %358 = vmatpush1.bf16.msra.mxu0 0
    %359 = vmatprep.subr.bf16.mxu0 0
    %360 = vmatpush1.bf16.msra.mxu0 0
    %361 = vmatprep.subr.bf16.mxu0 0
    %362 = vmatpush1.bf16.msra.mxu0 0
    %363 = vmatprep.subr.bf16.mxu0 0
    %364 = vmatpush1.bf16.msra.mxu0 0
    %365 = vmatprep.subr.bf16.mxu0 0
    %366 = vmatpush1.bf16.msra.mxu0 0
    %367 = vmatprep.mubr.bf16.mxu0 0
    %368 = vmatmul.mubr.bf16.gmra.mrb[0].mxu0 %v333
    %v369 = vpop.f32.mrb[0].mxu0
    %v370 = vadd.f32 %v323, %v369
    %v371 = vpop.f32.mrb[0].mxu0
    %v372 = vpop.f32.mrb[0].mxu0
    %v373 = vpop.f32.mrb[0].mxu0
    %374 = vdwg.mxu0
    %s375 = smul.u32 %s74, 2
    %s376 = scalar_lea.vmem %s0, %s375
    %v377 = vld [vmem:[%s376] sm:$0x3]
    %v378 = vpack.c.bf16 %v370, %v370
    %v381 = vunpack.c.l.b16 %v58
    %v382 = vunpack.c.l.b16 %v59
    %v383 = vpack.c.b16 %v382, %v381
    %v386 = vsel %vm331, %v378, 0
    %388 = vmatprep.subr.bf16.mxu0 0
    %389 = vmatpush1.bf16.msra.mxu0 %v383
    %390 = vmatprep.subr.bf16.mxu0 0
    %391 = vmatpush1.bf16.msra.mxu0 0
    %392 = vmatprep.subr.bf16.mxu0 0
    %393 = vmatpush1.bf16.msra.mxu0 0
    %394 = vmatprep.subr.bf16.mxu0 0
    %395 = vmatpush1.bf16.msra.mxu0 0
    %396 = vmatprep.subr.bf16.mxu0 0
    %397 = vmatpush1.bf16.msra.mxu0 0
    %398 = vmatprep.subr.bf16.mxu0 0
    %399 = vmatpush1.bf16.msra.mxu0 0
    %400 = vmatprep.subr.bf16.mxu0 0
    %401 = vmatpush1.bf16.msra.mxu0 0
    %402 = vmatprep.subr.bf16.mxu0 0
    %403 = vmatpush1.bf16.msra.mxu0 0
    %404 = vmatprep.subr.bf16.mxu0 0
    %405 = vmatpush1.bf16.msra.mxu0 0
    %406 = vmatprep.subr.bf16.mxu0 0
    %407 = vmatpush1.bf16.msra.mxu0 0
    %408 = vmatprep.subr.bf16.mxu0 0
    %409 = vmatpush1.bf16.msra.mxu0 0
    %410 = vmatprep.subr.bf16.mxu0 0
    %411 = vmatpush1.bf16.msra.mxu0 0
    %412 = vmatprep.subr.bf16.mxu0 0
    %413 = vmatpush1.bf16.msra.mxu0 0
    %414 = vmatprep.subr.bf16.mxu0 0
    %415 = vmatpush1.bf16.msra.mxu0 0
    %416 = vmatprep.subr.bf16.mxu0 0
    %417 = vmatpush1.bf16.msra.mxu0 0
    %418 = vmatprep.subr.bf16.mxu0 0
    %419 = vmatpush1.bf16.msra.mxu0 0
    %420 = vmatprep.mubr.bf16.mxu0 0
    %421 = vmatmul.mubr.bf16.gmra.mrb[0].mxu0 %v386
    %v422 = vpop.f32.mrb[0].mxu0
    %v423 = vadd.f32 0.0, %v422
    %v424 = vpop.f32.mrb[0].mxu0
    %v425 = vpop.f32.mrb[0].mxu0
    %v426 = vpop.f32.mrb[0].mxu0
    %427 = vdwg.mxu0
    %v428 = vadd.f32 %v377, %v423
    %v433 = vunpack.c.l.b16 %v60
    %v434 = vunpack.c.l.b16 %v61
    %v435 = vunpack.c.l.b16 %v62
    %v436 = vunpack.c.l.b16 %v63
    %v437 = vpack.c.b16 %v434, %v433
    %v438 = vpack.c.b16 %v436, %v435
    %441 = vmatprep.subr.bf16.mxu0 0
    %442 = vmatpush1.bf16.msra.mxu0 %v437
    %443 = vmatprep.subr.bf16.mxu0 0
    %444 = vmatpush1.bf16.msra.mxu0 %v438
    %445 = vmatprep.subr.bf16.mxu0 0
    %446 = vmatpush1.bf16.msra.mxu0 0
    %447 = vmatprep.subr.bf16.mxu0 0
    %448 = vmatpush1.bf16.msra.mxu0 0
    %449 = vmatprep.subr.bf16.mxu0 0
    %450 = vmatpush1.bf16.msra.mxu0 0
    %451 = vmatprep.subr.bf16.mxu0 0
    %452 = vmatpush1.bf16.msra.mxu0 0
    %453 = vmatprep.subr.bf16.mxu0 0
    %454 = vmatpush1.bf16.msra.mxu0 0
    %455 = vmatprep.subr.bf16.mxu0 0
    %456 = vmatpush1.bf16.msra.mxu0 0
    %457 = vmatprep.subr.bf16.mxu0 0
    %458 = vmatpush1.bf16.msra.mxu0 0
    %459 = vmatprep.subr.bf16.mxu0 0
    %460 = vmatpush1.bf16.msra.mxu0 0
    %461 = vmatprep.subr.bf16.mxu0 0
    %462 = vmatpush1.bf16.msra.mxu0 0
    %463 = vmatprep.subr.bf16.mxu0 0
    %464 = vmatpush1.bf16.msra.mxu0 0
    %465 = vmatprep.subr.bf16.mxu0 0
    %466 = vmatpush1.bf16.msra.mxu0 0
    %467 = vmatprep.subr.bf16.mxu0 0
    %468 = vmatpush1.bf16.msra.mxu0 0
    %469 = vmatprep.subr.bf16.mxu0 0
    %470 = vmatpush1.bf16.msra.mxu0 0
    %471 = vmatprep.subr.bf16.mxu0 0
    %472 = vmatpush1.bf16.msra.mxu0 0
    %473 = vmatprep.mubr.bf16.mxu0 0
    %474 = vmatmul.mubr.bf16.gmra.mrb[0].mxu0 %v102
    %v475 = vpop.f32.mrb[0].mxu0
    %v476 = vadd.f32 0.0, %v475
    %v477 = vpop.f32.mrb[0].mxu0
    %v478 = vpop.f32.mrb[0].mxu0
    %v479 = vpop.f32.mrb[0].mxu0
    %480 = vdwg.mxu0
    %v481 = vadd.f32 %v428, %v476
    %v482 = vxor.u32 %v481, 2147483648
    %v483 = vmul.f32 %v482, 1.442695
    %v484 = vpow.pop %v483
    %v485 = vadd.f32 %v484, 1.0
    %v486 = vrcp.pop %v485
    %v487 = vmul.f32 1.0, %v486
    %v488 = vtanh.pop %v481
    %490 = vrot.lane.b32.xlu0 %v80, 32
    %v491 = vpop.permute.xlu0 %490
    %v493 = vmul.f32 %v487, %v491
    %495 = vrot.lane.b32.xlu0 %v488, 64
    %v496 = vpop.permute.xlu0 %495
    %v498 = vmul.f32 %v487, %v496
    %500 = vrot.lane.b32.xlu0 %v498, 32
    %v501 = vpop.permute.xlu0 %500
    %v503 = vadd.f32 %v493, %v501
    %v504 = vtanh.pop %v503
    %506 = vrot.lane.b32.xlu0 %v504, 64
    %v507 = vpop.permute.xlu0 %506
    %v509 = vmul.f32 %v487, %v507
    %511 = vrot.lane.b32.xlu0 %v509, 32
    %v512 = vpop.permute.xlu0 %511
    %vm514 = vcmask 254976
    %515 = vst.msk [vmem:[#allocation2] sm:$0x3] %vm514, %v512
    %517 = vrot.lane.b32.xlu0 %v503, 96
    %v518 = vpop.permute.xlu0 %517
    %520 = vst.msk [vmem:[#allocation3] sm:$0x3] %vm514, %v518
    %s521 = scalar_lea.vmem %s12, %s375
    %522 = vst.msk [vmem:[%s521] sm:$0x3] %vm514, %v512
    %s523 = scalar_lea.vmem %s13, %s375
    %vm524 = vcmask 123904
    %525 = vst.msk [vmem:[%s523] sm:$0x3] %vm524, %v370
  $region58: #{knowledge_seq2seq_forward.4} parent=0 // loop_footer
    %s78 = sadd.s32 1, %s74
  $region59: #{knowledge_seq2seq_forward.4} parent=0 // loop_footer_branch
    %73 = sbr.rel target = $region55
  $region60: #{knowledge_seq2seq_forward.4} parent=0 // loop_exit
    _
  // Predicated region
  $region61: #{knowledge_seq2seq_forward.4} parent=0 // pred_check
    _
  $region62: #{knowledge_seq2seq_forward.4} parent=0 // pred_check_branch
    %527 = sbr.rel (0) target = $region64
  $region63: #{knowledge_seq2seq_forward.4} parent=0 // pred_region
    _
  $region64: #{knowledge_seq2seq_forward.4} parent=0 // pred_fallthru
    _
  // Predicated region
  $region65: #{knowledge_seq2seq_forward.4} parent=0 // pred_check
    _
  $region66: #{knowledge_seq2seq_forward.4} parent=0 // pred_check_branch
    %529 = sbr.rel (0) target = $region68
  $region67: #{knowledge_seq2seq_forward.4} parent=0 // pred_region
    _
  $region68: #{knowledge_seq2seq_forward.4} parent=0 // pred_fallthru
    _
  // Predicated region
  $region69: #{knowledge_seq2seq_forward.4} parent=0 // pred_check
    _
  $region70: #{knowledge_seq2seq_forward.4} parent=0 // pred_check_branch
    %531 = sbr.rel (0) target = $region72
  $region71: #{knowledge_seq2seq_forward.4} parent=0 // pred_region
    _
  $region72: #{knowledge_seq2seq_forward.4} parent=0 // pred_fallthru
    _
  // Predicated region
  $region73: #{knowledge_seq2seq_forward.4} parent=0 // pred_check
    _
  $region74: #{knowledge_seq2seq_forward.4} parent=0 // pred_check_branch
    %533 = sbr.rel (0) target = $region76
  $region75: #{knowledge_seq2seq_forward.4} parent=0 // pred_region
    _
  $region76: #{knowledge_seq2seq_forward.4} parent=0 // pred_fallthru
    _

</llo_original>
